<compile_context>
chip_gen: v6e
topology: v6e:2x2x1
jax: 0.10.0
libtpu: 0.0.40
codegen_flags: <defaults>
</compile_context>

<pallas_src>
import functools
import math

import jax
import jax.numpy as jnp
import numpy as np
from jax.experimental import pallas as pl
from jax.experimental.pallas import tpu as pltpu


# Interior of the padded slab starts at this (sublane-aligned) column so interior
# stores are unmasked / unrotated.  Taps read at columns _PAD_L-1 / _PAD_L / _PAD_L+1.
_PAD_L = 8

# Use the fused (rows, 9*Cin) im2col only while 9*Cin stays at/below the MXU
# contraction depth; wider layers use nine K=Cin dots (v7x MRB accumulates in place).
_FUSE_K_MAX = 256


@functools.lru_cache(maxsize=None)
def _vmem_limit_bytes():
    """Generation-aware scoped-VMEM budget (~3/4 of per-core capacity, capped)."""
    cap = None
    try:
        info = pltpu.get_tpu_info()
        for attr in ("vmem_capacity_bytes", "vmem_size_bytes", "vmem_bytes"):
            cap = getattr(info, attr, None)
            if cap:
                break
    except Exception:   # pragma: no cover -- query unavailable on some stacks
        cap = None
    if not cap:
        cap = 64 * 1024 * 1024          # conservative fallback (fits v7x)
    return int(min(cap * 3 // 4, 100 * 1024 * 1024))


def _compiler_params():
    return pltpu.CompilerParams(
        dimension_semantics=("parallel",),
        vmem_limit_bytes=_vmem_limit_bytes(),
    )


# ----------------------------------------------------------------------------
# In-kernel helpers (operate on VMEM refs)
# ----------------------------------------------------------------------------
def _zero_border(xp_ref, h, w):
    """Zero only the 1-pixel ring around the (h, w) interior that the taps read.

    Columns < _PAD_L-1 are never read by any tap, so they are left untouched.
    Done every grid step (cheap: O(h + w)); a once-only init would be unsafe under
    "parallel" megacore sharding because scratch is per-core.
    """
    c = xp_ref.shape[-1]
    zrow = jnp.zeros((1, w + 2, c), xp_ref.dtype)
    xp_ref[pl.ds(0, 1), pl.ds(_PAD_L - 1, w + 2), :] = zrow          # top row
    xp_ref[pl.ds(h + 1, 1), pl.ds(_PAD_L - 1, w + 2), :] = zrow      # bottom row
    zcol = jnp.zeros((h, 1, c), xp_ref.dtype)
    xp_ref[pl.ds(1, h), pl.ds(_PAD_L - 1, 1), :] = zcol              # left col
    xp_ref[pl.ds(1, h), pl.ds(_PAD_L + w, 1), :] = zcol              # right col


def _im2col(xp_ref, ho, wo, *, stride=1, fuse_k=True):
    """Gather the nine 3x3 taps from the zero-bordered VMEM slab.

    fuse_k=True : one (ho*wo, 9*cin) operand (column order (di, dj, cin), matching
                  w.reshape(9*cin, cout) of an HWIO weight) for a single big-K dot.
    fuse_k=False: list of nine (ho*wo, cin) taps (nine K=cin dots).
    """
    cin = xp_ref.shape[-1]
    s = None if stride == 1 else stride
    taps = []
    for di in range(3):
        for dj in range(3):
            win = xp_ref[pl.ds(di, ho, stride=s),
                         pl.ds(_PAD_L - 1 + dj, wo, stride=s), :]
            taps.append(win.reshape(ho * wo, cin))
    if fuse_k:
        return jnp.concatenate(taps, axis=-1)
    return taps


def _matmul_bias(patches, w_ref, b_ref):
    """MXU matmul(s) against a (9*cin, cout) weight ref + f32 bias broadcast."""
    if isinstance(patches, (list, tuple)):          # nine K=cin matmuls
        cin = patches[0].shape[-1]
        acc = jnp.zeros((patches[0].shape[0], w_ref.shape[-1]), jnp.float32)
        for k, tap in enumerate(patches):
            acc = acc + jnp.dot(tap, w_ref[pl.ds(k * cin, cin), :],
                                preferred_element_type=jnp.float32)
    else:                                           # single K=9*cin matmul
        acc = jnp.dot(patches, w_ref[...], preferred_element_type=jnp.float32)
    return acc + b_ref[...]                         # (ho*wo, cout) f32


def _store_interior(xp_ref, val_f32, h, w):
    """Write an (h*w, c) f32 value into the sublane-aligned interior of the slab."""
    xp_ref[pl.ds(1, h), pl.ds(_PAD_L, w), :] = (
        val_f32.reshape(h, w, -1).astype(xp_ref.dtype))


def _resnet_body(xp_ref, wi_ref, bi_ref, w1_ref, b1_ref, w2_ref, b2_ref,
                 ws_ref, bs_ref, o_ref, h, w, fuse_k):
    """in_conv -> (block1+ReLU, skep) -> block2 -> add, entirely from/into VMEM.

    Assumes xp_ref already holds the block input in its interior with a zero border.
    """
    # in_conv
    x1 = _matmul_bias(_im2col(xp_ref, h, w, fuse_k=fuse_k), wi_ref, bi_ref)
    _store_interior(xp_ref, x1, h, w)
    # block1 (+ReLU) and skep share one im2col of x1
    patches = _im2col(xp_ref, h, w, fuse_k=fuse_k)
    skep = _matmul_bias(patches, ws_ref, bs_ref)
    h1 = jnp.maximum(_matmul_bias(patches, w1_ref, b1_ref), 0.0)
    _store_interior(xp_ref, h1, h, w)
    # block2 + residual
    h2 = _matmul_bias(_im2col(xp_ref, h, w, fuse_k=fuse_k), w2_ref, b2_ref)
    o_ref[...] = (h2 + skep).reshape(h, w, -1).astype(o_ref.dtype)


# ----------------------------------------------------------------------------
# Kernels
# ----------------------------------------------------------------------------
def _conv_in_kernel(x_ref, w_ref, b_ref, pos_ref, o_ref, xp_ref,
                    *, h, w, t, motion_scale, fuse_k):
    """conv_in (3x3, pad 1) fused with the motion-scaled positional-embedding add."""
    _zero_border(xp_ref, h, w)
    xp_ref[pl.ds(1, h), pl.ds(_PAD_L, w), :] = x_ref[...]
    acc = _matmul_bias(_im2col(xp_ref, h, w, fuse_k=fuse_k), w_ref, b_ref)   # (h*w, C)
    frame = pl.program_id(0) % t                       # n = b_idx * t + frame
    acc = acc + motion_scale * pos_ref[pl.ds(frame, 1), :]   # broadcast over rows
    o_ref[...] = acc.reshape(h, w, -1).astype(o_ref.dtype)


def _resblock_kernel(x_ref, wi_ref, bi_ref, w1_ref, b1_ref, w2_ref, b2_ref,
                     ws_ref, bs_ref, o_ref, xp_ref, *, h, w, fuse_k):
    _zero_border(xp_ref, h, w)
    xp_ref[pl.ds(1, h), pl.ds(_PAD_L, w), :] = x_ref[...]
    _resnet_body(xp_ref, wi_ref, bi_ref, w1_ref, b1_ref, w2_ref, b2_ref,
                 ws_ref, bs_ref, o_ref, h, w, fuse_k)


def _down_resblock_kernel(x_ref, wd_ref, bd_ref, wi_ref, bi_ref, w1_ref, b1_ref,
                          w2_ref, b2_ref, ws_ref, bs_ref, o_ref, xpin_ref, xp_ref,
                          *, hin, win, h, w, fuse_k):
    # Downsample: 3x3 / stride 2 / pad 1 conv, result kept in VMEM.
    _zero_border(xpin_ref, hin, win)
    xpin_ref[pl.ds(1, hin), pl.ds(_PAD_L, win), :] = x_ref[...]
    xd = _matmul_bias(_im2col(xpin_ref, h, w, stride=2, fuse_k=fuse_k), wd_ref, bd_ref)
    _zero_border(xp_ref, h, w)
    _store_interior(xp_ref, xd, h, w)
    _resnet_body(xp_ref, wi_ref, bi_ref, w1_ref, b1_ref, w2_ref, b2_ref,
                 ws_ref, bs_ref, o_ref, h, w, fuse_k)


# ----------------------------------------------------------------------------
# pallas_call wrappers
# ----------------------------------------------------------------------------
def _rep_spec(shape):
    zeros = (0,) * len(shape)
    return pl.BlockSpec(shape, lambda n: zeros)


def _img_spec(h, w, c):
    return pl.BlockSpec((None, h, w, c), lambda n: (n, 0, 0, 0))


@functools.lru_cache(maxsize=None)
def _fused_k_supported(dtype):
    """Probe whether Mosaic supports the unaligned minor-dim concatenation used by the
    fused-K im2col path (nine narrow taps -> one (rows, 9*cin) operand)."""
    def probe(a_ref, w_ref, o_ref):
        p = jnp.concatenate([a_ref[...]] * 9, axis=-1)               # (16, 72)
        o_ref[...] = jnp.dot(p, w_ref[...], preferred_element_type=jnp.float32)
    try:
        out = pl.pallas_call(
            probe, out_shape=jax.ShapeDtypeStruct((16, 8), jnp.float32),
        )(jnp.ones((16, 8), dtype), jnp.ones((72, 8), dtype))
        jax.block_until_ready(out)
        return True
    except Exception:        # pragma: no cover -- depends on Mosaic version
        return False


def _pick_fuse_k(cin, dtype):
    """Per-layer decision: fuse only while 9*Cin fits the MXU contraction depth."""
    return (9 * cin <= _FUSE_K_MAX) and _fused_k_supported(dtype)


def conv_in_pallas(x, w9, b2, pos, *, t, motion_scale, fuse_k):
    """x: (N, H, W, Cin); w9: (9*Cin, Cout); b2: (1, Cout) f32; pos: (t, Cout) f32."""
    N, H, W, Cin = x.shape
    Cout = w9.shape[-1]
    kernel = functools.partial(_conv_in_kernel, h=H, w=W, t=t,
                               motion_scale=motion_scale, fuse_k=fuse_k)
    return pl.pallas_call(
        kernel,
        out_shape=jax.ShapeDtypeStruct((N, H, W, Cout), x.dtype),
        grid=(N,),
        in_specs=[_img_spec(H, W, Cin),
                  _rep_spec(w9.shape),
                  _rep_spec(b2.shape),
                  _rep_spec(pos.shape)],
        out_specs=_img_spec(H, W, Cout),
        scratch_shapes=[pltpu.VMEM((H + 2, W + _PAD_L + 1, Cin), x.dtype)],
        compiler_params=_compiler_params(),
    )(x, w9, b2, pos)


def resblock_pallas(x, p, *, fuse_k):
    """Fused ResnetBlock (down=False); p holds (9C, C) weights and (1, C) f32 biases."""
    N, H, W, C = x.shape
    kernel = functools.partial(_resblock_kernel, h=H, w=W, fuse_k=fuse_k)
    wspec, bspec = _rep_spec((9 * C, C)), _rep_spec((1, C))
    return pl.pallas_call(
        kernel,
        out_shape=jax.ShapeDtypeStruct((N, H, W, C), x.dtype),
        grid=(N,),
        in_specs=[_img_spec(H, W, C)] + [wspec, bspec] * 4,
        out_specs=_img_spec(H, W, C),
        scratch_shapes=[pltpu.VMEM((H + 2, W + _PAD_L + 1, C), x.dtype)],
        compiler_params=_compiler_params(),
    )(x, p["iw"], p["ib"], p["w1"], p["b1"], p["w2"], p["b2"], p["ws"], p["bs"])


def down_resblock_pallas(x, p, *, fuse_k):
    """Fused Downsample (replicate-pad-to-even + stride-2 conv) + ResnetBlock."""
    N, H, W, C = x.shape
    ph, pw = H % 2, W % 2
    if ph or pw:   # matches F.pad(..., mode='replicate') in Downsample.forward
        # TODO(synk): fold this replicate pad into the kernel's slab fill instead of an
        # extra HBM pass (only triggered for odd H/W).
        x = jnp.pad(x, ((0, 0), (0, ph), (0, pw), (0, 0)), mode="edge")
        H, W = H + ph, W + pw
    Ho, Wo = H // 2, W // 2
    kernel = functools.partial(_down_resblock_kernel, hin=H, win=W, h=Ho, w=Wo,
                               fuse_k=fuse_k)
    wspec, bspec = _rep_spec((9 * C, C)), _rep_spec((1, C))
    return pl.pallas_call(
        kernel,
        out_shape=jax.ShapeDtypeStruct((N, Ho, Wo, C), x.dtype),
        grid=(N,),
        in_specs=[_img_spec(H, W, C)] + [wspec, bspec] * 5,
        out_specs=_img_spec(Ho, Wo, C),
        scratch_shapes=[pltpu.VMEM((H + 2, W + _PAD_L + 1, C), x.dtype),
                        pltpu.VMEM((Ho + 2, Wo + _PAD_L + 1, C), x.dtype)],
        compiler_params=_compiler_params(),
    )(x, p["dw"], p["db"], p["iw"], p["ib"], p["w1"], p["b1"],
      p["w2"], p["b2"], p["ws"], p["bs"])


# ----------------------------------------------------------------------------
# Adapter forward (Pallas path + pure-JAX reference path)
# ----------------------------------------------------------------------------
def fixed_positional_embedding(t, d_model):
    position = jnp.arange(t, dtype=jnp.float32)[:, None]
    div_term = jnp.exp(
        jnp.arange(0, d_model, 2, dtype=jnp.float32) * (-math.log(10000.0) / d_model))
    pe = jnp.zeros((t, d_model), jnp.float32)
    pe = pe.at[:, 0::2].set(jnp.sin(position * div_term))
    pe = pe.at[:, 1::2].set(jnp.cos(position * div_term))
    return pe


def _prep_params(params, dtype):
    """(3,3,ci,co) HWIO weights -> (9*ci, co) in compute dtype; biases -> (1, co) f32."""
    def w_(w):
        return w.reshape(-1, w.shape[-1]).astype(dtype)
    def b_(b):
        return b.reshape(1, -1).astype(jnp.float32)
    pp = {"conv_in_w": w_(params["conv_in"][0]),
          "conv_in_b": b_(params["conv_in"][1]),
          "body": []}
    for bp in params["body"]:
        nb = {}
        for wk, bk in (("dw", "db"), ("iw", "ib"), ("w1", "b1"), ("w2", "b2"), ("ws", "bs")):
            if wk in bp:
                nb[wk] = w_(bp[wk])
                nb[bk] = b_(bp[bk])
        pp["body"].append(nb)
    return pp


def _rearrange_features(feats_nhwc, b, t, insertion_weights):
    outs = []
    for fmap, wgt in zip(feats_nhwc, insertion_weights):
        N, H, W, C = fmap.shape
        f = fmap.astype(jnp.float32).reshape(b, t, H, W, C).transpose(0, 4, 1, 2, 3)
        outs.append(wgt * f)                               # (b, c, t, h, w)
    return outs


def adapter_forward_pallas(x_bcthw, params, channels, nums_rb, *,
                           compute_dtype=jnp.bfloat16, motion_scale=0.8,
                           insertion_weights=(1.0, 1.0, 1.0, 1.0), fuse_k=None):
    b, c, t, h, w = x_bcthw.shape
    # 'b c t h w -> (b t) c h w' then NCHW -> NHWC
    x = jnp.transpose(x_bcthw, (0, 2, 3, 4, 1)).reshape(b * t, h, w, c).astype(compute_dtype)
    pos = fixed_positional_embedding(t, channels[0])       # (t, d_model) f32, tiny
    pp = _prep_params(params, compute_dtype)

    def layer_fuse(cin):
        return fuse_k if fuse_k is not None else _pick_fuse_k(cin, compute_dtype)

    # conv_in fused with x = motion_scale * pos + x (pos broadcast in-kernel)
    x = conv_in_pallas(x, pp["conv_in_w"], pp["conv_in_b"], pos,
                       t=t, motion_scale=motion_scale, fuse_k=layer_fuse(c))
    feats = []
    for i in range(len(channels)):
        for j in range(nums_rb):
            bp = pp["body"][i * nums_rb + j]
            fk = layer_fuse(channels[i])
            if i != 0 and j == 0:
                x = down_resblock_pallas(x, bp, fuse_k=fk)
            else:
                x = resblock_pallas(x, bp, fuse_k=fk)
        feats.append(x)
    return _rearrange_features(feats, b, t, insertion_weights)


# ---- pure-JAX reference (same dtype rounding points as the kernels) ----
def _conv3x3_ref(x, w, b, *, stride=1):
    out = jax.lax.conv_general_dilated(
        x, w, (stride, stride), ((1, 1), (1, 1)),
        dimension_numbers=("NHWC", "HWIO", "NHWC"),
        preferred_element_type=jnp.float32)
    return out + b[None, None, None, :].astype(jnp.float32)


def _resnet_block_ref(x, p, down, dtype):
    if down:
        _, H, W, _ = x.shape
        ph, pw = H % 2, W % 2
        if ph or pw:
            x = jnp.pad(x, ((0, 0), (0, ph), (0, pw), (0, 0)), mode="edge")
        x = _conv3x3_ref(x, p["dw"].astype(dtype), p["db"], stride=2).astype(dtype)
    x1 = _conv3x3_ref(x, p["iw"].astype(dtype), p["ib"]).astype(dtype)
    skep = _conv3x3_ref(x1, p["ws"].astype(dtype), p["bs"])                    # f32
    h1 = jnp.maximum(_conv3x3_ref(x1, p["w1"].astype(dtype), p["b1"]), 0.0).astype(dtype)
    h2 = _conv3x3_ref(h1, p["w2"].astype(dtype), p["b2"])                      # f32
    return (h2 + skep).astype(dtype)


def adapter_forward_ref(x_bcthw, params, channels, nums_rb, *,
                        compute_dtype=jnp.bfloat16, motion_scale=0.8,
                        insertion_weights=(1.0, 1.0, 1.0, 1.0)):
    b, c, t, h, w = x_bcthw.shape
    x = jnp.transpose(x_bcthw, (0, 2, 3, 4, 1)).reshape(b * t, h, w, c).astype(compute_dtype)
    pos = fixed_positional_embedding(t, channels[0])
    x0 = _conv3x3_ref(x, params["conv_in"][0].astype(compute_dtype),
                      params["conv_in"][1])                                    # f32
    pos_img = jnp.tile(pos[:, None, None, :], (b, 1, 1, 1))                    # (b*t,1,1,d)
    x = (x0 + motion_scale * pos_img).astype(compute_dtype)
    feats = []
    for i in range(len(channels)):
        for j in range(nums_rb):
            bp = params["body"][i * nums_rb + j]
            x = _resnet_block_ref(x, bp, down=(i != 0 and j == 0), dtype=compute_dtype)
        feats.append(x)
    return _rearrange_features(feats, b, t, insertion_weights)


# ----------------------------------------------------------------------------
# Deterministic parameter init (shapes match the PyTorch module __init__)
# ----------------------------------------------------------------------------
def init_conv(key, cin, cout, gain=0.85, bias_scale=0.05):
    kw, kb = jax.random.split(key)
    fan_in = 9 * cin
    w = jax.random.normal(kw, (3, 3, cin, cout), jnp.float32) * (gain / math.sqrt(fan_in))
    b = jax.random.normal(kb, (cout,), jnp.float32) * bias_scale
    return w, b


def init_adapter_params(key, cin, channels, nums_rb):
    keys = iter(jax.random.split(key, 128))
    params = {"conv_in": init_conv(next(keys), cin, channels[0]), "body": []}
    for i in range(len(channels)):
        for j in range(nums_rb):
            down = (i != 0 and j == 0)
            in_c = channels[i - 1] if down else channels[i]
            out_c = channels[i]
            assert in_c == out_c, "sk=False forward only runs with equal channels"
            bp = {}
            if down:
                bp["dw"], bp["db"] = init_conv(next(keys), in_c, in_c)    # Downsample conv
            bp["iw"], bp["ib"] = init_conv(next(keys), in_c, out_c)       # in_conv
            bp["w1"], bp["b1"] = init_conv(next(keys), out_c, out_c)      # block1
            bp["w2"], bp["b2"] = init_conv(next(keys), out_c, out_c)      # block2
            bp["ws"], bp["bs"] = init_conv(next(keys), out_c, out_c)      # skep
            params["body"].append(bp)
    return params


if __name__ == "__main__":
    key = jax.random.PRNGKey(0)
    b, t, h, w = 2, 2, 16, 16          # b*t = 4 (even: both v7x TensorCores get work)
    cin = 4
    channels = [8, 8, 8, 8]   # equal channels: the only valid sk=False configuration
    nums_rb = 2

    kx, kp = jax.random.split(key)
    x = jax.random.normal(kx, (b, cin, t, h, w), jnp.float32)
    params = init_adapter_params(kp, cin, channels, nums_rb)

    # Production path: bf16 operands / storage, f32 accumulation + epilogue.
    feats = adapter_forward_pallas(x, params, channels, nums_rb,
                                   compute_dtype=jnp.bfloat16)
    feats = jax.block_until_ready(feats)

    feats_ref = adapter_forward_ref(x, params, channels, nums_rb,
                                    compute_dtype=jnp.bfloat16)
    feats_ref = jax.block_until_ready(feats_ref)
    for a, r in zip(feats, feats_ref):
        assert a.shape == r.shape, (a.shape, r.shape)
        np.testing.assert_allclose(np.asarray(a), np.asarray(r), rtol=2e-2, atol=2e-2)

    print("KERNEL_OK")
</pallas_src>

<mosaic_0001>
module attributes {stable_mosaic.version = 11 : i64} {
  func.func @probe(%arg0: memref<16x8xbf16, #tpu.memory_space<vmem>>, %arg1: memref<72x8xbf16, #tpu.memory_space<vmem>>, %arg2: memref<16x8xf32, #tpu.memory_space<vmem>>) attributes {dimension_semantics = [], scalar_prefetch = 0 : i64, scratch_operands = 0 : i64, tpu.core_type = #tpu.core_type<tc>} {
    %c0 = arith.constant 0 : index
    %c0_0 = arith.constant 0 : index
    %0 = vector.load %arg0[%c0, %c0_0] : memref<16x8xbf16, #tpu.memory_space<vmem>>, vector<16x8xbf16>
    %1 = tpu.concatenate %0, %0, %0, %0, %0, %0, %0, %0, %0 in 1 : vector<16x8xbf16>, vector<16x8xbf16>, vector<16x8xbf16>, vector<16x8xbf16>, vector<16x8xbf16>, vector<16x8xbf16>, vector<16x8xbf16>, vector<16x8xbf16>, vector<16x8xbf16> -> vector<16x72xbf16>
    %c0_1 = arith.constant 0 : index
    %c0_2 = arith.constant 0 : index
    %2 = vector.load %arg1[%c0_1, %c0_2] : memref<72x8xbf16, #tpu.memory_space<vmem>>, vector<72x8xbf16>
    %cst = arith.constant dense<0.000000e+00> : vector<16x8xf32>
    %3 = tpu.matmul %1, %2, %cst {dimension_numbers = #tpu.dot_dimension_numbers<[1], [0], [0], [1], [0, 0, 1, 1], [], []>} : vector<16x72xbf16>, vector<72x8xbf16>, vector<16x8xf32> -> vector<16x8xf32>
    %c0_3 = arith.constant 0 : index
    %c0_4 = arith.constant 0 : index
    %4 = vector.load %arg2[%c0_3, %c0_4] : memref<16x8xf32, #tpu.memory_space<vmem>>, vector<16x8xf32>
    tpu.vector_store %arg2[%c0_3, %c0_4], %3 {strides = array<i32>} : memref<16x8xf32, #tpu.memory_space<vmem>>, vector<16x8xf32>,
    return
  }
}

module attributes {stable_mosaic.version = 11 : i64} {
  func.func @_conv_in_kernel(%arg0: i32, %arg1: memref<1x16x16x4xbf16, #tpu.memory_space<vmem>>, %arg2: memref<36x8xbf16, #tpu.memory_space<vmem>>, %arg3: memref<1x8xf32, #tpu.memory_space<vmem>>, %arg4: memref<2x8xf32, #tpu.memory_space<vmem>>, %arg5: memref<1x16x16x8xbf16, #tpu.memory_space<vmem>>, %arg6: memref<18x25x4xbf16, #tpu.memory_space<vmem>>) attributes {dimension_semantics = [#tpu.dimension_semantics<parallel>], iteration_bounds = array<i64: 4>, scalar_prefetch = 0 : i64, scratch_operands = 1 : i64, tpu.core_type = #tpu.core_type<tc>, window_params = [{transform_indices = @transform_0, window_bounds = array<i64: 1, 16, 16, 4>}, {pipeline_mode = #tpu.pipeline_mode<synchronous>, transform_indices = @transform_1, window_bounds = array<i64: 36, 8>}, {pipeline_mode = #tpu.pipeline_mode<synchronous>, transform_indices = @transform_2, window_bounds = array<i64: 1, 8>}, {pipeline_mode = #tpu.pipeline_mode<synchronous>, transform_indices = @transform_3, window_bounds = array<i64: 2, 8>}, {transform_indices = @transform_4, window_bounds = array<i64: 1, 16, 16, 8>}]} {
    %cst = arith.constant 0.000000e+00 : bf16
    %0 = vector.broadcast %cst : bf16 to vector<1x18x4xbf16>
    %c0 = arith.constant 0 : index
    %c7 = arith.constant 7 : index
    %c0_0 = arith.constant 0 : index
    %1 = vector.load %arg6[%c0, %c7, %c0_0] : memref<18x25x4xbf16, #tpu.memory_space<vmem>>, vector<1x18x4xbf16>
    tpu.vector_store %arg6[%c0, %c7, %c0_0], %0 {strides = array<i32>} : memref<18x25x4xbf16, #tpu.memory_space<vmem>>, vector<1x18x4xbf16>,
    %c17 = arith.constant 17 : index
    %c7_1 = arith.constant 7 : index
    %c0_2 = arith.constant 0 : index
    %2 = vector.load %arg6[%c17, %c7_1, %c0_2] : memref<18x25x4xbf16, #tpu.memory_space<vmem>>, vector<1x18x4xbf16>
    tpu.vector_store %arg6[%c17, %c7_1, %c0_2], %0 {strides = array<i32>} : memref<18x25x4xbf16, #tpu.memory_space<vmem>>, vector<1x18x4xbf16>,
    %cst_3 = arith.constant 0.000000e+00 : bf16
    %3 = vector.broadcast %cst_3 : bf16 to vector<16x1x4xbf16>
    %c1 = arith.constant 1 : index
    %c7_4 = arith.constant 7 : index
    %c0_5 = arith.constant 0 : index
    %4 = vector.load %arg6[%c1, %c7_4, %c0_5] : memref<18x25x4xbf16, #tpu.memory_space<vmem>>, vector<16x1x4xbf16>
    tpu.vector_store %arg6[%c1, %c7_4, %c0_5], %3 {strides = array<i32>} : memref<18x25x4xbf16, #tpu.memory_space<vmem>>, vector<16x1x4xbf16>,
    %c1_6 = arith.constant 1 : index
    %c24 = arith.constant 24 : index
    %c0_7 = arith.constant 0 : index
    %5 = vector.load %arg6[%c1_6, %c24, %c0_7] : memref<18x25x4xbf16, #tpu.memory_space<vmem>>, vector<16x1x4xbf16>
    tpu.vector_store %arg6[%c1_6, %c24, %c0_7], %3 {strides = array<i32>} : memref<18x25x4xbf16, #tpu.memory_space<vmem>>, vector<16x1x4xbf16>,
    %c0_8 = arith.constant 0 : index
    %c0_9 = arith.constant 0 : index
    %c0_10 = arith.constant 0 : index
    %c0_11 = arith.constant 0 : index
    %6 = vector.load %arg1[%c0_8, %c0_9, %c0_10, %c0_11] : memref<1x16x16x4xbf16, #tpu.memory_space<vmem>>, vector<1x16x16x4xbf16>
    %7 = vector.shape_cast %6 : vector<1x16x16x4xbf16> to vector<16x16x4xbf16>
    %c1_12 = arith.constant 1 : index
    %c8 = arith.constant 8 : index
    %c0_13 = arith.constant 0 : index
    %8 = vector.load %arg6[%c1_12, %c8, %c0_13] : memref<18x25x4xbf16, #tpu.memory_space<vmem>>, vector<16x16x4xbf16>
    tpu.vector_store %arg6[%c1_12, %c8, %c0_13], %7 {strides = array<i32>} : memref<18x25x4xbf16, #tpu.memory_space<vmem>>, vector<16x16x4xbf16>,
    %c0_14 = arith.constant 0 : index
    %c7_15 = arith.constant 7 : index
    %c0_16 = arith.constant 0 : index
    %9 = vector.load %arg6[%c0_14, %c7_15, %c0_16] : memref<18x25x4xbf16, #tpu.memory_space<vmem>>, vector<16x16x4xbf16>
    %10 = vector.shape_cast %9 : vector<16x16x4xbf16> to vector<256x4xbf16>
    %c0_17 = arith.constant 0 : index
    %c8_18 = arith.constant 8 : index
    %c0_19 = arith.constant 0 : index
    %11 = vector.load %arg6[%c0_17, %c8_18, %c0_19] : memref<18x25x4xbf16, #tpu.memory_space<vmem>>, vector<16x16x4xbf16>
    %12 = vector.shape_cast %11 : vector<16x16x4xbf16> to vector<256x4xbf16>
    %c0_20 = arith.constant 0 : index
    %c9 = arith.constant 9 : index
    %c0_21 = arith.constant 0 : index
    %13 = vector.load %arg6[%c0_20, %c9, %c0_21] : memref<18x25x4xbf16, #tpu.memory_space<vmem>>, vector<16x16x4xbf16>
    %14 = vector.shape_cast %13 : vector<16x16x4xbf16> to vector<256x4xbf16>
    %c1_22 = arith.constant 1 : index
    %c7_23 = arith.constant 7 : index
    %c0_24 = arith.constant 0 : index
    %15 = vector.load %arg6[%c1_22, %c7_23, %c0_24] : memref<18x25x4xbf16, #tpu.memory_space<vmem>>, vector<16x16x4xbf16>
    %16 = vector.shape_cast %15 : vector<16x16x4xbf16> to vector<256x4xbf16>
    %c1_25 = arith.constant 1 : index
    %c8_26 = arith.constant 8 : index
    %c0_27 = arith.constant 0 : index
    %17 = vector.load %arg6[%c1_25, %c8_26, %c0_27] : memref<18x25x4xbf16, #tpu.memory_space<vmem>>, vector<16x16x4xbf16>
    %18 = vector.shape_cast %17 : vector<16x16x4xbf16> to vector<256x4xbf16>
    %c1_28 = arith.constant 1 : index
    %c9_29 = arith.constant 9 : index
    %c0_30 = arith.constant 0 : index
    %19 = vector.load %arg6[%c1_28, %c9_29, %c0_30] : memref<18x25x4xbf16, #tpu.memory_space<vmem>>, vector<16x16x4xbf16>
    %20 = vector.shape_cast %19 : vector<16x16x4xbf16> to vector<256x4xbf16>
    %c2 = arith.constant 2 : index
    %c7_31 = arith.constant 7 : index
    %c0_32 = arith.constant 0 : index
    %21 = vector.load %arg6[%c2, %c7_31, %c0_32] : memref<18x25x4xbf16, #tpu.memory_space<vmem>>, vector<16x16x4xbf16>
    %22 = vector.shape_cast %21 : vector<16x16x4xbf16> to vector<256x4xbf16>
    %c2_33 = arith.constant 2 : index
    %c8_34 = arith.constant 8 : index
    %c0_35 = arith.constant 0 : index
    %23 = vector.load %arg6[%c2_33, %c8_34, %c0_35] : memref<18x25x4xbf16, #tpu.memory_space<vmem>>, vector<16x16x4xbf16>
    %24 = vector.shape_cast %23 : vector<16x16x4xbf16> to vector<256x4xbf16>
    %c2_36 = arith.constant 2 : index
    %c9_37 = arith.constant 9 : index
    %c0_38 = arith.constant 0 : index
    %25 = vector.load %arg6[%c2_36, %c9_37, %c0_38] : memref<18x25x4xbf16, #tpu.memory_space<vmem>>, vector<16x16x4xbf16>
    %26 = vector.shape_cast %25 : vector<16x16x4xbf16> to vector<256x4xbf16>
    %cst_39 = arith.constant 0.000000e+00 : f32
    %27 = vector.broadcast %cst_39 : f32 to vector<256x8xf32>
    %c0_40 = arith.constant 0 : index
    %c0_41 = arith.constant 0 : index
    %28 = vector.load %arg2[%c0_40, %c0_41] : memref<36x8xbf16, #tpu.memory_space<vmem>>, vector<4x8xbf16>
    %cst_42 = arith.constant dense<0.000000e+00> : vector<256x8xf32>
    %29 = tpu.matmul %10, %28, %cst_42 {dimension_numbers = #tpu.dot_dimension_numbers<[1], [0], [0], [1], [0, 0, 1, 1], [], []>} : vector<256x4xbf16>, vector<4x8xbf16>, vector<256x8xf32> -> vector<256x8xf32>
    %30 = arith.addf %27, %29 : vector<256x8xf32>
    %c4 = arith.constant 4 : index
    %c0_43 = arith.constant 0 : index
    %31 = vector.load %arg2[%c4, %c0_43] : memref<36x8xbf16, #tpu.memory_space<vmem>>, vector<4x8xbf16>
    %cst_44 = arith.constant dense<0.000000e+00> : vector<256x8xf32>
    %32 = tpu.matmul %12, %31, %cst_44 {dimension_numbers = #tpu.dot_dimension_numbers<[1], [0], [0], [1], [0, 0, 1, 1], [], []>} : vector<256x4xbf16>, vector<4x8xbf16>, vector<256x8xf32> -> vector<256x8xf32>
    %33 = arith.addf %30, %32 : vector<256x8xf32>
    %c8_45 = arith.constant 8 : index
    %c0_46 = arith.constant 0 : index
    %34 = vector.load %arg2[%c8_45, %c0_46] : memref<36x8xbf16, #tpu.memory_space<vmem>>, vector<4x8xbf16>
    %cst_47 = arith.constant dense<0.000000e+00> : vector<256x8xf32>
    %35 = tpu.matmul %14, %34, %cst_47 {dimension_numbers = #tpu.dot_dimension_numbers<[1], [0], [0], [1], [0, 0, 1, 1], [], []>} : vector<256x4xbf16>, vector<4x8xbf16>, vector<256x8xf32> -> vector<256x8xf32>
    %36 = arith.addf %33, %35 : vector<256x8xf32>
    %c12 = arith.constant 12 : index
    %c0_48 = arith.constant 0 : index
    %37 = vector.load %arg2[%c12, %c0_48] : memref<36x8xbf16, #tpu.memory_space<vmem>>, vector<4x8xbf16>
    %cst_49 = arith.constant dense<0.000000e+00> : vector<256x8xf32>
    %38 = tpu.matmul %16, %37, %cst_49 {dimension_numbers = #tpu.dot_dimension_numbers<[1], [0], [0], [1], [0, 0, 1, 1], [], []>} : vector<256x4xbf16>, vector<4x8xbf16>, vector<256x8xf32> -> vector<256x8xf32>
    %39 = arith.addf %36, %38 : vector<256x8xf32>
    %c16 = arith.constant 16 : index
    %c0_50 = arith.constant 0 : index
    %40 = vector.load %arg2[%c16, %c0_50] : memref<36x8xbf16, #tpu.memory_space<vmem>>, vector<4x8xbf16>
    %cst_51 = arith.constant dense<0.000000e+00> : vector<256x8xf32>
    %41 = tpu.matmul %18, %40, %cst_51 {dimension_numbers = #tpu.dot_dimension_numbers<[1], [0], [0], [1], [0, 0, 1, 1], [], []>} : vector<256x4xbf16>, vector<4x8xbf16>, vector<256x8xf32> -> vector<256x8xf32>
    %42 = arith.addf %39, %41 : vector<256x8xf32>
    %c20 = arith.constant 20 : index
    %c0_52 = arith.constant 0 : index
    %43 = vector.load %arg2[%c20, %c0_52] : memref<36x8xbf16, #tpu.memory_space<vmem>>, vector<4x8xbf16>
    %cst_53 = arith.constant dense<0.000000e+00> : vector<256x8xf32>
    %44 = tpu.matmul %20, %43, %cst_53 {dimension_numbers = #tpu.dot_dimension_numbers<[1], [0], [0], [1], [0, 0, 1, 1], [], []>} : vector<256x4xbf16>, vector<4x8xbf16>, vector<256x8xf32> -> vector<256x8xf32>
    %45 = arith.addf %42, %44 : vector<256x8xf32>
    %c24_54 = arith.constant 24 : index
    %c0_55 = arith.constant 0 : index
    %46 = vector.load %arg2[%c24_54, %c0_55] : memref<36x8xbf16, #tpu.memory_space<vmem>>, vector<4x8xbf16>
    %cst_56 = arith.constant dense<0.000000e+00> : vector<256x8xf32>
    %47 = tpu.matmul %22, %46, %cst_56 {dimension_numbers = #tpu.dot_dimension_numbers<[1], [0], [0], [1], [0, 0, 1, 1], [], []>} : vector<256x4xbf16>, vector<4x8xbf16>, vector<256x8xf32> -> vector<256x8xf32>
    %48 = arith.addf %45, %47 : vector<256x8xf32>
    %c28 = arith.constant 28 : index
    %c0_57 = arith.constant 0 : index
    %49 = vector.load %arg2[%c28, %c0_57] : memref<36x8xbf16, #tpu.memory_space<vmem>>, vector<4x8xbf16>
    %cst_58 = arith.constant dense<0.000000e+00> : vector<256x8xf32>
    %50 = tpu.matmul %24, %49, %cst_58 {dimension_numbers = #tpu.dot_dimension_numbers<[1], [0], [0], [1], [0, 0, 1, 1], [], []>} : vector<256x4xbf16>, vector<4x8xbf16>, vector<256x8xf32> -> vector<256x8xf32>
    %51 = arith.addf %48, %50 : vector<256x8xf32>
    %c32 = arith.constant 32 : index
    %c0_59 = arith.constant 0 : index
    %52 = vector.load %arg2[%c32, %c0_59] : memref<36x8xbf16, #tpu.memory_space<vmem>>, vector<4x8xbf16>
    %cst_60 = arith.constant dense<0.000000e+00> : vector<256x8xf32>
    %53 = tpu.matmul %26, %52, %cst_60 {dimension_numbers = #tpu.dot_dimension_numbers<[1], [0], [0], [1], [0, 0, 1, 1], [], []>} : vector<256x4xbf16>, vector<4x8xbf16>, vector<256x8xf32> -> vector<256x8xf32>
    %54 = arith.addf %51, %53 : vector<256x8xf32>
    %c0_61 = arith.constant 0 : index
    %c0_62 = arith.constant 0 : index
    %55 = vector.load %arg3[%c0_61, %c0_62] : memref<1x8xf32, #tpu.memory_space<vmem>>, vector<1x8xf32>
    %56 = vector.broadcast %55 : vector<1x8xf32> to vector<256x8xf32>
    %57 = arith.addf %54, %56 : vector<256x8xf32>
    %c2_i32 = arith.constant 2 : i32
    %c0_i32 = arith.constant 0 : i32
    %58 = arith.cmpi eq, %c2_i32, %c0_i32 : i32
    %c1_i32 = arith.constant 1 : i32
    %59 = arith.select %58, %c1_i32, %c2_i32 : i32
    %60 = arith.remsi %arg0, %59 : i32
    %c0_i32_63 = arith.constant 0 : i32
    %61 = arith.cmpi ne, %60, %c0_i32_63 : i32
    %c0_i32_64 = arith.constant 0 : i32
    %62 = arith.cmpi slt, %60, %c0_i32_64 : i32
    %c0_i32_65 = arith.constant 0 : i32
    %63 = arith.cmpi slt, %59, %c0_i32_65 : i32
    %64 = arith.xori %62, %63 : i1
    %65 = arith.andi %64, %61 : i1
    %66 = arith.addi %60, %59 : i32
    %67 = arith.select %65, %66, %60 : i32
    %68 = arith.index_cast %67 : i32 to index
    %c0_66 = arith.constant 0 : index
    %69 = vector.load %arg4[%68, %c0_66] : memref<2x8xf32, #tpu.memory_space<vmem>>, vector<1x8xf32>
    %cst_67 = arith.constant 8.000000e-01 : f32
    %70 = vector.broadcast %cst_67 : f32 to vector<1x8xf32>
    %71 = arith.mulf %70, %69 : vector<1x8xf32>
    %72 = vector.broadcast %71 : vector<1x8xf32> to vector<256x8xf32>
    %73 = arith.addf %57, %72 : vector<256x8xf32>
    %74 = vector.shape_cast %73 : vector<256x8xf32> to vector<16x16x8xf32>
    %75 = arith.truncf %74 : vector<16x16x8xf32> to vector<16x16x8xbf16>
    %c0_68 = arith.constant 0 : index
    %c0_69 = arith.constant 0 : index
    %c0_70 = arith.constant 0 : index
    %c0_71 = arith.constant 0 : index
    %76 = vector.load %arg5[%c0_68, %c0_69, %c0_70, %c0_71] : memref<1x16x16x8xbf16, #tpu.memory_space<vmem>>, vector<1x16x16x8xbf16>
    %77 = vector.shape_cast %76 : vector<1x16x16x8xbf16> to vector<16x16x8xbf16>
    %78 = vector.shape_cast %75 : vector<16x16x8xbf16> to vector<1x16x16x8xbf16>
    tpu.vector_store %arg5[%c0_68, %c0_69, %c0_70, %c0_71], %78 {strides = array<i32>} : memref<1x16x16x8xbf16, #tpu.memory_space<vmem>>, vector<1x16x16x8xbf16>,
    return
  }
  func.func @transform_0(%arg0: i32) -> (i32, i32, i32, i32) {
    %c0_i32 = arith.constant 0 : i32
    %c0_i32_0 = arith.constant 0 : i32
    %c0_i32_1 = arith.constant 0 : i32
    %c0_i32_2 = arith.constant 0 : i32
    return %arg0, %c0_i32, %c0_i32_0, %c0_i32_1 : i32, i32, i32, i32
  }
  func.func @transform_1(%arg0: i32) -> (i32, i32) {
    %c0_i32 = arith.constant 0 : i32
    %c0_i32_0 = arith.constant 0 : i32
    %c0_i32_1 = arith.constant 0 : i32
    return %c0_i32, %c0_i32_0 : i32, i32
  }
  func.func @transform_2(%arg0: i32) -> (i32, i32) {
    %c0_i32 = arith.constant 0 : i32
    %c0_i32_0 = arith.constant 0 : i32
    %c0_i32_1 = arith.constant 0 : i32
    return %c0_i32, %c0_i32_0 : i32, i32
  }
  func.func @transform_3(%arg0: i32) -> (i32, i32) {
    %c0_i32 = arith.constant 0 : i32
    %c0_i32_0 = arith.constant 0 : i32
    %c0_i32_1 = arith.constant 0 : i32
    return %c0_i32, %c0_i32_0 : i32, i32
  }
  func.func @transform_4(%arg0: i32) -> (i32, i32, i32, i32) {
    %c0_i32 = arith.constant 0 : i32
    %c0_i32_0 = arith.constant 0 : i32
    %c0_i32_1 = arith.constant 0 : i32
    %c0_i32_2 = arith.constant 0 : i32
    return %arg0, %c0_i32, %c0_i32_0, %c0_i32_1 : i32, i32, i32, i32
  }
}

</mosaic_0001>

<llo_original>
// kernel: tpu_custom_call.1
$region0: #{tpu_custom_call.1}
  #allocation0 [shape = 'u32[]', space=smem, size = 0x4, offset = 0x4, fixed_abs, tag = 'smem constant byte address 0x4 - core index']
  #allocation1 [shape = 'u32[144,128]{1,0:T(1,128)}', space=vmem, size = 0x12000, scoped, tag = 'internal scratch']
  %s0 = inlined_call_operand.vmem [shape: bf16[16,8], index: 0, kind: input, shape index: {}]
  %s1 = inlined_call_operand.vmem [shape: bf16[72,8], index: 1, kind: input, shape index: {}]
  %s2 = inlined_call_operand.vmem [shape: f32[16,8], index: 2, kind: output, shape index: {}]
  %s3 = sld [smem:[#allocation0]]
  $region18: #{tpu_custom_call.1} parent=0
    _
  %s5 = ssub.s32 1, %s3
  %s6 = scalar_select 0, %s5, %s3
  // Predicated region
  $region2: #{tpu_custom_call.1} parent=0 // pred_check
    _
  $region3: #{tpu_custom_call.1} parent=0 // pred_check_branch
    %8 = sbr.rel (0) target = $region5
  $region4: #{tpu_custom_call.1} parent=0 // pred_region
    _
  $region5: #{tpu_custom_call.1} parent=0 // pred_fallthru
    _
  // Predicated region
  $region6: #{tpu_custom_call.1} parent=0 // pred_check
    _
  $region7: #{tpu_custom_call.1} parent=0 // pred_check_branch
    %10 = sbr.rel (0) target = $region9
  $region8: #{tpu_custom_call.1} parent=0 // pred_region
    _
  $region9: #{tpu_custom_call.1} parent=0 // pred_fallthru
    _
  %v12 = vld [vmem:[%s0] sm:$0xf]
  %v13 = vld [vmem:[%s0 + $0x4] sm:$0xf]
  %v16 = vunpack.c.l.b16 %v12
  %v17 = vunpack.c.l.b16 %v13
  %v18 = vpack.c.b16 %v17, %v16
  %19 = vrot.lane.b32.xlu0 %v18, 8
  %v20 = vpop.permute.xlu0 %19
  %21 = vrot.lane.b32.xlu0 %v18, 16
  %v22 = vpop.permute.xlu0 %21
  %23 = vrot.lane.b32.xlu0 %v18, 24
  %v24 = vpop.permute.xlu0 %23
  %25 = vrot.lane.b32.xlu0 %v18, 32
  %v26 = vpop.permute.xlu0 %25
  %27 = vrot.lane.b32.xlu0 %v18, 40
  %v28 = vpop.permute.xlu0 %27
  %29 = vrot.lane.b32.xlu0 %v18, 48
  %v30 = vpop.permute.xlu0 %29
  %31 = vrot.lane.b32.xlu0 %v18, 56
  %v32 = vpop.permute.xlu0 %31
  %33 = vrot.lane.b32.xlu0 %v18, 64
  %v34 = vpop.permute.xlu0 %33
  %vm35 = vcmask 64512
  %v38 = vsel %vm35, %v18, %v20
  %vm39 = vcmask 130048
  %v41 = vsel %vm39, %v38, %v22
  %vm42 = vcmask 195584
  %v44 = vsel %vm42, %v41, %v24
  %vm45 = vcmask 261120
  %v47 = vsel %vm45, %v44, %v26
  %vm48 = vcmask 326656
  %v50 = vsel %vm48, %v47, %v28
  %vm51 = vcmask 392192
  %v53 = vsel %vm51, %v50, %v30
  %vm54 = vcmask 457728
  %v56 = vsel %vm54, %v53, %v32
  %vm57 = vcmask 523264
  %v59 = vsel %vm57, %v56, %v34
  %v60 = vld [vmem:[%s1] sm:$0xf]
  %v61 = vld [vmem:[%s1 + $0x4] sm:$0xf]
  %v62 = vld [vmem:[%s1 + $0x8] sm:$0xf]
  %v63 = vld [vmem:[%s1 + $0xc] sm:$0xf]
  %v64 = vld [vmem:[%s1 + $0x10] sm:$0xf]
  %v65 = vld [vmem:[%s1 + $0x14] sm:$0xf]
  %v66 = vld [vmem:[%s1 + $0x18] sm:$0xf]
  %v67 = vld [vmem:[%s1 + $0x1c] sm:$0xf]
  %v68 = vld [vmem:[%s1 + $0x20] sm:$0xf]
  %v78 = vunpack.c.l.b16 %v60
  %v79 = vunpack.c.l.b16 %v61
  %v80 = vunpack.c.l.b16 %v62
  %v81 = vunpack.c.l.b16 %v63
  %v82 = vunpack.c.l.b16 %v64
  %v83 = vunpack.c.l.b16 %v65
  %v84 = vunpack.c.l.b16 %v66
  %v85 = vunpack.c.l.b16 %v67
  %v86 = vunpack.c.l.b16 %v68
  %v87 = vpack.c.b16 %v79, %v78
  %v88 = vpack.c.b16 %v81, %v80
  %v89 = vpack.c.b16 %v83, %v82
  %v90 = vpack.c.b16 %v85, %v84
  %v91 = vpack.c.b16 %v86, %v86
  %vm96 = vcmask 588800
  %v97 = vsel %vm96, %v59, 0
  %vm99 = vcmask 1043456
  %v101 = vsel %vm99, %v91, 0
  %103 = vmatprep.subr.bf16.mxu0 0
  %104 = vmatpush1.bf16.msra.mxu0 0
  %105 = vmatprep.subr.bf16.mxu0 0
  %106 = vmatpush1.bf16.msra.mxu0 0
  %107 = vmatprep.subr.bf16.mxu0 0
  %108 = vmatpush1.bf16.msra.mxu0 0
  %109 = vmatprep.subr.bf16.mxu0 0
  %110 = vmatpush1.bf16.msra.mxu0 %v101
  %111 = vmatprep.subr.bf16.mxu0 0
  %112 = vmatpush1.bf16.msra.mxu0 %v90
  %113 = vmatprep.subr.bf16.mxu0 0
  %114 = vmatpush1.bf16.msra.mxu0 %v89
  %115 = vmatprep.subr.bf16.mxu0 0
  %116 = vmatpush1.bf16.msra.mxu0 %v88
  %117 = vmatprep.subr.bf16.mxu0 0
  %118 = vmatpush1.bf16.msra.mxu0 %v87
  %119 = vmatprep.subr.bf16.mxu0 0
  %120 = vmatpush2.bf16.msra.mxu0 0
  %121 = vmatprep.subr.bf16.mxu0 0
  %122 = vmatpush2.bf16.msra.mxu0 0
  %123 = vmatprep.subr.bf16.mxu0 0
  %124 = vmatpush2.bf16.msra.mxu0 0
  %125 = vmatprep.subr.bf16.mxu0 0
  %126 = vmatpush2.bf16.msra.mxu0 0
  %127 = vmatprep.subr.bf16.mxu0 0
  %128 = vmatpush2.bf16.msra.mxu0 0
  %129 = vmatprep.subr.bf16.mxu0 0
  %130 = vmatpush2.bf16.msra.mxu0 0
  %131 = vmatprep.subr.bf16.mxu0 0
  %132 = vmatpush2.bf16.msra.mxu0 0
  %133 = vmatprep.subr.bf16.mxu0 0
  %134 = vmatpush2.bf16.msra.mxu0 0
  %135 = vmatprep.mubr.bf16.mxu0 0
  %136 = vmatmul.mubr.bf16.gmra.mxu0 %v97
  %v137 = vpop.f32.mrf.mxu0
  %v138 = vadd.f32 0.0, %v137
  %v139 = vpop.f32.mrf.mxu0
  %v140 = vpop.f32.mrf.mxu0
  %v141 = vadd.f32 0.0, %v140
  %v142 = vpop.f32.mrf.mxu0
  %143 = vdwg.mxu0
  %144 = vst.msk [vmem:[%s2] sm:$0xff] %vm35, %v138
  %145 = vst.msk [vmem:[%s2 + $0x8] sm:$0xff] %vm35, %v141
  // Predicated region
  $region10: #{tpu_custom_call.1} parent=0 // pred_check
    _
  $region11: #{tpu_custom_call.1} parent=0 // pred_check_branch
    %147 = sbr.rel (0) target = $region13
  $region12: #{tpu_custom_call.1} parent=0 // pred_region
    _
  $region13: #{tpu_custom_call.1} parent=0 // pred_fallthru
    _
  // Predicated region
  $region14: #{tpu_custom_call.1} parent=0 // pred_check
    _
  $region15: #{tpu_custom_call.1} parent=0 // pred_check_branch
    %149 = sbr.rel (0) target = $region17
  $region16: #{tpu_custom_call.1} parent=0 // pred_region
    _
  $region17: #{tpu_custom_call.1} parent=0 // pred_fallthru
    _

// kernel: tpu_custom_call.1
$region0: #{tpu_custom_call.1}
  #allocation0 [shape = 'u32[]', space=smem, size = 0x4, offset = 0x4, fixed_abs, tag = 'smem constant byte address 0x4 - core index']
  #allocation1 [shape = 'u32[144,128]{1,0:T(1,128)}', space=vmem, size = 0x12000, scoped, tag = 'internal scratch']
  #allocation2 [shape = 'bf16[18,25,4]{2,1,0:T(8,128)(2,1)}', space=vmem, size = 0x24000, scoped, tag = 'scratch operand']
  %s0 = inlined_call_operand.vmem [shape: bf16[4,16,16,4], index: 0, kind: input, shape index: {}]
  %s1 = inlined_call_operand.vmem [shape: bf16[36,8], index: 1, kind: input, shape index: {}]
  %s2 = inlined_call_operand.vmem [shape: f32[1,8], index: 2, kind: input, shape index: {}]
  %s3 = inlined_call_operand.vmem [shape: f32[2,8], index: 3, kind: input, shape index: {}]
  %s4 = inlined_call_operand.vmem [shape: bf16[4,16,16,8], index: 4, kind: output, shape index: {}]
  %s5 = sld [smem:[#allocation0]]
  $region49: #{tpu_custom_call.1} parent=0
    _
  %s7 = ssub.s32 1, %s5
  %s8 = scalar_select 0, %s7, %s5
  loop: start=0, step=1, limit=6
  $region2: #{tpu_custom_call.1} parent=0 // loop_pre_header
    _
  $region3: #{tpu_custom_call.1} parent=0 // loop_header
    %s10 = sphi 0, %s14
    %p11 = scmp.ge.s32.totalorder %s10, 6
    %s20 = sphi 0, %s22
    %s23 = sphi 0, %s20
    %s24 = sphi 0, %s23
    %s40 = sphi 0, %s24
    %s44 = sphi 0, %s44
    %s46 = sphi 0, %s44
    %s47 = sphi 0, %s46
    %s61 = sphi 0, %s47
    %s65 = sphi 0, %s65
    %s67 = sphi 0, %s65
    %s68 = sphi 0, %s67
    %s82 = sphi 0, %s68
    %s86 = sphi 0, %s86
    %s88 = sphi 0, %s86
    %s89 = sphi 0, %s88
    %s103 = sphi 0, %s89
    %s109 = sphi 0, %s111
    %s112 = sphi 0, %s109
    %s113 = sphi 0, %s112
    %s129 = sphi 0, %s113
  $region4: #{tpu_custom_call.1} parent=0 // loop_header_branch
    %13 = sbr.rel (%p11) target = $region8
  $region5: #{tpu_custom_call.1} parent=0 // loop_body
    %s15 = ssub.s32 %s10, 1
    %s16 = ssub.s32 %s10, 2
    %s17 = sadd.s32 %s10, 1
    %s18 = ssub.s32 %s10, %s17
    %p19 = scmp.eq.s32.totalorder %s18, 0
    %s21 = sadd.s32 %s20, 1
    %s22 = scalar_select %p19, %s20, %s21
    %p25 = pneg %p19
    %p26 = scmp.eq.s32.totalorder %s10, 3
    %p27 = por %p25, %p26
    %p28 = scmp.ne.s32.totalorder %s20, %s23
    %p29 = scmp.eq.s32.totalorder %s10, 0
    %p30 = por %p28, %p29
    %p31 = scmp.ne.s32.totalorder %s20, %s23
    %p32 = scmp.eq.s32.totalorder %s15, 3
    %p33 = por %p31, %p32
    %p34 = scmp.ne.s32.totalorder %s23, %s24
    %p35 = scmp.eq.s32.totalorder %s15, 0
    %p36 = por %p34, %p35
    %p37 = scmp.ne.s32.totalorder %s23, %s24
    %p38 = scmp.eq.s32.totalorder %s16, 3
    %p39 = por %p37, %p38
    %p41 = scmp.ne.s32.totalorder %s24, %s40
    %p42 = scmp.eq.s32.totalorder %s16, 0
    %p43 = por %p41, %p42
    %s45 = sadd.s32 %s44, 1
    %p48 = scmp.eq.s32.totalorder %s10, 3
    %p49 = scmp.ne.s32.totalorder %s44, %s46
    %p50 = scmp.eq.s32.totalorder %s10, 0
    %p51 = por %p49, %p50
    %p52 = scmp.ne.s32.totalorder %s44, %s46
    %p53 = scmp.eq.s32.totalorder %s15, 3
    %p54 = por %p52, %p53
    %p55 = scmp.ne.s32.totalorder %s46, %s47
    %p56 = scmp.eq.s32.totalorder %s15, 0
    %p57 = por %p55, %p56
    %p58 = scmp.ne.s32.totalorder %s46, %s47
    %p59 = scmp.eq.s32.totalorder %s16, 3
    %p60 = por %p58, %p59
    %p62 = scmp.ne.s32.totalorder %s47, %s61
    %p63 = scmp.eq.s32.totalorder %s16, 0
    %p64 = por %p62, %p63
    %s66 = sadd.s32 %s65, 1
    %p69 = scmp.eq.s32.totalorder %s10, 3
    %p70 = scmp.ne.s32.totalorder %s65, %s67
    %p71 = scmp.eq.s32.totalorder %s10, 0
    %p72 = por %p70, %p71
    %p73 = scmp.ne.s32.totalorder %s65, %s67
    %p74 = scmp.eq.s32.totalorder %s15, 3
    %p75 = por %p73, %p74
    %p76 = scmp.ne.s32.totalorder %s67, %s68
    %p77 = scmp.eq.s32.totalorder %s15, 0
    %p78 = por %p76, %p77
    %p79 = scmp.ne.s32.totalorder %s67, %s68
    %p80 = scmp.eq.s32.totalorder %s16, 3
    %p81 = por %p79, %p80
    %p83 = scmp.ne.s32.totalorder %s68, %s82
    %p84 = scmp.eq.s32.totalorder %s16, 0
    %p85 = por %p83, %p84
    %s87 = sadd.s32 %s86, 1
    %p90 = scmp.eq.s32.totalorder %s10, 3
    %p91 = scmp.ne.s32.totalorder %s86, %s88
    %p92 = scmp.eq.s32.totalorder %s10, 0
    %p93 = por %p91, %p92
    %p94 = scmp.ne.s32.totalorder %s86, %s88
    %p95 = scmp.eq.s32.totalorder %s15, 3
    %p96 = por %p94, %p95
    %p97 = scmp.ne.s32.totalorder %s88, %s89
    %p98 = scmp.eq.s32.totalorder %s15, 0
    %p99 = por %p97, %p98
    %p100 = scmp.ne.s32.totalorder %s88, %s89
    %p101 = scmp.eq.s32.totalorder %s16, 3
    %p102 = por %p100, %p101
    %p104 = scmp.ne.s32.totalorder %s89, %s103
    %p105 = scmp.eq.s32.totalorder %s16, 0
    %p106 = por %p104, %p105
    %s107 = ssub.s32 %s10, %s17
    %p108 = scmp.eq.s32.totalorder %s107, 0
    %s110 = sadd.s32 %s109, 1
    %s111 = scalar_select %p108, %s109, %s110
    %p114 = pneg %p108
    %p115 = scmp.eq.s32.totalorder %s10, 3
    %p116 = por %p114, %p115
    %p117 = scmp.ne.s32.totalorder %s109, %s112
    %p118 = scmp.eq.s32.totalorder %s10, 0
    %p119 = por %p117, %p118
    %p120 = scmp.ne.s32.totalorder %s109, %s112
    %p121 = scmp.eq.s32.totalorder %s15, 3
    %p122 = por %p120, %p121
    %p123 = scmp.ne.s32.totalorder %s112, %s113
    %p124 = scmp.eq.s32.totalorder %s15, 0
    %p125 = por %p123, %p124
    %p126 = scmp.ne.s32.totalorder %s112, %s113
    %p127 = scmp.eq.s32.totalorder %s16, 3
    %p128 = por %p126, %p127
    %p130 = scmp.ne.s32.totalorder %s113, %s129
    %p131 = scmp.eq.s32.totalorder %s16, 0
    %p132 = por %p130, %p131
    %p133 = scmp.le.s32.totalorder 1, %s10
    %p134 = scmp.lt.s32.totalorder %s10, 5
    %p135 = pnand %p133, %p134
    %p136 = pneg %p135
    // Predicated region
    $region9: #{tpu_custom_call.1} parent=5 // pred_check
      _
    $region10: #{tpu_custom_call.1} parent=5 // pred_check_branch
      %138 = sbr.rel (%p135) target = $region12
    $region11: #{tpu_custom_call.1} parent=5 // pred_region
      %s139 = ssub.s32 %s10, 1
      // Predicated region
      $region13: #{tpu_custom_call.1} parent=11 // pred_check
        %p140 = pneg %p57
      $region14: #{tpu_custom_call.1} parent=11 // pred_check_branch
        %142 = sbr.rel (%p140) target = $region16
      $region15: #{tpu_custom_call.1} parent=11 // pred_region
        _
      $region16: #{tpu_custom_call.1} parent=11 // pred_fallthru
        _
      // Predicated region
      $region17: #{tpu_custom_call.1} parent=11 // pred_check
        %p143 = pneg %p78
      $region18: #{tpu_custom_call.1} parent=11 // pred_check_branch
        %145 = sbr.rel (%p143) target = $region20
      $region19: #{tpu_custom_call.1} parent=11 // pred_region
        _
      $region20: #{tpu_custom_call.1} parent=11 // pred_fallthru
        _
      // Predicated region
      $region21: #{tpu_custom_call.1} parent=11 // pred_check
        %p146 = pneg %p99
      $region22: #{tpu_custom_call.1} parent=11 // pred_check_branch
        %148 = sbr.rel (%p146) target = $region24
      $region23: #{tpu_custom_call.1} parent=11 // pred_region
        _
      $region24: #{tpu_custom_call.1} parent=11 // pred_fallthru
        _
    $region12: #{tpu_custom_call.1} parent=5 // pred_fallthru
      _
    %p149 = scmp.lt.s32.totalorder %s10, 4
    // Predicated region
    $region25: #{tpu_custom_call.1} parent=5 // pred_check
      %p150 = pneg %p149
    $region26: #{tpu_custom_call.1} parent=5 // pred_check_branch
      %152 = sbr.rel (%p150) target = $region28
    $region27: #{tpu_custom_call.1} parent=5 // pred_region
      // Predicated region
      $region29: #{tpu_custom_call.1} parent=27 // pred_check
        %p153 = pneg %p30
      $region30: #{tpu_custom_call.1} parent=27 // pred_check_branch
        %155 = sbr.rel (%p153) target = $region32
      $region31: #{tpu_custom_call.1} parent=27 // pred_region
        %p156 = scmp.lt.s32.totalorder %s10, 3
        %s157 = scalar_select %p156, %s10, 3
        %s158 = smul.addr %s157, 32
        %s159 = smul.addr %s158, 4
        %s160 = scalar_lea.vmem %s0, %s159
      $region32: #{tpu_custom_call.1} parent=27 // pred_fallthru
        _
    $region28: #{tpu_custom_call.1} parent=5 // pred_fallthru
      _
    %p161 = scmp.le.s32.totalorder 1, %s10
    %p162 = scmp.lt.s32.totalorder %s10, 5
    %p163 = pnand %p161, %p162
    %p164 = pneg %p163
    // Predicated region
    $region33: #{tpu_custom_call.1} parent=5 // pred_check
      _
    $region34: #{tpu_custom_call.1} parent=5 // pred_check_branch
      %166 = sbr.rel (%p163) target = $region36
    $region35: #{tpu_custom_call.1} parent=5 // pred_region
      %s167 = ssub.s32 %s10, 1
      %p168 = scmp.lt.s32.totalorder %s15, 3
      %s169 = scalar_select %p168, %s15, 3
      %s170 = smul.addr %s169, 32
      %s171 = smul.addr %s170, 4
      %s172 = scalar_lea.vmem %s0, %s171
      %p173 = pneg %p36
      %p174 = pneg %p33
      %p175 = pneg %p57
      %p176 = pneg %p54
      %p177 = pneg %p78
      %p178 = pneg %p75
      %p179 = pneg %p99
      %p180 = pneg %p96
      %p181 = pneg %p125
      %p182 = pneg %p122
      %p183 = scmp.lt.s32.totalorder %s15, 3
      %s184 = scalar_select %p183, %s15, 3
      %s185 = smul.addr %s184, 32
      %s186 = smul.addr %s185, 4
      %s187 = scalar_lea.vmem %s4, %s186
      %p188 = scmp.lt.s32.totalorder %s15, 3
      %s189 = scalar_select %p188, %s15, 3
      %s190 = smul.addr %s189, 32
      %s191 = smul.addr %s190, 4
      %s192 = scalar_lea.vmem %s0, %s191
      %p193 = scmp.lt.s32.totalorder %s15, 3
      %s194 = scalar_select %p193, %s15, 3
      %s195 = smul.addr %s194, 32
      %s196 = smul.addr %s195, 4
      %s197 = scalar_lea.vmem %s4, %s196
      %vm199 = vcmask 27651
      %vm200 = vsmask.f32 7950
      %vm201 = vmand %vm199, %vm200
      %v202 = vld [vmem:[#allocation2] sm:$0x8]
      %v203 = vsel %vm201, 0, %v202
      %204 = vst [vmem:[#allocation2] sm:$0x8] %v203
      %vm205 = vcmask 27648
      %206 = vst.msk [vmem:[#allocation2 + $0x4] sm:$0xf] %vm205, 0
      %207 = vst.msk [vmem:[#allocation2 + $0x8] sm:$0xf] %vm205, 0
      %vm208 = vcmask 24576
      %vm209 = vsmask.f32 256
      %vm210 = vmand %vm208, %vm209
      %v211 = vld [vmem:[#allocation2 + $0xc] sm:$0x1]
      %v212 = vsel %vm210, 0, %v211
      %213 = vst [vmem:[#allocation2 + $0xc] sm:$0x1] %v212
      %s214 = scalar_lea.vmem [#allocation2], 272
      %v215 = vld [vmem:[%s214] sm:$0x8]
      %v216 = vsel %vm201, 0, %v215
      %217 = vst [vmem:[%s214] sm:$0x8] %v216
      %218 = vst.msk [vmem:[%s214 + $0x4] sm:$0xf] %vm205, 0
      %219 = vst.msk [vmem:[%s214 + $0x8] sm:$0xf] %vm205, 0
      %v220 = vld [vmem:[%s214 + $0xc] sm:$0x1]
      %v221 = vsel %vm210, 0, %v220
      %222 = vst [vmem:[%s214 + $0xc] sm:$0x1] %v221
      %s223 = scalar_lea.vmem [#allocation2], 16
      %v224 = vld [vmem:[%s223] sm:$0x8]
      %v225 = vsel %vm201, 0, %v224
      %226 = vst [vmem:[%s223] sm:$0x8] %v225
      %v227 = vld [vmem:[%s223 + $0x10] sm:$0x8]
      %v228 = vsel %vm201, 0, %v227
      %229 = vst [vmem:[%s223 + $0x10] sm:$0x8] %v228
      %v230 = vld [vmem:[%s223 + $0x20] sm:$0x8]
      %v231 = vsel %vm201, 0, %v230
      %232 = vst [vmem:[%s223 + $0x20] sm:$0x8] %v231
      %v233 = vld [vmem:[%s223 + $0x30] sm:$0x8]
      %v234 = vsel %vm201, 0, %v233
      %235 = vst [vmem:[%s223 + $0x30] sm:$0x8] %v234
      %v236 = vld [vmem:[%s223 + $0x40] sm:$0x8]
      %v237 = vsel %vm201, 0, %v236
      %238 = vst [vmem:[%s223 + $0x40] sm:$0x8] %v237
      %v239 = vld [vmem:[%s223 + $0x50] sm:$0x8]
      %v240 = vsel %vm201, 0, %v239
      %241 = vst [vmem:[%s223 + $0x50] sm:$0x8] %v240
      %v242 = vld [vmem:[%s223 + $0x60] sm:$0x8]
      %v243 = vsel %vm201, 0, %v242
      %244 = vst [vmem:[%s223 + $0x60] sm:$0x8] %v243
      %v245 = vld [vmem:[%s223 + $0x70] sm:$0x8]
      %v246 = vsel %vm201, 0, %v245
      %247 = vst [vmem:[%s223 + $0x70] sm:$0x8] %v246
      %v248 = vld [vmem:[%s223 + $0x80] sm:$0x8]
      %v249 = vsel %vm201, 0, %v248
      %250 = vst [vmem:[%s223 + $0x80] sm:$0x8] %v249
      %v251 = vld [vmem:[%s223 + $0x90] sm:$0x8]
      %v252 = vsel %vm201, 0, %v251
      %253 = vst [vmem:[%s223 + $0x90] sm:$0x8] %v252
      %v254 = vld [vmem:[%s223 + $0xa0] sm:$0x8]
      %v255 = vsel %vm201, 0, %v254
      %256 = vst [vmem:[%s223 + $0xa0] sm:$0x8] %v255
      %v257 = vld [vmem:[%s223 + $0xb0] sm:$0x8]
      %v258 = vsel %vm201, 0, %v257
      %259 = vst [vmem:[%s223 + $0xb0] sm:$0x8] %v258
      %v260 = vld [vmem:[%s223 + $0xc0] sm:$0x8]
      %v261 = vsel %vm201, 0, %v260
      %262 = vst [vmem:[%s223 + $0xc0] sm:$0x8] %v261
      %v263 = vld [vmem:[%s223 + $0xd0] sm:$0x8]
      %v264 = vsel %vm201, 0, %v263
      %265 = vst [vmem:[%s223 + $0xd0] sm:$0x8] %v264
      %v266 = vld [vmem:[%s223 + $0xe0] sm:$0x8]
      %v267 = vsel %vm201, 0, %v266
      %268 = vst [vmem:[%s223 + $0xe0] sm:$0x8] %v267
      %v269 = vld [vmem:[%s223 + $0xf0] sm:$0x8]
      %v270 = vsel %vm201, 0, %v269
      %271 = vst [vmem:[%s223 + $0xf0] sm:$0x8] %v270
      %v272 = vld [vmem:[%s223 + $0xc] sm:$0x1]
      %v273 = vsel %vm210, 0, %v272
      %274 = vst [vmem:[%s223 + $0xc] sm:$0x1] %v273
      %v275 = vld [vmem:[%s223 + $0x1c] sm:$0x1]
      %v276 = vsel %vm210, 0, %v275
      %277 = vst [vmem:[%s223 + $0x1c] sm:$0x1] %v276
      %v278 = vld [vmem:[%s223 + $0x2c] sm:$0x1]
      %v279 = vsel %vm210, 0, %v278
      %280 = vst [vmem:[%s223 + $0x2c] sm:$0x1] %v279
      %v281 = vld [vmem:[%s223 + $0x3c] sm:$0x1]
      %v282 = vsel %vm210, 0, %v281
      %283 = vst [vmem:[%s223 + $0x3c] sm:$0x1] %v282
      %v284 = vld [vmem:[%s223 + $0x4c] sm:$0x1]
      %v285 = vsel %vm210, 0, %v284
      %286 = vst [vmem:[%s223 + $0x4c] sm:$0x1] %v285
      %v287 = vld [vmem:[%s223 + $0x5c] sm:$0x1]
      %v288 = vsel %vm210, 0, %v287
      %289 = vst [vmem:[%s223 + $0x5c] sm:$0x1] %v288
      %v290 = vld [vmem:[%s223 + $0x6c] sm:$0x1]
      %v291 = vsel %vm210, 0, %v290
      %292 = vst [vmem:[%s223 + $0x6c] sm:$0x1] %v291
      %v293 = vld [vmem:[%s223 + $0x7c] sm:$0x1]
      %v294 = vsel %vm210, 0, %v293
      %295 = vst [vmem:[%s223 + $0x7c] sm:$0x1] %v294
      %v296 = vld [vmem:[%s223 + $0x8c] sm:$0x1]
      %v297 = vsel %vm210, 0, %v296
      %298 = vst [vmem:[%s223 + $0x8c] sm:$0x1] %v297
      %v299 = vld [vmem:[%s223 + $0x9c] sm:$0x1]
      %v300 = vsel %vm210, 0, %v299
      %301 = vst [vmem:[%s223 + $0x9c] sm:$0x1] %v300
      %v302 = vld [vmem:[%s223 + $0xac] sm:$0x1]
      %v303 = vsel %vm210, 0, %v302
      %304 = vst [vmem:[%s223 + $0xac] sm:$0x1] %v303
      %v305 = vld [vmem:[%s223 + $0xbc] sm:$0x1]
      %v306 = vsel %vm210, 0, %v305
      %307 = vst [vmem:[%s223 + $0xbc] sm:$0x1] %v306
      %v308 = vld [vmem:[%s223 + $0xcc] sm:$0x1]
      %v309 = vsel %vm210, 0, %v308
      %310 = vst [vmem:[%s223 + $0xcc] sm:$0x1] %v309
      %v311 = vld [vmem:[%s223 + $0xdc] sm:$0x1]
      %v312 = vsel %vm210, 0, %v311
      %313 = vst [vmem:[%s223 + $0xdc] sm:$0x1] %v312
      %v314 = vld [vmem:[%s223 + $0xec] sm:$0x1]
      %v315 = vsel %vm210, 0, %v314
      %316 = vst [vmem:[%s223 + $0xec] sm:$0x1] %v315
      %v317 = vld [vmem:[%s223 + $0xfc] sm:$0x1]
      %v318 = vsel %vm210, 0, %v317
      %319 = vst [vmem:[%s223 + $0xfc] sm:$0x1] %v318
      %v320 = vld [vmem:[%s192] sm:$0xf]
      %v321 = vld [vmem:[%s192 + $0x4] sm:$0xf]
      %v322 = vld [vmem:[%s192 + $0x8] sm:$0xf]
      %v323 = vld [vmem:[%s192 + $0xc] sm:$0xf]
      %v324 = vld [vmem:[%s192 + $0x10] sm:$0xf]
      %v325 = vld [vmem:[%s192 + $0x14] sm:$0xf]
      %v326 = vld [vmem:[%s192 + $0x18] sm:$0xf]
      %v327 = vld [vmem:[%s192 + $0x1c] sm:$0xf]
      %v328 = vld [vmem:[%s192 + $0x20] sm:$0xf]
      %v329 = vld [vmem:[%s192 + $0x24] sm:$0xf]
      %v330 = vld [vmem:[%s192 + $0x28] sm:$0xf]
      %v331 = vld [vmem:[%s192 + $0x2c] sm:$0xf]
      %v332 = vld [vmem:[%s192 + $0x30] sm:$0xf]
      %v333 = vld [vmem:[%s192 + $0x34] sm:$0xf]
      %v334 = vld [vmem:[%s192 + $0x38] sm:$0xf]
      %v335 = vld [vmem:[%s192 + $0x3c] sm:$0xf]
      %v336 = vld [vmem:[%s192 + $0x40] sm:$0xf]
      %v337 = vld [vmem:[%s192 + $0x44] sm:$0xf]
      %v338 = vld [vmem:[%s192 + $0x48] sm:$0xf]
      %v339 = vld [vmem:[%s192 + $0x4c] sm:$0xf]
      %v340 = vld [vmem:[%s192 + $0x50] sm:$0xf]
      %v341 = vld [vmem:[%s192 + $0x54] sm:$0xf]
      %v342 = vld [vmem:[%s192 + $0x58] sm:$0xf]
      %v343 = vld [vmem:[%s192 + $0x5c] sm:$0xf]
      %v344 = vld [vmem:[%s192 + $0x60] sm:$0xf]
      %v345 = vld [vmem:[%s192 + $0x64] sm:$0xf]
      %v346 = vld [vmem:[%s192 + $0x68] sm:$0xf]
      %v347 = vld [vmem:[%s192 + $0x6c] sm:$0xf]
      %v348 = vld [vmem:[%s192 + $0x70] sm:$0xf]
      %v349 = vld [vmem:[%s192 + $0x74] sm:$0xf]
      %v350 = vld [vmem:[%s192 + $0x78] sm:$0xf]
      %v351 = vld [vmem:[%s192 + $0x7c] sm:$0xf]
      %352 = vst.msk [vmem:[%s223 + $0x4] sm:$0xf] %vm205, %v320
      %353 = vst.msk [vmem:[%s223 + $0x8] sm:$0xf] %vm205, %v321
      %354 = vst.msk [vmem:[%s223 + $0x14] sm:$0xf] %vm205, %v322
      %355 = vst.msk [vmem:[%s223 + $0x18] sm:$0xf] %vm205, %v323
      %356 = vst.msk [vmem:[%s223 + $0x24] sm:$0xf] %vm205, %v324
      %357 = vst.msk [vmem:[%s223 + $0x28] sm:$0xf] %vm205, %v325
      %358 = vst.msk [vmem:[%s223 + $0x34] sm:$0xf] %vm205, %v326
      %359 = vst.msk [vmem:[%s223 + $0x38] sm:$0xf] %vm205, %v327
      %360 = vst.msk [vmem:[%s223 + $0x44] sm:$0xf] %vm205, %v328
      %361 = vst.msk [vmem:[%s223 + $0x48] sm:$0xf] %vm205, %v329
      %362 = vst.msk [vmem:[%s223 + $0x54] sm:$0xf] %vm205, %v330
      %363 = vst.msk [vmem:[%s223 + $0x58] sm:$0xf] %vm205, %v331
      %364 = vst.msk [vmem:[%s223 + $0x64] sm:$0xf] %vm205, %v332
      %365 = vst.msk [vmem:[%s223 + $0x68] sm:$0xf] %vm205, %v333
      %366 = vst.msk [vmem:[%s223 + $0x74] sm:$0xf] %vm205, %v334
      %367 = vst.msk [vmem:[%s223 + $0x78] sm:$0xf] %vm205, %v335
      %368 = vst.msk [vmem:[%s223 + $0x84] sm:$0xf] %vm205, %v336
      %369 = vst.msk [vmem:[%s223 + $0x88] sm:$0xf] %vm205, %v337
      %370 = vst.msk [vmem:[%s223 + $0x94] sm:$0xf] %vm205, %v338
      %371 = vst.msk [vmem:[%s223 + $0x98] sm:$0xf] %vm205, %v339
      %372 = vst.msk [vmem:[%s223 + $0xa4] sm:$0xf] %vm205, %v340
      %373 = vst.msk [vmem:[%s223 + $0xa8] sm:$0xf] %vm205, %v341
      %374 = vst.msk [vmem:[%s223 + $0xb4] sm:$0xf] %vm205, %v342
      %375 = vst.msk [vmem:[%s223 + $0xb8] sm:$0xf] %vm205, %v343
      %376 = vst.msk [vmem:[%s223 + $0xc4] sm:$0xf] %vm205, %v344
      %377 = vst.msk [vmem:[%s223 + $0xc8] sm:$0xf] %vm205, %v345
      %378 = vst.msk [vmem:[%s223 + $0xd4] sm:$0xf] %vm205, %v346
      %379 = vst.msk [vmem:[%s223 + $0xd8] sm:$0xf] %vm205, %v347
      %380 = vst.msk [vmem:[%s223 + $0xe4] sm:$0xf] %vm205, %v348
      %381 = vst.msk [vmem:[%s223 + $0xe8] sm:$0xf] %vm205, %v349
      %382 = vst.msk [vmem:[%s223 + $0xf4] sm:$0xf] %vm205, %v350
      %383 = vst.msk [vmem:[%s223 + $0xf8] sm:$0xf] %vm205, %v351
      %v384 = vld [vmem:[#allocation2] sm:$0x8]
      %v385 = vld [vmem:[#allocation2 + $0x4] sm:$0xf]
      %v386 = vld [vmem:[#allocation2 + $0x8] sm:$0xf]
      %v387 = vld [vmem:[#allocation2 + $0x10] sm:$0x8]
      %v388 = vld [vmem:[#allocation2 + $0x14] sm:$0xf]
      %v389 = vld [vmem:[#allocation2 + $0x18] sm:$0xf]
      %v390 = vld [vmem:[#allocation2 + $0x20] sm:$0x8]
      %v391 = vld [vmem:[#allocation2 + $0x24] sm:$0xf]
      %v392 = vld [vmem:[#allocation2 + $0x28] sm:$0xf]
      %v393 = vld [vmem:[#allocation2 + $0x30] sm:$0x8]
      %v394 = vld [vmem:[#allocation2 + $0x34] sm:$0xf]
      %v395 = vld [vmem:[#allocation2 + $0x38] sm:$0xf]
      %v396 = vld [vmem:[#allocation2 + $0x40] sm:$0x8]
      %v397 = vld [vmem:[#allocation2 + $0x44] sm:$0xf]
      %v398 = vld [vmem:[#allocation2 + $0x48] sm:$0xf]
      %v399 = vld [vmem:[#allocation2 + $0x50] sm:$0x8]
      %v400 = vld [vmem:[#allocation2 + $0x54] sm:$0xf]
      %v401 = vld [vmem:[#allocation2 + $0x58] sm:$0xf]
      %v402 = vld [vmem:[#allocation2 + $0x60] sm:$0x8]
      %v403 = vld [vmem:[#allocation2 + $0x64] sm:$0xf]
      %v404 = vld [vmem:[#allocation2 + $0x68] sm:$0xf]
      %v405 = vld [vmem:[#allocation2 + $0x70] sm:$0x8]
      %v406 = vld [vmem:[#allocation2 + $0x74] sm:$0xf]
      %v407 = vld [vmem:[#allocation2 + $0x78] sm:$0xf]
      %v408 = vld [vmem:[#allocation2 + $0x80] sm:$0x8]
      %v409 = vld [vmem:[#allocation2 + $0x84] sm:$0xf]
      %v410 = vld [vmem:[#allocation2 + $0x88] sm:$0xf]
      %v411 = vld [vmem:[#allocation2 + $0x90] sm:$0x8]
      %v412 = vld [vmem:[#allocation2 + $0x94] sm:$0xf]
      %v413 = vld [vmem:[#allocation2 + $0x98] sm:$0xf]
      %v414 = vld [vmem:[#allocation2 + $0xa0] sm:$0x8]
      %v415 = vld [vmem:[#allocation2 + $0xa4] sm:$0xf]
      %v416 = vld [vmem:[#allocation2 + $0xa8] sm:$0xf]
      %v417 = vld [vmem:[#allocation2 + $0xb0] sm:$0x8]
      %v418 = vld [vmem:[#allocation2 + $0xb4] sm:$0xf]
      %v419 = vld [vmem:[#allocation2 + $0xb8] sm:$0xf]
      %v420 = vld [vmem:[#allocation2 + $0xc0] sm:$0x8]
      %v421 = vld [vmem:[#allocation2 + $0xc4] sm:$0xf]
      %v422 = vld [vmem:[#allocation2 + $0xc8] sm:$0xf]
      %v423 = vld [vmem:[#allocation2 + $0xd0] sm:$0x8]
      %v424 = vld [vmem:[#allocation2 + $0xd4] sm:$0xf]
      %v425 = vld [vmem:[#allocation2 + $0xd8] sm:$0xf]
      %v426 = vld [vmem:[#allocation2 + $0xe0] sm:$0x8]
      %v427 = vld [vmem:[#allocation2 + $0xe4] sm:$0xf]
      %v428 = vld [vmem:[#allocation2 + $0xe8] sm:$0xf]
      %v429 = vld [vmem:[#allocation2 + $0xf0] sm:$0x8]
      %v430 = vld [vmem:[#allocation2 + $0xf4] sm:$0xf]
      %v431 = vld [vmem:[#allocation2 + $0xf8] sm:$0xf]
      %vm432 = vsmask.f32 4368
      %vm433 = vmor %vm209, %vm432
      %v435 = vshrl.u32 %v384, 16
      %v437 = vrot.slane %v435, 7
      %v438 = vrot.slane %v437, 4
      %v440 = vshrl.u32 %v385, 16
      %v442 = vrot.slane %v440, 7
      %v443 = vshll.u32 %v385, 16
      %v445 = vor.u32 %v442, %v443
      %v446 = vsel %vm433, %v438, %v445
      %v447 = vrot.slane %v442, 4
      %v449 = vshrl.u32 %v386, 16
      %v451 = vrot.slane %v449, 7
      %v452 = vshll.u32 %v386, 16
      %v454 = vor.u32 %v451, %v452
      %v455 = vsel %vm433, %v447, %v454
      %v457 = vshrl.u32 %v387, 16
      %v459 = vrot.slane %v457, 7
      %v460 = vrot.slane %v459, 4
      %v462 = vshrl.u32 %v388, 16
      %v464 = vrot.slane %v462, 7
      %v465 = vshll.u32 %v388, 16
      %v467 = vor.u32 %v464, %v465
      %v468 = vsel %vm433, %v460, %v467
      %v469 = vrot.slane %v464, 4
      %v471 = vshrl.u32 %v389, 16
      %v473 = vrot.slane %v471, 7
      %v474 = vshll.u32 %v389, 16
      %v476 = vor.u32 %v473, %v474
      %v477 = vsel %vm433, %v469, %v476
      %v479 = vshrl.u32 %v390, 16
      %v481 = vrot.slane %v479, 7
      %v482 = vrot.slane %v481, 4
      %v484 = vshrl.u32 %v391, 16
      %v486 = vrot.slane %v484, 7
      %v487 = vshll.u32 %v391, 16
      %v489 = vor.u32 %v486, %v487
      %v490 = vsel %vm433, %v482, %v489
      %v491 = vrot.slane %v486, 4
      %v493 = vshrl.u32 %v392, 16
      %v495 = vrot.slane %v493, 7
      %v496 = vshll.u32 %v392, 16
      %v498 = vor.u32 %v495, %v496
      %v499 = vsel %vm433, %v491, %v498
      %v501 = vshrl.u32 %v393, 16
      %v503 = vrot.slane %v501, 7
      %v504 = vrot.slane %v503, 4
      %v506 = vshrl.u32 %v394, 16
      %v508 = vrot.slane %v506, 7
      %v509 = vshll.u32 %v394, 16
      %v511 = vor.u32 %v508, %v509
      %v512 = vsel %vm433, %v504, %v511
      %v513 = vrot.slane %v508, 4
      %v515 = vshrl.u32 %v395, 16
      %v517 = vrot.slane %v515, 7
      %v518 = vshll.u32 %v395, 16
      %v520 = vor.u32 %v517, %v518
      %v521 = vsel %vm433, %v513, %v520
      %v523 = vshrl.u32 %v396, 16
      %v525 = vrot.slane %v523, 7
      %v526 = vrot.slane %v525, 4
      %v528 = vshrl.u32 %v397, 16
      %v530 = vrot.slane %v528, 7
      %v531 = vshll.u32 %v397, 16
      %v533 = vor.u32 %v530, %v531
      %v534 = vsel %vm433, %v526, %v533
      %v535 = vrot.slane %v530, 4
      %v537 = vshrl.u32 %v398, 16
      %v539 = vrot.slane %v537, 7
      %v540 = vshll.u32 %v398, 16
      %v542 = vor.u32 %v539, %v540
      %v543 = vsel %vm433, %v535, %v542
      %v545 = vshrl.u32 %v399, 16
      %v547 = vrot.slane %v545, 7
      %v548 = vrot.slane %v547, 4
      %v550 = vshrl.u32 %v400, 16
      %v552 = vrot.slane %v550, 7
      %v553 = vshll.u32 %v400, 16
      %v555 = vor.u32 %v552, %v553
      %v556 = vsel %vm433, %v548, %v555
      %v557 = vrot.slane %v552, 4
      %v559 = vshrl.u32 %v401, 16
      %v561 = vrot.slane %v559, 7
      %v562 = vshll.u32 %v401, 16
      %v564 = vor.u32 %v561, %v562
      %v565 = vsel %vm433, %v557, %v564
      %v567 = vshrl.u32 %v402, 16
      %v569 = vrot.slane %v567, 7
      %v570 = vrot.slane %v569, 4
      %v572 = vshrl.u32 %v403, 16
      %v574 = vrot.slane %v572, 7
      %v575 = vshll.u32 %v403, 16
      %v577 = vor.u32 %v574, %v575
      %v578 = vsel %vm433, %v570, %v577
      %v579 = vrot.slane %v574, 4
      %v581 = vshrl.u32 %v404, 16
      %v583 = vrot.slane %v581, 7
      %v584 = vshll.u32 %v404, 16
      %v586 = vor.u32 %v583, %v584
      %v587 = vsel %vm433, %v579, %v586
      %v589 = vshrl.u32 %v405, 16
      %v591 = vrot.slane %v589, 7
      %v592 = vrot.slane %v591, 4
      %v594 = vshrl.u32 %v406, 16
      %v596 = vrot.slane %v594, 7
      %v597 = vshll.u32 %v406, 16
      %v599 = vor.u32 %v596, %v597
      %v600 = vsel %vm433, %v592, %v599
      %v601 = vrot.slane %v596, 4
      %v603 = vshrl.u32 %v407, 16
      %v605 = vrot.slane %v603, 7
      %v606 = vshll.u32 %v407, 16
      %v608 = vor.u32 %v605, %v606
      %v609 = vsel %vm433, %v601, %v608
      %v611 = vshrl.u32 %v408, 16
      %v613 = vrot.slane %v611, 7
      %v614 = vrot.slane %v613, 4
      %v616 = vshrl.u32 %v409, 16
      %v618 = vrot.slane %v616, 7
      %v619 = vshll.u32 %v409, 16
      %v621 = vor.u32 %v618, %v619
      %v622 = vsel %vm433, %v614, %v621
      %v623 = vrot.slane %v618, 4
      %v625 = vshrl.u32 %v410, 16
      %v627 = vrot.slane %v625, 7
      %v628 = vshll.u32 %v410, 16
      %v630 = vor.u32 %v627, %v628
      %v631 = vsel %vm433, %v623, %v630
      %v633 = vshrl.u32 %v411, 16
      %v635 = vrot.slane %v633, 7
      %v636 = vrot.slane %v635, 4
      %v638 = vshrl.u32 %v412, 16
      %v640 = vrot.slane %v638, 7
      %v641 = vshll.u32 %v412, 16
      %v643 = vor.u32 %v640, %v641
      %v644 = vsel %vm433, %v636, %v643
      %v645 = vrot.slane %v640, 4
      %v647 = vshrl.u32 %v413, 16
      %v649 = vrot.slane %v647, 7
      %v650 = vshll.u32 %v413, 16
      %v652 = vor.u32 %v649, %v650
      %v653 = vsel %vm433, %v645, %v652
      %v655 = vshrl.u32 %v414, 16
      %v657 = vrot.slane %v655, 7
      %v658 = vrot.slane %v657, 4
      %v660 = vshrl.u32 %v415, 16
      %v662 = vrot.slane %v660, 7
      %v663 = vshll.u32 %v415, 16
      %v665 = vor.u32 %v662, %v663
      %v666 = vsel %vm433, %v658, %v665
      %v667 = vrot.slane %v662, 4
      %v669 = vshrl.u32 %v416, 16
      %v671 = vrot.slane %v669, 7
      %v672 = vshll.u32 %v416, 16
      %v674 = vor.u32 %v671, %v672
      %v675 = vsel %vm433, %v667, %v674
      %v677 = vshrl.u32 %v417, 16
      %v679 = vrot.slane %v677, 7
      %v680 = vrot.slane %v679, 4
      %v682 = vshrl.u32 %v418, 16
      %v684 = vrot.slane %v682, 7
      %v685 = vshll.u32 %v418, 16
      %v687 = vor.u32 %v684, %v685
      %v688 = vsel %vm433, %v680, %v687
      %v689 = vrot.slane %v684, 4
      %v691 = vshrl.u32 %v419, 16
      %v693 = vrot.slane %v691, 7
      %v694 = vshll.u32 %v419, 16
      %v696 = vor.u32 %v693, %v694
      %v697 = vsel %vm433, %v689, %v696
      %v699 = vshrl.u32 %v420, 16
      %v701 = vrot.slane %v699, 7
      %v702 = vrot.slane %v701, 4
      %v704 = vshrl.u32 %v421, 16
      %v706 = vrot.slane %v704, 7
      %v707 = vshll.u32 %v421, 16
      %v709 = vor.u32 %v706, %v707
      %v710 = vsel %vm433, %v702, %v709
      %v711 = vrot.slane %v706, 4
      %v713 = vshrl.u32 %v422, 16
      %v715 = vrot.slane %v713, 7
      %v716 = vshll.u32 %v422, 16
      %v718 = vor.u32 %v715, %v716
      %v719 = vsel %vm433, %v711, %v718
      %v721 = vshrl.u32 %v423, 16
      %v723 = vrot.slane %v721, 7
      %v724 = vrot.slane %v723, 4
      %v726 = vshrl.u32 %v424, 16
      %v728 = vrot.slane %v726, 7
      %v729 = vshll.u32 %v424, 16
      %v731 = vor.u32 %v728, %v729
      %v732 = vsel %vm433, %v724, %v731
      %v733 = vrot.slane %v728, 4
      %v735 = vshrl.u32 %v425, 16
      %v737 = vrot.slane %v735, 7
      %v738 = vshll.u32 %v425, 16
      %v740 = vor.u32 %v737, %v738
      %v741 = vsel %vm433, %v733, %v740
      %v743 = vshrl.u32 %v426, 16
      %v745 = vrot.slane %v743, 7
      %v746 = vrot.slane %v745, 4
      %v748 = vshrl.u32 %v427, 16
      %v750 = vrot.slane %v748, 7
      %v751 = vshll.u32 %v427, 16
      %v753 = vor.u32 %v750, %v751
      %v754 = vsel %vm433, %v746, %v753
      %v755 = vrot.slane %v750, 4
      %v757 = vshrl.u32 %v428, 16
      %v759 = vrot.slane %v757, 7
      %v760 = vshll.u32 %v428, 16
      %v762 = vor.u32 %v759, %v760
      %v763 = vsel %vm433, %v755, %v762
      %v765 = vshrl.u32 %v429, 16
      %v767 = vrot.slane %v765, 7
      %v768 = vrot.slane %v767, 4
      %v770 = vshrl.u32 %v430, 16
      %v772 = vrot.slane %v770, 7
      %v773 = vshll.u32 %v430, 16
      %v775 = vor.u32 %v772, %v773
      %v776 = vsel %vm433, %v768, %v775
      %v777 = vrot.slane %v772, 4
      %v779 = vshrl.u32 %v431, 16
      %v781 = vrot.slane %v779, 7
      %v782 = vshll.u32 %v431, 16
      %v784 = vor.u32 %v781, %v782
      %v785 = vsel %vm433, %v777, %v784
      %v786 = vld [vmem:[#allocation2 + $0xc] sm:$0x1]
      %v787 = vld [vmem:[#allocation2 + $0x1c] sm:$0x1]
      %v788 = vld [vmem:[#allocation2 + $0x2c] sm:$0x1]
      %v789 = vld [vmem:[#allocation2 + $0x3c] sm:$0x1]
      %v790 = vld [vmem:[#allocation2 + $0x4c] sm:$0x1]
      %v791 = vld [vmem:[#allocation2 + $0x5c] sm:$0x1]
      %v792 = vld [vmem:[#allocation2 + $0x6c] sm:$0x1]
      %v793 = vld [vmem:[#allocation2 + $0x7c] sm:$0x1]
      %v794 = vld [vmem:[#allocation2 + $0x8c] sm:$0x1]
      %v795 = vld [vmem:[#allocation2 + $0x9c] sm:$0x1]
      %v796 = vld [vmem:[#allocation2 + $0xac] sm:$0x1]
      %v797 = vld [vmem:[#allocation2 + $0xbc] sm:$0x1]
      %v798 = vld [vmem:[#allocation2 + $0xcc] sm:$0x1]
      %v799 = vld [vmem:[#allocation2 + $0xdc] sm:$0x1]
      %v800 = vld [vmem:[#allocation2 + $0xec] sm:$0x1]
      %v801 = vld [vmem:[#allocation2 + $0xfc] sm:$0x1]
      %vm802 = vsmask.f32 3328
      %vm803 = vsmask.f32 7440
      %vm804 = vmor %vm802, %vm803
      %v805 = vrot.slane %v440, 4
      %v806 = vrot.slane %v443, 5
      %v807 = vor.u32 %v805, %v806
      %v808 = vrot.slane %v807, 4
      %v809 = vrot.slane %v452, 5
      %v810 = vsel %vm804, %v808, %v809
      %v811 = vrot.slane %v449, 4
      %v812 = vor.u32 %v811, %v809
      %v813 = vrot.slane %v812, 4
      %v815 = vshll.u32 %v786, 16
      %v817 = vrot.slane %v815, 5
      %v818 = vsel %vm804, %v813, %v817
      %v819 = vrot.slane %v462, 4
      %v820 = vrot.slane %v465, 5
      %v821 = vor.u32 %v819, %v820
      %v822 = vrot.slane %v821, 4
      %v823 = vrot.slane %v474, 5
      %v824 = vsel %vm804, %v822, %v823
      %v825 = vrot.slane %v471, 4
      %v826 = vor.u32 %v825, %v823
      %v827 = vrot.slane %v826, 4
      %v829 = vshll.u32 %v787, 16
      %v831 = vrot.slane %v829, 5
      %v832 = vsel %vm804, %v827, %v831
      %v833 = vrot.slane %v484, 4
      %v834 = vrot.slane %v487, 5
      %v835 = vor.u32 %v833, %v834
      %v836 = vrot.slane %v835, 4
      %v837 = vrot.slane %v496, 5
      %v838 = vsel %vm804, %v836, %v837
      %v839 = vrot.slane %v493, 4
      %v840 = vor.u32 %v839, %v837
      %v841 = vrot.slane %v840, 4
      %v843 = vshll.u32 %v788, 16
      %v845 = vrot.slane %v843, 5
      %v846 = vsel %vm804, %v841, %v845
      %v847 = vrot.slane %v506, 4
      %v848 = vrot.slane %v509, 5
      %v849 = vor.u32 %v847, %v848
      %v850 = vrot.slane %v849, 4
      %v851 = vrot.slane %v518, 5
      %v852 = vsel %vm804, %v850, %v851
      %v853 = vrot.slane %v515, 4
      %v854 = vor.u32 %v853, %v851
      %v855 = vrot.slane %v854, 4
      %v857 = vshll.u32 %v789, 16
      %v859 = vrot.slane %v857, 5
      %v860 = vsel %vm804, %v855, %v859
      %v861 = vrot.slane %v528, 4
      %v862 = vrot.slane %v531, 5
      %v863 = vor.u32 %v861, %v862
      %v864 = vrot.slane %v863, 4
      %v865 = vrot.slane %v540, 5
      %v866 = vsel %vm804, %v864, %v865
      %v867 = vrot.slane %v537, 4
      %v868 = vor.u32 %v867, %v865
      %v869 = vrot.slane %v868, 4
      %v871 = vshll.u32 %v790, 16
      %v873 = vrot.slane %v871, 5
      %v874 = vsel %vm804, %v869, %v873
      %v875 = vrot.slane %v550, 4
      %v876 = vrot.slane %v553, 5
      %v877 = vor.u32 %v875, %v876
      %v878 = vrot.slane %v877, 4
      %v879 = vrot.slane %v562, 5
      %v880 = vsel %vm804, %v878, %v879
      %v881 = vrot.slane %v559, 4
      %v882 = vor.u32 %v881, %v879
      %v883 = vrot.slane %v882, 4
      %v885 = vshll.u32 %v791, 16
      %v887 = vrot.slane %v885, 5
      %v888 = vsel %vm804, %v883, %v887
      %v889 = vrot.slane %v572, 4
      %v890 = vrot.slane %v575, 5
      %v891 = vor.u32 %v889, %v890
      %v892 = vrot.slane %v891, 4
      %v893 = vrot.slane %v584, 5
      %v894 = vsel %vm804, %v892, %v893
      %v895 = vrot.slane %v581, 4
      %v896 = vor.u32 %v895, %v893
      %v897 = vrot.slane %v896, 4
      %v899 = vshll.u32 %v792, 16
      %v901 = vrot.slane %v899, 5
      %v902 = vsel %vm804, %v897, %v901
      %v903 = vrot.slane %v594, 4
      %v904 = vrot.slane %v597, 5
      %v905 = vor.u32 %v903, %v904
      %v906 = vrot.slane %v905, 4
      %v907 = vrot.slane %v606, 5
      %v908 = vsel %vm804, %v906, %v907
      %v909 = vrot.slane %v603, 4
      %v910 = vor.u32 %v909, %v907
      %v911 = vrot.slane %v910, 4
      %v913 = vshll.u32 %v793, 16
      %v915 = vrot.slane %v913, 5
      %v916 = vsel %vm804, %v911, %v915
      %v917 = vrot.slane %v616, 4
      %v918 = vrot.slane %v619, 5
      %v919 = vor.u32 %v917, %v918
      %v920 = vrot.slane %v919, 4
      %v921 = vrot.slane %v628, 5
      %v922 = vsel %vm804, %v920, %v921
      %v923 = vrot.slane %v625, 4
      %v924 = vor.u32 %v923, %v921
      %v925 = vrot.slane %v924, 4
      %v927 = vshll.u32 %v794, 16
      %v929 = vrot.slane %v927, 5
      %v930 = vsel %vm804, %v925, %v929
      %v931 = vrot.slane %v638, 4
      %v932 = vrot.slane %v641, 5
      %v933 = vor.u32 %v931, %v932
      %v934 = vrot.slane %v933, 4
      %v935 = vrot.slane %v650, 5
      %v936 = vsel %vm804, %v934, %v935
      %v937 = vrot.slane %v647, 4
      %v938 = vor.u32 %v937, %v935
      %v939 = vrot.slane %v938, 4
      %v941 = vshll.u32 %v795, 16
      %v943 = vrot.slane %v941, 5
      %v944 = vsel %vm804, %v939, %v943
      %v945 = vrot.slane %v660, 4
      %v946 = vrot.slane %v663, 5
      %v947 = vor.u32 %v945, %v946
      %v948 = vrot.slane %v947, 4
      %v949 = vrot.slane %v672, 5
      %v950 = vsel %vm804, %v948, %v949
      %v951 = vrot.slane %v669, 4
      %v952 = vor.u32 %v951, %v949
      %v953 = vrot.slane %v952, 4
      %v955 = vshll.u32 %v796, 16
      %v957 = vrot.slane %v955, 5
      %v958 = vsel %vm804, %v953, %v957
      %v959 = vrot.slane %v682, 4
      %v960 = vrot.slane %v685, 5
      %v961 = vor.u32 %v959, %v960
      %v962 = vrot.slane %v961, 4
      %v963 = vrot.slane %v694, 5
      %v964 = vsel %vm804, %v962, %v963
      %v965 = vrot.slane %v691, 4
      %v966 = vor.u32 %v965, %v963
      %v967 = vrot.slane %v966, 4
      %v969 = vshll.u32 %v797, 16
      %v971 = vrot.slane %v969, 5
      %v972 = vsel %vm804, %v967, %v971
      %v973 = vrot.slane %v704, 4
      %v974 = vrot.slane %v707, 5
      %v975 = vor.u32 %v973, %v974
      %v976 = vrot.slane %v975, 4
      %v977 = vrot.slane %v716, 5
      %v978 = vsel %vm804, %v976, %v977
      %v979 = vrot.slane %v713, 4
      %v980 = vor.u32 %v979, %v977
      %v981 = vrot.slane %v980, 4
      %v983 = vshll.u32 %v798, 16
      %v985 = vrot.slane %v983, 5
      %v986 = vsel %vm804, %v981, %v985
      %v987 = vrot.slane %v726, 4
      %v988 = vrot.slane %v729, 5
      %v989 = vor.u32 %v987, %v988
      %v990 = vrot.slane %v989, 4
      %v991 = vrot.slane %v738, 5
      %v992 = vsel %vm804, %v990, %v991
      %v993 = vrot.slane %v735, 4
      %v994 = vor.u32 %v993, %v991
      %v995 = vrot.slane %v994, 4
      %v997 = vshll.u32 %v799, 16
      %v999 = vrot.slane %v997, 5
      %v1000 = vsel %vm804, %v995, %v999
      %v1001 = vrot.slane %v748, 4
      %v1002 = vrot.slane %v751, 5
      %v1003 = vor.u32 %v1001, %v1002
      %v1004 = vrot.slane %v1003, 4
      %v1005 = vrot.slane %v760, 5
      %v1006 = vsel %vm804, %v1004, %v1005
      %v1007 = vrot.slane %v757, 4
      %v1008 = vor.u32 %v1007, %v1005
      %v1009 = vrot.slane %v1008, 4
      %v1011 = vshll.u32 %v800, 16
      %v1013 = vrot.slane %v1011, 5
      %v1014 = vsel %vm804, %v1009, %v1013
      %v1015 = vrot.slane %v770, 4
      %v1016 = vrot.slane %v773, 5
      %v1017 = vor.u32 %v1015, %v1016
      %v1018 = vrot.slane %v1017, 4
      %v1019 = vrot.slane %v782, 5
      %v1020 = vsel %vm804, %v1018, %v1019
      %v1021 = vrot.slane %v779, 4
      %v1022 = vor.u32 %v1021, %v1019
      %v1023 = vrot.slane %v1022, 4
      %v1025 = vshll.u32 %v801, 16
      %v1027 = vrot.slane %v1025, 5
      %v1028 = vsel %vm804, %v1023, %v1027
      %v1029 = vld [vmem:[%s223] sm:$0x8]
      %v1030 = vld [vmem:[%s223 + $0x4] sm:$0xf]
      %v1031 = vld [vmem:[%s223 + $0x8] sm:$0xf]
      %v1032 = vld [vmem:[%s223 + $0x10] sm:$0x8]
      %v1033 = vld [vmem:[%s223 + $0x14] sm:$0xf]
      %v1034 = vld [vmem:[%s223 + $0x18] sm:$0xf]
      %v1035 = vld [vmem:[%s223 + $0x20] sm:$0x8]
      %v1036 = vld [vmem:[%s223 + $0x24] sm:$0xf]
      %v1037 = vld [vmem:[%s223 + $0x28] sm:$0xf]
      %v1038 = vld [vmem:[%s223 + $0x30] sm:$0x8]
      %v1039 = vld [vmem:[%s223 + $0x34] sm:$0xf]
      %v1040 = vld [vmem:[%s223 + $0x38] sm:$0xf]
      %v1041 = vld [vmem:[%s223 + $0x40] sm:$0x8]
      %v1042 = vld [vmem:[%s223 + $0x44] sm:$0xf]
      %v1043 = vld [vmem:[%s223 + $0x48] sm:$0xf]
      %v1044 = vld [vmem:[%s223 + $0x50] sm:$0x8]
      %v1045 = vld [vmem:[%s223 + $0x54] sm:$0xf]
      %v1046 = vld [vmem:[%s223 + $0x58] sm:$0xf]
      %v1047 = vld [vmem:[%s223 + $0x60] sm:$0x8]
      %v1048 = vld [vmem:[%s223 + $0x64] sm:$0xf]
      %v1049 = vld [vmem:[%s223 + $0x68] sm:$0xf]
      %v1050 = vld [vmem:[%s223 + $0x70] sm:$0x8]
      %v1051 = vld [vmem:[%s223 + $0x74] sm:$0xf]
      %v1052 = vld [vmem:[%s223 + $0x78] sm:$0xf]
      %v1053 = vld [vmem:[%s223 + $0x80] sm:$0x8]
      %v1054 = vld [vmem:[%s223 + $0x84] sm:$0xf]
      %v1055 = vld [vmem:[%s223 + $0x88] sm:$0xf]
      %v1056 = vld [vmem:[%s223 + $0x90] sm:$0x8]
      %v1057 = vld [vmem:[%s223 + $0x94] sm:$0xf]
      %v1058 = vld [vmem:[%s223 + $0x98] sm:$0xf]
      %v1059 = vld [vmem:[%s223 + $0xa0] sm:$0x8]
      %v1060 = vld [vmem:[%s223 + $0xa4] sm:$0xf]
      %v1061 = vld [vmem:[%s223 + $0xa8] sm:$0xf]
      %v1062 = vld [vmem:[%s223 + $0xb0] sm:$0x8]
      %v1063 = vld [vmem:[%s223 + $0xb4] sm:$0xf]
      %v1064 = vld [vmem:[%s223 + $0xb8] sm:$0xf]
      %v1065 = vld [vmem:[%s223 + $0xc0] sm:$0x8]
      %v1066 = vld [vmem:[%s223 + $0xc4] sm:$0xf]
      %v1067 = vld [vmem:[%s223 + $0xc8] sm:$0xf]
      %v1068 = vld [vmem:[%s223 + $0xd0] sm:$0x8]
      %v1069 = vld [vmem:[%s223 + $0xd4] sm:$0xf]
      %v1070 = vld [vmem:[%s223 + $0xd8] sm:$0xf]
      %v1071 = vld [vmem:[%s223 + $0xe0] sm:$0x8]
      %v1072 = vld [vmem:[%s223 + $0xe4] sm:$0xf]
      %v1073 = vld [vmem:[%s223 + $0xe8] sm:$0xf]
      %v1074 = vld [vmem:[%s223 + $0xf0] sm:$0x8]
      %v1075 = vld [vmem:[%s223 + $0xf4] sm:$0xf]
      %v1076 = vld [vmem:[%s223 + $0xf8] sm:$0xf]
      %v1078 = vshrl.u32 %v1029, 16
      %v1080 = vrot.slane %v1078, 7
      %v1081 = vrot.slane %v1080, 4
      %v1083 = vshrl.u32 %v1030, 16
      %v1085 = vrot.slane %v1083, 7
      %v1086 = vshll.u32 %v1030, 16
      %v1088 = vor.u32 %v1085, %v1086
      %v1089 = vsel %vm433, %v1081, %v1088
      %v1090 = vrot.slane %v1085, 4
      %v1092 = vshrl.u32 %v1031, 16
      %v1094 = vrot.slane %v1092, 7
      %v1095 = vshll.u32 %v1031, 16
      %v1097 = vor.u32 %v1094, %v1095
      %v1098 = vsel %vm433, %v1090, %v1097
      %v1100 = vshrl.u32 %v1032, 16
      %v1102 = vrot.slane %v1100, 7
      %v1103 = vrot.slane %v1102, 4
      %v1105 = vshrl.u32 %v1033, 16
      %v1107 = vrot.slane %v1105, 7
      %v1108 = vshll.u32 %v1033, 16
      %v1110 = vor.u32 %v1107, %v1108
      %v1111 = vsel %vm433, %v1103, %v1110
      %v1112 = vrot.slane %v1107, 4
      %v1114 = vshrl.u32 %v1034, 16
      %v1116 = vrot.slane %v1114, 7
      %v1117 = vshll.u32 %v1034, 16
      %v1119 = vor.u32 %v1116, %v1117
      %v1120 = vsel %vm433, %v1112, %v1119
      %v1122 = vshrl.u32 %v1035, 16
      %v1124 = vrot.slane %v1122, 7
      %v1125 = vrot.slane %v1124, 4
      %v1127 = vshrl.u32 %v1036, 16
      %v1129 = vrot.slane %v1127, 7
      %v1130 = vshll.u32 %v1036, 16
      %v1132 = vor.u32 %v1129, %v1130
      %v1133 = vsel %vm433, %v1125, %v1132
      %v1134 = vrot.slane %v1129, 4
      %v1136 = vshrl.u32 %v1037, 16
      %v1138 = vrot.slane %v1136, 7
      %v1139 = vshll.u32 %v1037, 16
      %v1141 = vor.u32 %v1138, %v1139
      %v1142 = vsel %vm433, %v1134, %v1141
      %v1144 = vshrl.u32 %v1038, 16
      %v1146 = vrot.slane %v1144, 7
      %v1147 = vrot.slane %v1146, 4
      %v1149 = vshrl.u32 %v1039, 16
      %v1151 = vrot.slane %v1149, 7
      %v1152 = vshll.u32 %v1039, 16
      %v1154 = vor.u32 %v1151, %v1152
      %v1155 = vsel %vm433, %v1147, %v1154
      %v1156 = vrot.slane %v1151, 4
      %v1158 = vshrl.u32 %v1040, 16
      %v1160 = vrot.slane %v1158, 7
      %v1161 = vshll.u32 %v1040, 16
      %v1163 = vor.u32 %v1160, %v1161
      %v1164 = vsel %vm433, %v1156, %v1163
      %v1166 = vshrl.u32 %v1041, 16
      %v1168 = vrot.slane %v1166, 7
      %v1169 = vrot.slane %v1168, 4
      %v1171 = vshrl.u32 %v1042, 16
      %v1173 = vrot.slane %v1171, 7
      %v1174 = vshll.u32 %v1042, 16
      %v1176 = vor.u32 %v1173, %v1174
      %v1177 = vsel %vm433, %v1169, %v1176
      %v1178 = vrot.slane %v1173, 4
      %v1180 = vshrl.u32 %v1043, 16
      %v1182 = vrot.slane %v1180, 7
      %v1183 = vshll.u32 %v1043, 16
      %v1185 = vor.u32 %v1182, %v1183
      %v1186 = vsel %vm433, %v1178, %v1185
      %v1188 = vshrl.u32 %v1044, 16
      %v1190 = vrot.slane %v1188, 7
      %v1191 = vrot.slane %v1190, 4
      %v1193 = vshrl.u32 %v1045, 16
      %v1195 = vrot.slane %v1193, 7
      %v1196 = vshll.u32 %v1045, 16
      %v1198 = vor.u32 %v1195, %v1196
      %v1199 = vsel %vm433, %v1191, %v1198
      %v1200 = vrot.slane %v1195, 4
      %v1202 = vshrl.u32 %v1046, 16
      %v1204 = vrot.slane %v1202, 7
      %v1205 = vshll.u32 %v1046, 16
      %v1207 = vor.u32 %v1204, %v1205
      %v1208 = vsel %vm433, %v1200, %v1207
      %v1210 = vshrl.u32 %v1047, 16
      %v1212 = vrot.slane %v1210, 7
      %v1213 = vrot.slane %v1212, 4
      %v1215 = vshrl.u32 %v1048, 16
      %v1217 = vrot.slane %v1215, 7
      %v1218 = vshll.u32 %v1048, 16
      %v1220 = vor.u32 %v1217, %v1218
      %v1221 = vsel %vm433, %v1213, %v1220
      %v1222 = vrot.slane %v1217, 4
      %v1224 = vshrl.u32 %v1049, 16
      %v1226 = vrot.slane %v1224, 7
      %v1227 = vshll.u32 %v1049, 16
      %v1229 = vor.u32 %v1226, %v1227
      %v1230 = vsel %vm433, %v1222, %v1229
      %v1232 = vshrl.u32 %v1050, 16
      %v1234 = vrot.slane %v1232, 7
      %v1235 = vrot.slane %v1234, 4
      %v1237 = vshrl.u32 %v1051, 16
      %v1239 = vrot.slane %v1237, 7
      %v1240 = vshll.u32 %v1051, 16
      %v1242 = vor.u32 %v1239, %v1240
      %v1243 = vsel %vm433, %v1235, %v1242
      %v1244 = vrot.slane %v1239, 4
      %v1246 = vshrl.u32 %v1052, 16
      %v1248 = vrot.slane %v1246, 7
      %v1249 = vshll.u32 %v1052, 16
      %v1251 = vor.u32 %v1248, %v1249
      %v1252 = vsel %vm433, %v1244, %v1251
      %v1254 = vshrl.u32 %v1053, 16
      %v1256 = vrot.slane %v1254, 7
      %v1257 = vrot.slane %v1256, 4
      %v1259 = vshrl.u32 %v1054, 16
      %v1261 = vrot.slane %v1259, 7
      %v1262 = vshll.u32 %v1054, 16
      %v1264 = vor.u32 %v1261, %v1262
      %v1265 = vsel %vm433, %v1257, %v1264
      %v1266 = vrot.slane %v1261, 4
      %v1268 = vshrl.u32 %v1055, 16
      %v1270 = vrot.slane %v1268, 7
      %v1271 = vshll.u32 %v1055, 16
      %v1273 = vor.u32 %v1270, %v1271
      %v1274 = vsel %vm433, %v1266, %v1273
      %v1276 = vshrl.u32 %v1056, 16
      %v1278 = vrot.slane %v1276, 7
      %v1279 = vrot.slane %v1278, 4
      %v1281 = vshrl.u32 %v1057, 16
      %v1283 = vrot.slane %v1281, 7
      %v1284 = vshll.u32 %v1057, 16
      %v1286 = vor.u32 %v1283, %v1284
      %v1287 = vsel %vm433, %v1279, %v1286
      %v1288 = vrot.slane %v1283, 4
      %v1290 = vshrl.u32 %v1058, 16
      %v1292 = vrot.slane %v1290, 7
      %v1293 = vshll.u32 %v1058, 16
      %v1295 = vor.u32 %v1292, %v1293
      %v1296 = vsel %vm433, %v1288, %v1295
      %v1298 = vshrl.u32 %v1059, 16
      %v1300 = vrot.slane %v1298, 7
      %v1301 = vrot.slane %v1300, 4
      %v1303 = vshrl.u32 %v1060, 16
      %v1305 = vrot.slane %v1303, 7
      %v1306 = vshll.u32 %v1060, 16
      %v1308 = vor.u32 %v1305, %v1306
      %v1309 = vsel %vm433, %v1301, %v1308
      %v1310 = vrot.slane %v1305, 4
      %v1312 = vshrl.u32 %v1061, 16
      %v1314 = vrot.slane %v1312, 7
      %v1315 = vshll.u32 %v1061, 16
      %v1317 = vor.u32 %v1314, %v1315
      %v1318 = vsel %vm433, %v1310, %v1317
      %v1320 = vshrl.u32 %v1062, 16
      %v1322 = vrot.slane %v1320, 7
      %v1323 = vrot.slane %v1322, 4
      %v1325 = vshrl.u32 %v1063, 16
      %v1327 = vrot.slane %v1325, 7
      %v1328 = vshll.u32 %v1063, 16
      %v1330 = vor.u32 %v1327, %v1328
      %v1331 = vsel %vm433, %v1323, %v1330
      %v1332 = vrot.slane %v1327, 4
      %v1334 = vshrl.u32 %v1064, 16
      %v1336 = vrot.slane %v1334, 7
      %v1337 = vshll.u32 %v1064, 16
      %v1339 = vor.u32 %v1336, %v1337
      %v1340 = vsel %vm433, %v1332, %v1339
      %v1342 = vshrl.u32 %v1065, 16
      %v1344 = vrot.slane %v1342, 7
      %v1345 = vrot.slane %v1344, 4
      %v1347 = vshrl.u32 %v1066, 16
      %v1349 = vrot.slane %v1347, 7
      %v1350 = vshll.u32 %v1066, 16
      %v1352 = vor.u32 %v1349, %v1350
      %v1353 = vsel %vm433, %v1345, %v1352
      %v1354 = vrot.slane %v1349, 4
      %v1356 = vshrl.u32 %v1067, 16
      %v1358 = vrot.slane %v1356, 7
      %v1359 = vshll.u32 %v1067, 16
      %v1361 = vor.u32 %v1358, %v1359
      %v1362 = vsel %vm433, %v1354, %v1361
      %v1364 = vshrl.u32 %v1068, 16
      %v1366 = vrot.slane %v1364, 7
      %v1367 = vrot.slane %v1366, 4
      %v1369 = vshrl.u32 %v1069, 16
      %v1371 = vrot.slane %v1369, 7
      %v1372 = vshll.u32 %v1069, 16
      %v1374 = vor.u32 %v1371, %v1372
      %v1375 = vsel %vm433, %v1367, %v1374
      %v1376 = vrot.slane %v1371, 4
      %v1378 = vshrl.u32 %v1070, 16
      %v1380 = vrot.slane %v1378, 7
      %v1381 = vshll.u32 %v1070, 16
      %v1383 = vor.u32 %v1380, %v1381
      %v1384 = vsel %vm433, %v1376, %v1383
      %v1386 = vshrl.u32 %v1071, 16
      %v1388 = vrot.slane %v1386, 7
      %v1389 = vrot.slane %v1388, 4
      %v1391 = vshrl.u32 %v1072, 16
      %v1393 = vrot.slane %v1391, 7
      %v1394 = vshll.u32 %v1072, 16
      %v1396 = vor.u32 %v1393, %v1394
      %v1397 = vsel %vm433, %v1389, %v1396
      %v1398 = vrot.slane %v1393, 4
      %v1400 = vshrl.u32 %v1073, 16
      %v1402 = vrot.slane %v1400, 7
      %v1403 = vshll.u32 %v1073, 16
      %v1405 = vor.u32 %v1402, %v1403
      %v1406 = vsel %vm433, %v1398, %v1405
      %v1408 = vshrl.u32 %v1074, 16
      %v1410 = vrot.slane %v1408, 7
      %v1411 = vrot.slane %v1410, 4
      %v1413 = vshrl.u32 %v1075, 16
      %v1415 = vrot.slane %v1413, 7
      %v1416 = vshll.u32 %v1075, 16
      %v1418 = vor.u32 %v1415, %v1416
      %v1419 = vsel %vm433, %v1411, %v1418
      %v1420 = vrot.slane %v1415, 4
      %v1422 = vshrl.u32 %v1076, 16
      %v1424 = vrot.slane %v1422, 7
      %v1425 = vshll.u32 %v1076, 16
      %v1427 = vor.u32 %v1424, %v1425
      %v1428 = vsel %vm433, %v1420, %v1427
      %v1429 = vld [vmem:[%s223 + $0xc] sm:$0x1]
      %v1430 = vld [vmem:[%s223 + $0x1c] sm:$0x1]
      %v1431 = vld [vmem:[%s223 + $0x2c] sm:$0x1]
      %v1432 = vld [vmem:[%s223 + $0x3c] sm:$0x1]
      %v1433 = vld [vmem:[%s223 + $0x4c] sm:$0x1]
      %v1434 = vld [vmem:[%s223 + $0x5c] sm:$0x1]
      %v1435 = vld [vmem:[%s223 + $0x6c] sm:$0x1]
      %v1436 = vld [vmem:[%s223 + $0x7c] sm:$0x1]
      %v1437 = vld [vmem:[%s223 + $0x8c] sm:$0x1]
      %v1438 = vld [vmem:[%s223 + $0x9c] sm:$0x1]
      %v1439 = vld [vmem:[%s223 + $0xac] sm:$0x1]
      %v1440 = vld [vmem:[%s223 + $0xbc] sm:$0x1]
      %v1441 = vld [vmem:[%s223 + $0xcc] sm:$0x1]
      %v1442 = vld [vmem:[%s223 + $0xdc] sm:$0x1]
      %v1443 = vld [vmem:[%s223 + $0xec] sm:$0x1]
      %v1444 = vld [vmem:[%s223 + $0xfc] sm:$0x1]
      %v1445 = vrot.slane %v1083, 4
      %v1446 = vrot.slane %v1086, 5
      %v1447 = vor.u32 %v1445, %v1446
      %v1448 = vrot.slane %v1447, 4
      %v1449 = vrot.slane %v1095, 5
      %v1450 = vsel %vm804, %v1448, %v1449
      %v1451 = vrot.slane %v1092, 4
      %v1452 = vor.u32 %v1451, %v1449
      %v1453 = vrot.slane %v1452, 4
      %v1455 = vshll.u32 %v1429, 16
      %v1457 = vrot.slane %v1455, 5
      %v1458 = vsel %vm804, %v1453, %v1457
      %v1459 = vrot.slane %v1105, 4
      %v1460 = vrot.slane %v1108, 5
      %v1461 = vor.u32 %v1459, %v1460
      %v1462 = vrot.slane %v1461, 4
      %v1463 = vrot.slane %v1117, 5
      %v1464 = vsel %vm804, %v1462, %v1463
      %v1465 = vrot.slane %v1114, 4
      %v1466 = vor.u32 %v1465, %v1463
      %v1467 = vrot.slane %v1466, 4
      %v1469 = vshll.u32 %v1430, 16
      %v1471 = vrot.slane %v1469, 5
      %v1472 = vsel %vm804, %v1467, %v1471
      %v1473 = vrot.slane %v1127, 4
      %v1474 = vrot.slane %v1130, 5
      %v1475 = vor.u32 %v1473, %v1474
      %v1476 = vrot.slane %v1475, 4
      %v1477 = vrot.slane %v1139, 5
      %v1478 = vsel %vm804, %v1476, %v1477
      %v1479 = vrot.slane %v1136, 4
      %v1480 = vor.u32 %v1479, %v1477
      %v1481 = vrot.slane %v1480, 4
      %v1483 = vshll.u32 %v1431, 16
      %v1485 = vrot.slane %v1483, 5
      %v1486 = vsel %vm804, %v1481, %v1485
      %v1487 = vrot.slane %v1149, 4
      %v1488 = vrot.slane %v1152, 5
      %v1489 = vor.u32 %v1487, %v1488
      %v1490 = vrot.slane %v1489, 4
      %v1491 = vrot.slane %v1161, 5
      %v1492 = vsel %vm804, %v1490, %v1491
      %v1493 = vrot.slane %v1158, 4
      %v1494 = vor.u32 %v1493, %v1491
      %v1495 = vrot.slane %v1494, 4
      %v1497 = vshll.u32 %v1432, 16
      %v1499 = vrot.slane %v1497, 5
      %v1500 = vsel %vm804, %v1495, %v1499
      %v1501 = vrot.slane %v1171, 4
      %v1502 = vrot.slane %v1174, 5
      %v1503 = vor.u32 %v1501, %v1502
      %v1504 = vrot.slane %v1503, 4
      %v1505 = vrot.slane %v1183, 5
      %v1506 = vsel %vm804, %v1504, %v1505
      %v1507 = vrot.slane %v1180, 4
      %v1508 = vor.u32 %v1507, %v1505
      %v1509 = vrot.slane %v1508, 4
      %v1511 = vshll.u32 %v1433, 16
      %v1513 = vrot.slane %v1511, 5
      %v1514 = vsel %vm804, %v1509, %v1513
      %v1515 = vrot.slane %v1193, 4
      %v1516 = vrot.slane %v1196, 5
      %v1517 = vor.u32 %v1515, %v1516
      %v1518 = vrot.slane %v1517, 4
      %v1519 = vrot.slane %v1205, 5
      %v1520 = vsel %vm804, %v1518, %v1519
      %v1521 = vrot.slane %v1202, 4
      %v1522 = vor.u32 %v1521, %v1519
      %v1523 = vrot.slane %v1522, 4
      %v1525 = vshll.u32 %v1434, 16
      %v1527 = vrot.slane %v1525, 5
      %v1528 = vsel %vm804, %v1523, %v1527
      %v1529 = vrot.slane %v1215, 4
      %v1530 = vrot.slane %v1218, 5
      %v1531 = vor.u32 %v1529, %v1530
      %v1532 = vrot.slane %v1531, 4
      %v1533 = vrot.slane %v1227, 5
      %v1534 = vsel %vm804, %v1532, %v1533
      %v1535 = vrot.slane %v1224, 4
      %v1536 = vor.u32 %v1535, %v1533
      %v1537 = vrot.slane %v1536, 4
      %v1539 = vshll.u32 %v1435, 16
      %v1541 = vrot.slane %v1539, 5
      %v1542 = vsel %vm804, %v1537, %v1541
      %v1543 = vrot.slane %v1237, 4
      %v1544 = vrot.slane %v1240, 5
      %v1545 = vor.u32 %v1543, %v1544
      %v1546 = vrot.slane %v1545, 4
      %v1547 = vrot.slane %v1249, 5
      %v1548 = vsel %vm804, %v1546, %v1547
      %v1549 = vrot.slane %v1246, 4
      %v1550 = vor.u32 %v1549, %v1547
      %v1551 = vrot.slane %v1550, 4
      %v1553 = vshll.u32 %v1436, 16
      %v1555 = vrot.slane %v1553, 5
      %v1556 = vsel %vm804, %v1551, %v1555
      %v1557 = vrot.slane %v1259, 4
      %v1558 = vrot.slane %v1262, 5
      %v1559 = vor.u32 %v1557, %v1558
      %v1560 = vrot.slane %v1559, 4
      %v1561 = vrot.slane %v1271, 5
      %v1562 = vsel %vm804, %v1560, %v1561
      %v1563 = vrot.slane %v1268, 4
      %v1564 = vor.u32 %v1563, %v1561
      %v1565 = vrot.slane %v1564, 4
      %v1567 = vshll.u32 %v1437, 16
      %v1569 = vrot.slane %v1567, 5
      %v1570 = vsel %vm804, %v1565, %v1569
      %v1571 = vrot.slane %v1281, 4
      %v1572 = vrot.slane %v1284, 5
      %v1573 = vor.u32 %v1571, %v1572
      %v1574 = vrot.slane %v1573, 4
      %v1575 = vrot.slane %v1293, 5
      %v1576 = vsel %vm804, %v1574, %v1575
      %v1577 = vrot.slane %v1290, 4
      %v1578 = vor.u32 %v1577, %v1575
      %v1579 = vrot.slane %v1578, 4
      %v1581 = vshll.u32 %v1438, 16
      %v1583 = vrot.slane %v1581, 5
      %v1584 = vsel %vm804, %v1579, %v1583
      %v1585 = vrot.slane %v1303, 4
      %v1586 = vrot.slane %v1306, 5
      %v1587 = vor.u32 %v1585, %v1586
      %v1588 = vrot.slane %v1587, 4
      %v1589 = vrot.slane %v1315, 5
      %v1590 = vsel %vm804, %v1588, %v1589
      %v1591 = vrot.slane %v1312, 4
      %v1592 = vor.u32 %v1591, %v1589
      %v1593 = vrot.slane %v1592, 4
      %v1595 = vshll.u32 %v1439, 16
      %v1597 = vrot.slane %v1595, 5
      %v1598 = vsel %vm804, %v1593, %v1597
      %v1599 = vrot.slane %v1325, 4
      %v1600 = vrot.slane %v1328, 5
      %v1601 = vor.u32 %v1599, %v1600
      %v1602 = vrot.slane %v1601, 4
      %v1603 = vrot.slane %v1337, 5
      %v1604 = vsel %vm804, %v1602, %v1603
      %v1605 = vrot.slane %v1334, 4
      %v1606 = vor.u32 %v1605, %v1603
      %v1607 = vrot.slane %v1606, 4
      %v1609 = vshll.u32 %v1440, 16
      %v1611 = vrot.slane %v1609, 5
      %v1612 = vsel %vm804, %v1607, %v1611
      %v1613 = vrot.slane %v1347, 4
      %v1614 = vrot.slane %v1350, 5
      %v1615 = vor.u32 %v1613, %v1614
      %v1616 = vrot.slane %v1615, 4
      %v1617 = vrot.slane %v1359, 5
      %v1618 = vsel %vm804, %v1616, %v1617
      %v1619 = vrot.slane %v1356, 4
      %v1620 = vor.u32 %v1619, %v1617
      %v1621 = vrot.slane %v1620, 4
      %v1623 = vshll.u32 %v1441, 16
      %v1625 = vrot.slane %v1623, 5
      %v1626 = vsel %vm804, %v1621, %v1625
      %v1627 = vrot.slane %v1369, 4
      %v1628 = vrot.slane %v1372, 5
      %v1629 = vor.u32 %v1627, %v1628
      %v1630 = vrot.slane %v1629, 4
      %v1631 = vrot.slane %v1381, 5
      %v1632 = vsel %vm804, %v1630, %v1631
      %v1633 = vrot.slane %v1378, 4
      %v1634 = vor.u32 %v1633, %v1631
      %v1635 = vrot.slane %v1634, 4
      %v1637 = vshll.u32 %v1442, 16
      %v1639 = vrot.slane %v1637, 5
      %v1640 = vsel %vm804, %v1635, %v1639
      %v1641 = vrot.slane %v1391, 4
      %v1642 = vrot.slane %v1394, 5
      %v1643 = vor.u32 %v1641, %v1642
      %v1644 = vrot.slane %v1643, 4
      %v1645 = vrot.slane %v1403, 5
      %v1646 = vsel %vm804, %v1644, %v1645
      %v1647 = vrot.slane %v1400, 4
      %v1648 = vor.u32 %v1647, %v1645
      %v1649 = vrot.slane %v1648, 4
      %v1651 = vshll.u32 %v1443, 16
      %v1653 = vrot.slane %v1651, 5
      %v1654 = vsel %vm804, %v1649, %v1653
      %v1655 = vrot.slane %v1413, 4
      %v1656 = vrot.slane %v1416, 5
      %v1657 = vor.u32 %v1655, %v1656
      %v1658 = vrot.slane %v1657, 4
      %v1659 = vrot.slane %v1425, 5
      %v1660 = vsel %vm804, %v1658, %v1659
      %v1661 = vrot.slane %v1422, 4
      %v1662 = vor.u32 %v1661, %v1659
      %v1663 = vrot.slane %v1662, 4
      %v1665 = vshll.u32 %v1444, 16
      %v1667 = vrot.slane %v1665, 5
      %v1668 = vsel %vm804, %v1663, %v1667
      %s1669 = scalar_lea.vmem [#allocation2], 32
      %v1670 = vld [vmem:[%s1669] sm:$0x8]
      %v1671 = vld [vmem:[%s1669 + $0x4] sm:$0xf]
      %v1672 = vld [vmem:[%s1669 + $0x8] sm:$0xf]
      %v1673 = vld [vmem:[%s1669 + $0x10] sm:$0x8]
      %v1674 = vld [vmem:[%s1669 + $0x14] sm:$0xf]
      %v1675 = vld [vmem:[%s1669 + $0x18] sm:$0xf]
      %v1676 = vld [vmem:[%s1669 + $0x20] sm:$0x8]
      %v1677 = vld [vmem:[%s1669 + $0x24] sm:$0xf]
      %v1678 = vld [vmem:[%s1669 + $0x28] sm:$0xf]
      %v1679 = vld [vmem:[%s1669 + $0x30] sm:$0x8]
      %v1680 = vld [vmem:[%s1669 + $0x34] sm:$0xf]
      %v1681 = vld [vmem:[%s1669 + $0x38] sm:$0xf]
      %v1682 = vld [vmem:[%s1669 + $0x40] sm:$0x8]
      %v1683 = vld [vmem:[%s1669 + $0x44] sm:$0xf]
      %v1684 = vld [vmem:[%s1669 + $0x48] sm:$0xf]
      %v1685 = vld [vmem:[%s1669 + $0x50] sm:$0x8]
      %v1686 = vld [vmem:[%s1669 + $0x54] sm:$0xf]
      %v1687 = vld [vmem:[%s1669 + $0x58] sm:$0xf]
      %v1688 = vld [vmem:[%s1669 + $0x60] sm:$0x8]
      %v1689 = vld [vmem:[%s1669 + $0x64] sm:$0xf]
      %v1690 = vld [vmem:[%s1669 + $0x68] sm:$0xf]
      %v1691 = vld [vmem:[%s1669 + $0x70] sm:$0x8]
      %v1692 = vld [vmem:[%s1669 + $0x74] sm:$0xf]
      %v1693 = vld [vmem:[%s1669 + $0x78] sm:$0xf]
      %v1694 = vld [vmem:[%s1669 + $0x80] sm:$0x8]
      %v1695 = vld [vmem:[%s1669 + $0x84] sm:$0xf]
      %v1696 = vld [vmem:[%s1669 + $0x88] sm:$0xf]
      %v1697 = vld [vmem:[%s1669 + $0x90] sm:$0x8]
      %v1698 = vld [vmem:[%s1669 + $0x94] sm:$0xf]
      %v1699 = vld [vmem:[%s1669 + $0x98] sm:$0xf]
      %v1700 = vld [vmem:[%s1669 + $0xa0] sm:$0x8]
      %v1701 = vld [vmem:[%s1669 + $0xa4] sm:$0xf]
      %v1702 = vld [vmem:[%s1669 + $0xa8] sm:$0xf]
      %v1703 = vld [vmem:[%s1669 + $0xb0] sm:$0x8]
      %v1704 = vld [vmem:[%s1669 + $0xb4] sm:$0xf]
      %v1705 = vld [vmem:[%s1669 + $0xb8] sm:$0xf]
      %v1706 = vld [vmem:[%s1669 + $0xc0] sm:$0x8]
      %v1707 = vld [vmem:[%s1669 + $0xc4] sm:$0xf]
      %v1708 = vld [vmem:[%s1669 + $0xc8] sm:$0xf]
      %v1709 = vld [vmem:[%s1669 + $0xd0] sm:$0x8]
      %v1710 = vld [vmem:[%s1669 + $0xd4] sm:$0xf]
      %v1711 = vld [vmem:[%s1669 + $0xd8] sm:$0xf]
      %v1712 = vld [vmem:[%s1669 + $0xe0] sm:$0x8]
      %v1713 = vld [vmem:[%s1669 + $0xe4] sm:$0xf]
      %v1714 = vld [vmem:[%s1669 + $0xe8] sm:$0xf]
      %v1715 = vld [vmem:[%s1669 + $0xf0] sm:$0x8]
      %v1716 = vld [vmem:[%s1669 + $0xf4] sm:$0xf]
      %v1717 = vld [vmem:[%s1669 + $0xf8] sm:$0xf]
      %v1719 = vshrl.u32 %v1670, 16
      %v1721 = vrot.slane %v1719, 7
      %v1722 = vrot.slane %v1721, 4
      %v1724 = vshrl.u32 %v1671, 16
      %v1726 = vrot.slane %v1724, 7
      %v1727 = vshll.u32 %v1671, 16
      %v1729 = vor.u32 %v1726, %v1727
      %v1730 = vsel %vm433, %v1722, %v1729
      %v1731 = vrot.slane %v1726, 4
      %v1733 = vshrl.u32 %v1672, 16
      %v1735 = vrot.slane %v1733, 7
      %v1736 = vshll.u32 %v1672, 16
      %v1738 = vor.u32 %v1735, %v1736
      %v1739 = vsel %vm433, %v1731, %v1738
      %v1741 = vshrl.u32 %v1673, 16
      %v1743 = vrot.slane %v1741, 7
      %v1744 = vrot.slane %v1743, 4
      %v1746 = vshrl.u32 %v1674, 16
      %v1748 = vrot.slane %v1746, 7
      %v1749 = vshll.u32 %v1674, 16
      %v1751 = vor.u32 %v1748, %v1749
      %v1752 = vsel %vm433, %v1744, %v1751
      %v1753 = vrot.slane %v1748, 4
      %v1755 = vshrl.u32 %v1675, 16
      %v1757 = vrot.slane %v1755, 7
      %v1758 = vshll.u32 %v1675, 16
      %v1760 = vor.u32 %v1757, %v1758
      %v1761 = vsel %vm433, %v1753, %v1760
      %v1763 = vshrl.u32 %v1676, 16
      %v1765 = vrot.slane %v1763, 7
      %v1766 = vrot.slane %v1765, 4
      %v1768 = vshrl.u32 %v1677, 16
      %v1770 = vrot.slane %v1768, 7
      %v1771 = vshll.u32 %v1677, 16
      %v1773 = vor.u32 %v1770, %v1771
      %v1774 = vsel %vm433, %v1766, %v1773
      %v1775 = vrot.slane %v1770, 4
      %v1777 = vshrl.u32 %v1678, 16
      %v1779 = vrot.slane %v1777, 7
      %v1780 = vshll.u32 %v1678, 16
      %v1782 = vor.u32 %v1779, %v1780
      %v1783 = vsel %vm433, %v1775, %v1782
      %v1785 = vshrl.u32 %v1679, 16
      %v1787 = vrot.slane %v1785, 7
      %v1788 = vrot.slane %v1787, 4
      %v1790 = vshrl.u32 %v1680, 16
      %v1792 = vrot.slane %v1790, 7
      %v1793 = vshll.u32 %v1680, 16
      %v1795 = vor.u32 %v1792, %v1793
      %v1796 = vsel %vm433, %v1788, %v1795
      %v1797 = vrot.slane %v1792, 4
      %v1799 = vshrl.u32 %v1681, 16
      %v1801 = vrot.slane %v1799, 7
      %v1802 = vshll.u32 %v1681, 16
      %v1804 = vor.u32 %v1801, %v1802
      %v1805 = vsel %vm433, %v1797, %v1804
      %v1807 = vshrl.u32 %v1682, 16
      %v1809 = vrot.slane %v1807, 7
      %v1810 = vrot.slane %v1809, 4
      %v1812 = vshrl.u32 %v1683, 16
      %v1814 = vrot.slane %v1812, 7
      %v1815 = vshll.u32 %v1683, 16
      %v1817 = vor.u32 %v1814, %v1815
      %v1818 = vsel %vm433, %v1810, %v1817
      %v1819 = vrot.slane %v1814, 4
      %v1821 = vshrl.u32 %v1684, 16
      %v1823 = vrot.slane %v1821, 7
      %v1824 = vshll.u32 %v1684, 16
      %v1826 = vor.u32 %v1823, %v1824
      %v1827 = vsel %vm433, %v1819, %v1826
      %v1829 = vshrl.u32 %v1685, 16
      %v1831 = vrot.slane %v1829, 7
      %v1832 = vrot.slane %v1831, 4
      %v1834 = vshrl.u32 %v1686, 16
      %v1836 = vrot.slane %v1834, 7
      %v1837 = vshll.u32 %v1686, 16
      %v1839 = vor.u32 %v1836, %v1837
      %v1840 = vsel %vm433, %v1832, %v1839
      %v1841 = vrot.slane %v1836, 4
      %v1843 = vshrl.u32 %v1687, 16
      %v1845 = vrot.slane %v1843, 7
      %v1846 = vshll.u32 %v1687, 16
      %v1848 = vor.u32 %v1845, %v1846
      %v1849 = vsel %vm433, %v1841, %v1848
      %v1851 = vshrl.u32 %v1688, 16
      %v1853 = vrot.slane %v1851, 7
      %v1854 = vrot.slane %v1853, 4
      %v1856 = vshrl.u32 %v1689, 16
      %v1858 = vrot.slane %v1856, 7
      %v1859 = vshll.u32 %v1689, 16
      %v1861 = vor.u32 %v1858, %v1859
      %v1862 = vsel %vm433, %v1854, %v1861
      %v1863 = vrot.slane %v1858, 4
      %v1865 = vshrl.u32 %v1690, 16
      %v1867 = vrot.slane %v1865, 7
      %v1868 = vshll.u32 %v1690, 16
      %v1870 = vor.u32 %v1867, %v1868
      %v1871 = vsel %vm433, %v1863, %v1870
      %v1873 = vshrl.u32 %v1691, 16
      %v1875 = vrot.slane %v1873, 7
      %v1876 = vrot.slane %v1875, 4
      %v1878 = vshrl.u32 %v1692, 16
      %v1880 = vrot.slane %v1878, 7
      %v1881 = vshll.u32 %v1692, 16
      %v1883 = vor.u32 %v1880, %v1881
      %v1884 = vsel %vm433, %v1876, %v1883
      %v1885 = vrot.slane %v1880, 4
      %v1887 = vshrl.u32 %v1693, 16
      %v1889 = vrot.slane %v1887, 7
      %v1890 = vshll.u32 %v1693, 16
      %v1892 = vor.u32 %v1889, %v1890
      %v1893 = vsel %vm433, %v1885, %v1892
      %v1895 = vshrl.u32 %v1694, 16
      %v1897 = vrot.slane %v1895, 7
      %v1898 = vrot.slane %v1897, 4
      %v1900 = vshrl.u32 %v1695, 16
      %v1902 = vrot.slane %v1900, 7
      %v1903 = vshll.u32 %v1695, 16
      %v1905 = vor.u32 %v1902, %v1903
      %v1906 = vsel %vm433, %v1898, %v1905
      %v1907 = vrot.slane %v1902, 4
      %v1909 = vshrl.u32 %v1696, 16
      %v1911 = vrot.slane %v1909, 7
      %v1912 = vshll.u32 %v1696, 16
      %v1914 = vor.u32 %v1911, %v1912
      %v1915 = vsel %vm433, %v1907, %v1914
      %v1917 = vshrl.u32 %v1697, 16
      %v1919 = vrot.slane %v1917, 7
      %v1920 = vrot.slane %v1919, 4
      %v1922 = vshrl.u32 %v1698, 16
      %v1924 = vrot.slane %v1922, 7
      %v1925 = vshll.u32 %v1698, 16
      %v1927 = vor.u32 %v1924, %v1925
      %v1928 = vsel %vm433, %v1920, %v1927
      %v1929 = vrot.slane %v1924, 4
      %v1931 = vshrl.u32 %v1699, 16
      %v1933 = vrot.slane %v1931, 7
      %v1934 = vshll.u32 %v1699, 16
      %v1936 = vor.u32 %v1933, %v1934
      %v1937 = vsel %vm433, %v1929, %v1936
      %v1939 = vshrl.u32 %v1700, 16
      %v1941 = vrot.slane %v1939, 7
      %v1942 = vrot.slane %v1941, 4
      %v1944 = vshrl.u32 %v1701, 16
      %v1946 = vrot.slane %v1944, 7
      %v1947 = vshll.u32 %v1701, 16
      %v1949 = vor.u32 %v1946, %v1947
      %v1950 = vsel %vm433, %v1942, %v1949
      %v1951 = vrot.slane %v1946, 4
      %v1953 = vshrl.u32 %v1702, 16
      %v1955 = vrot.slane %v1953, 7
      %v1956 = vshll.u32 %v1702, 16
      %v1958 = vor.u32 %v1955, %v1956
      %v1959 = vsel %vm433, %v1951, %v1958
      %v1961 = vshrl.u32 %v1703, 16
      %v1963 = vrot.slane %v1961, 7
      %v1964 = vrot.slane %v1963, 4
      %v1966 = vshrl.u32 %v1704, 16
      %v1968 = vrot.slane %v1966, 7
      %v1969 = vshll.u32 %v1704, 16
      %v1971 = vor.u32 %v1968, %v1969
      %v1972 = vsel %vm433, %v1964, %v1971
      %v1973 = vrot.slane %v1968, 4
      %v1975 = vshrl.u32 %v1705, 16
      %v1977 = vrot.slane %v1975, 7
      %v1978 = vshll.u32 %v1705, 16
      %v1980 = vor.u32 %v1977, %v1978
      %v1981 = vsel %vm433, %v1973, %v1980
      %v1983 = vshrl.u32 %v1706, 16
      %v1985 = vrot.slane %v1983, 7
      %v1986 = vrot.slane %v1985, 4
      %v1988 = vshrl.u32 %v1707, 16
      %v1990 = vrot.slane %v1988, 7
      %v1991 = vshll.u32 %v1707, 16
      %v1993 = vor.u32 %v1990, %v1991
      %v1994 = vsel %vm433, %v1986, %v1993
      %v1995 = vrot.slane %v1990, 4
      %v1997 = vshrl.u32 %v1708, 16
      %v1999 = vrot.slane %v1997, 7
      %v2000 = vshll.u32 %v1708, 16
      %v2002 = vor.u32 %v1999, %v2000
      %v2003 = vsel %vm433, %v1995, %v2002
      %v2005 = vshrl.u32 %v1709, 16
      %v2007 = vrot.slane %v2005, 7
      %v2008 = vrot.slane %v2007, 4
      %v2010 = vshrl.u32 %v1710, 16
      %v2012 = vrot.slane %v2010, 7
      %v2013 = vshll.u32 %v1710, 16
      %v2015 = vor.u32 %v2012, %v2013
      %v2016 = vsel %vm433, %v2008, %v2015
      %v2017 = vrot.slane %v2012, 4
      %v2019 = vshrl.u32 %v1711, 16
      %v2021 = vrot.slane %v2019, 7
      %v2022 = vshll.u32 %v1711, 16
      %v2024 = vor.u32 %v2021, %v2022
      %v2025 = vsel %vm433, %v2017, %v2024
      %v2027 = vshrl.u32 %v1712, 16
      %v2029 = vrot.slane %v2027, 7
      %v2030 = vrot.slane %v2029, 4
      %v2032 = vshrl.u32 %v1713, 16
      %v2034 = vrot.slane %v2032, 7
      %v2035 = vshll.u32 %v1713, 16
      %v2037 = vor.u32 %v2034, %v2035
      %v2038 = vsel %vm433, %v2030, %v2037
      %v2039 = vrot.slane %v2034, 4
      %v2041 = vshrl.u32 %v1714, 16
      %v2043 = vrot.slane %v2041, 7
      %v2044 = vshll.u32 %v1714, 16
      %v2046 = vor.u32 %v2043, %v2044
      %v2047 = vsel %vm433, %v2039, %v2046
      %v2049 = vshrl.u32 %v1715, 16
      %v2051 = vrot.slane %v2049, 7
      %v2052 = vrot.slane %v2051, 4
      %v2054 = vshrl.u32 %v1716, 16
      %v2056 = vrot.slane %v2054, 7
      %v2057 = vshll.u32 %v1716, 16
      %v2059 = vor.u32 %v2056, %v2057
      %v2060 = vsel %vm433, %v2052, %v2059
      %v2061 = vrot.slane %v2056, 4
      %v2063 = vshrl.u32 %v1717, 16
      %v2065 = vrot.slane %v2063, 7
      %v2066 = vshll.u32 %v1717, 16
      %v2068 = vor.u32 %v2065, %v2066
      %v2069 = vsel %vm433, %v2061, %v2068
      %v2070 = vld [vmem:[%s1669 + $0xc] sm:$0x1]
      %v2071 = vld [vmem:[%s1669 + $0x1c] sm:$0x1]
      %v2072 = vld [vmem:[%s1669 + $0x2c] sm:$0x1]
      %v2073 = vld [vmem:[%s1669 + $0x3c] sm:$0x1]
      %v2074 = vld [vmem:[%s1669 + $0x4c] sm:$0x1]
      %v2075 = vld [vmem:[%s1669 + $0x5c] sm:$0x1]
      %v2076 = vld [vmem:[%s1669 + $0x6c] sm:$0x1]
      %v2077 = vld [vmem:[%s1669 + $0x7c] sm:$0x1]
      %v2078 = vld [vmem:[%s1669 + $0x8c] sm:$0x1]
      %v2079 = vld [vmem:[%s1669 + $0x9c] sm:$0x1]
      %v2080 = vld [vmem:[%s1669 + $0xac] sm:$0x1]
      %v2081 = vld [vmem:[%s1669 + $0xbc] sm:$0x1]
      %v2082 = vld [vmem:[%s1669 + $0xcc] sm:$0x1]
      %v2083 = vld [vmem:[%s1669 + $0xdc] sm:$0x1]
      %v2084 = vld [vmem:[%s1669 + $0xec] sm:$0x1]
      %v2085 = vld [vmem:[%s1669 + $0xfc] sm:$0x1]
      %v2086 = vrot.slane %v1724, 4
      %v2087 = vrot.slane %v1727, 5
      %v2088 = vor.u32 %v2086, %v2087
      %v2089 = vrot.slane %v2088, 4
      %v2090 = vrot.slane %v1736, 5
      %v2091 = vsel %vm804, %v2089, %v2090
      %v2092 = vrot.slane %v1733, 4
      %v2093 = vor.u32 %v2092, %v2090
      %v2094 = vrot.slane %v2093, 4
      %v2096 = vshll.u32 %v2070, 16
      %v2098 = vrot.slane %v2096, 5
      %v2099 = vsel %vm804, %v2094, %v2098
      %v2100 = vrot.slane %v1746, 4
      %v2101 = vrot.slane %v1749, 5
      %v2102 = vor.u32 %v2100, %v2101
      %v2103 = vrot.slane %v2102, 4
      %v2104 = vrot.slane %v1758, 5
      %v2105 = vsel %vm804, %v2103, %v2104
      %v2106 = vrot.slane %v1755, 4
      %v2107 = vor.u32 %v2106, %v2104
      %v2108 = vrot.slane %v2107, 4
      %v2110 = vshll.u32 %v2071, 16
      %v2112 = vrot.slane %v2110, 5
      %v2113 = vsel %vm804, %v2108, %v2112
      %v2114 = vrot.slane %v1768, 4
      %v2115 = vrot.slane %v1771, 5
      %v2116 = vor.u32 %v2114, %v2115
      %v2117 = vrot.slane %v2116, 4
      %v2118 = vrot.slane %v1780, 5
      %v2119 = vsel %vm804, %v2117, %v2118
      %v2120 = vrot.slane %v1777, 4
      %v2121 = vor.u32 %v2120, %v2118
      %v2122 = vrot.slane %v2121, 4
      %v2124 = vshll.u32 %v2072, 16
      %v2126 = vrot.slane %v2124, 5
      %v2127 = vsel %vm804, %v2122, %v2126
      %v2128 = vrot.slane %v1790, 4
      %v2129 = vrot.slane %v1793, 5
      %v2130 = vor.u32 %v2128, %v2129
      %v2131 = vrot.slane %v2130, 4
      %v2132 = vrot.slane %v1802, 5
      %v2133 = vsel %vm804, %v2131, %v2132
      %v2134 = vrot.slane %v1799, 4
      %v2135 = vor.u32 %v2134, %v2132
      %v2136 = vrot.slane %v2135, 4
      %v2138 = vshll.u32 %v2073, 16
      %v2140 = vrot.slane %v2138, 5
      %v2141 = vsel %vm804, %v2136, %v2140
      %v2142 = vrot.slane %v1812, 4
      %v2143 = vrot.slane %v1815, 5
      %v2144 = vor.u32 %v2142, %v2143
      %v2145 = vrot.slane %v2144, 4
      %v2146 = vrot.slane %v1824, 5
      %v2147 = vsel %vm804, %v2145, %v2146
      %v2148 = vrot.slane %v1821, 4
      %v2149 = vor.u32 %v2148, %v2146
      %v2150 = vrot.slane %v2149, 4
      %v2152 = vshll.u32 %v2074, 16
      %v2154 = vrot.slane %v2152, 5
      %v2155 = vsel %vm804, %v2150, %v2154
      %v2156 = vrot.slane %v1834, 4
      %v2157 = vrot.slane %v1837, 5
      %v2158 = vor.u32 %v2156, %v2157
      %v2159 = vrot.slane %v2158, 4
      %v2160 = vrot.slane %v1846, 5
      %v2161 = vsel %vm804, %v2159, %v2160
      %v2162 = vrot.slane %v1843, 4
      %v2163 = vor.u32 %v2162, %v2160
      %v2164 = vrot.slane %v2163, 4
      %v2166 = vshll.u32 %v2075, 16
      %v2168 = vrot.slane %v2166, 5
      %v2169 = vsel %vm804, %v2164, %v2168
      %v2170 = vrot.slane %v1856, 4
      %v2171 = vrot.slane %v1859, 5
      %v2172 = vor.u32 %v2170, %v2171
      %v2173 = vrot.slane %v2172, 4
      %v2174 = vrot.slane %v1868, 5
      %v2175 = vsel %vm804, %v2173, %v2174
      %v2176 = vrot.slane %v1865, 4
      %v2177 = vor.u32 %v2176, %v2174
      %v2178 = vrot.slane %v2177, 4
      %v2180 = vshll.u32 %v2076, 16
      %v2182 = vrot.slane %v2180, 5
      %v2183 = vsel %vm804, %v2178, %v2182
      %v2184 = vrot.slane %v1878, 4
      %v2185 = vrot.slane %v1881, 5
      %v2186 = vor.u32 %v2184, %v2185
      %v2187 = vrot.slane %v2186, 4
      %v2188 = vrot.slane %v1890, 5
      %v2189 = vsel %vm804, %v2187, %v2188
      %v2190 = vrot.slane %v1887, 4
      %v2191 = vor.u32 %v2190, %v2188
      %v2192 = vrot.slane %v2191, 4
      %v2194 = vshll.u32 %v2077, 16
      %v2196 = vrot.slane %v2194, 5
      %v2197 = vsel %vm804, %v2192, %v2196
      %v2198 = vrot.slane %v1900, 4
      %v2199 = vrot.slane %v1903, 5
      %v2200 = vor.u32 %v2198, %v2199
      %v2201 = vrot.slane %v2200, 4
      %v2202 = vrot.slane %v1912, 5
      %v2203 = vsel %vm804, %v2201, %v2202
      %v2204 = vrot.slane %v1909, 4
      %v2205 = vor.u32 %v2204, %v2202
      %v2206 = vrot.slane %v2205, 4
      %v2208 = vshll.u32 %v2078, 16
      %v2210 = vrot.slane %v2208, 5
      %v2211 = vsel %vm804, %v2206, %v2210
      %v2212 = vrot.slane %v1922, 4
      %v2213 = vrot.slane %v1925, 5
      %v2214 = vor.u32 %v2212, %v2213
      %v2215 = vrot.slane %v2214, 4
      %v2216 = vrot.slane %v1934, 5
      %v2217 = vsel %vm804, %v2215, %v2216
      %v2218 = vrot.slane %v1931, 4
      %v2219 = vor.u32 %v2218, %v2216
      %v2220 = vrot.slane %v2219, 4
      %v2222 = vshll.u32 %v2079, 16
      %v2224 = vrot.slane %v2222, 5
      %v2225 = vsel %vm804, %v2220, %v2224
      %v2226 = vrot.slane %v1944, 4
      %v2227 = vrot.slane %v1947, 5
      %v2228 = vor.u32 %v2226, %v2227
      %v2229 = vrot.slane %v2228, 4
      %v2230 = vrot.slane %v1956, 5
      %v2231 = vsel %vm804, %v2229, %v2230
      %v2232 = vrot.slane %v1953, 4
      %v2233 = vor.u32 %v2232, %v2230
      %v2234 = vrot.slane %v2233, 4
      %v2236 = vshll.u32 %v2080, 16
      %v2238 = vrot.slane %v2236, 5
      %v2239 = vsel %vm804, %v2234, %v2238
      %v2240 = vrot.slane %v1966, 4
      %v2241 = vrot.slane %v1969, 5
      %v2242 = vor.u32 %v2240, %v2241
      %v2243 = vrot.slane %v2242, 4
      %v2244 = vrot.slane %v1978, 5
      %v2245 = vsel %vm804, %v2243, %v2244
      %v2246 = vrot.slane %v1975, 4
      %v2247 = vor.u32 %v2246, %v2244
      %v2248 = vrot.slane %v2247, 4
      %v2250 = vshll.u32 %v2081, 16
      %v2252 = vrot.slane %v2250, 5
      %v2253 = vsel %vm804, %v2248, %v2252
      %v2254 = vrot.slane %v1988, 4
      %v2255 = vrot.slane %v1991, 5
      %v2256 = vor.u32 %v2254, %v2255
      %v2257 = vrot.slane %v2256, 4
      %v2258 = vrot.slane %v2000, 5
      %v2259 = vsel %vm804, %v2257, %v2258
      %v2260 = vrot.slane %v1997, 4
      %v2261 = vor.u32 %v2260, %v2258
      %v2262 = vrot.slane %v2261, 4
      %v2264 = vshll.u32 %v2082, 16
      %v2266 = vrot.slane %v2264, 5
      %v2267 = vsel %vm804, %v2262, %v2266
      %v2268 = vrot.slane %v2010, 4
      %v2269 = vrot.slane %v2013, 5
      %v2270 = vor.u32 %v2268, %v2269
      %v2271 = vrot.slane %v2270, 4
      %v2272 = vrot.slane %v2022, 5
      %v2273 = vsel %vm804, %v2271, %v2272
      %v2274 = vrot.slane %v2019, 4
      %v2275 = vor.u32 %v2274, %v2272
      %v2276 = vrot.slane %v2275, 4
      %v2278 = vshll.u32 %v2083, 16
      %v2280 = vrot.slane %v2278, 5
      %v2281 = vsel %vm804, %v2276, %v2280
      %v2282 = vrot.slane %v2032, 4
      %v2283 = vrot.slane %v2035, 5
      %v2284 = vor.u32 %v2282, %v2283
      %v2285 = vrot.slane %v2284, 4
      %v2286 = vrot.slane %v2044, 5
      %v2287 = vsel %vm804, %v2285, %v2286
      %v2288 = vrot.slane %v2041, 4
      %v2289 = vor.u32 %v2288, %v2286
      %v2290 = vrot.slane %v2289, 4
      %v2292 = vshll.u32 %v2084, 16
      %v2294 = vrot.slane %v2292, 5
      %v2295 = vsel %vm804, %v2290, %v2294
      %v2296 = vrot.slane %v2054, 4
      %v2297 = vrot.slane %v2057, 5
      %v2298 = vor.u32 %v2296, %v2297
      %v2299 = vrot.slane %v2298, 4
      %v2300 = vrot.slane %v2066, 5
      %v2301 = vsel %vm804, %v2299, %v2300
      %v2302 = vrot.slane %v2063, 4
      %v2303 = vor.u32 %v2302, %v2300
      %v2304 = vrot.slane %v2303, 4
      %v2306 = vshll.u32 %v2085, 16
      %v2308 = vrot.slane %v2306, 5
      %v2309 = vsel %vm804, %v2304, %v2308
      %v2310 = vld [vmem:[%s1] sm:$0x3]
      %v2311 = vld [vmem:[%s1] sm:$0xc]
      %v2344 = vunpack.c.l.b16 %v385
      %v2345 = vunpack.c.l.b16 %v386
      %v2346 = vunpack.c.l.b16 %v388
      %v2347 = vunpack.c.l.b16 %v389
      %v2348 = vunpack.c.l.b16 %v391
      %v2349 = vunpack.c.l.b16 %v392
      %v2350 = vunpack.c.l.b16 %v394
      %v2351 = vunpack.c.l.b16 %v395
      %v2352 = vunpack.c.l.b16 %v397
      %v2353 = vunpack.c.l.b16 %v398
      %v2354 = vunpack.c.l.b16 %v400
      %v2355 = vunpack.c.l.b16 %v401
      %v2356 = vunpack.c.l.b16 %v403
      %v2357 = vunpack.c.l.b16 %v404
      %v2358 = vunpack.c.l.b16 %v406
      %v2359 = vunpack.c.l.b16 %v407
      %v2360 = vunpack.c.l.b16 %v409
      %v2361 = vunpack.c.l.b16 %v410
      %v2362 = vunpack.c.l.b16 %v412
      %v2363 = vunpack.c.l.b16 %v413
      %v2364 = vunpack.c.l.b16 %v415
      %v2365 = vunpack.c.l.b16 %v416
      %v2366 = vunpack.c.l.b16 %v418
      %v2367 = vunpack.c.l.b16 %v419
      %v2368 = vunpack.c.l.b16 %v421
      %v2369 = vunpack.c.l.b16 %v422
      %v2370 = vunpack.c.l.b16 %v424
      %v2371 = vunpack.c.l.b16 %v425
      %v2372 = vunpack.c.l.b16 %v427
      %v2373 = vunpack.c.l.b16 %v428
      %v2374 = vunpack.c.l.b16 %v430
      %v2375 = vunpack.c.l.b16 %v431
      %v2376 = vpack.c.b16 %v2345, %v2344
      %v2377 = vpack.c.b16 %v2347, %v2346
      %v2378 = vpack.c.b16 %v2349, %v2348
      %v2379 = vpack.c.b16 %v2351, %v2350
      %v2380 = vpack.c.b16 %v2353, %v2352
      %v2381 = vpack.c.b16 %v2355, %v2354
      %v2382 = vpack.c.b16 %v2357, %v2356
      %v2383 = vpack.c.b16 %v2359, %v2358
      %v2384 = vpack.c.b16 %v2361, %v2360
      %v2385 = vpack.c.b16 %v2363, %v2362
      %v2386 = vpack.c.b16 %v2365, %v2364
      %v2387 = vpack.c.b16 %v2367, %v2366
      %v2388 = vpack.c.b16 %v2369, %v2368
      %v2389 = vpack.c.b16 %v2371, %v2370
      %v2390 = vpack.c.b16 %v2373, %v2372
      %v2391 = vpack.c.b16 %v2375, %v2374
      %v2393 = vunpack.c.l.b16 %v2311
      %v2394 = vpack.c.b16 %v2393, %v2393
      %v2395 = vrot.slane %v2394, 2
      %vm2396 = vcmask 31744
      %v2398 = vsel %vm2396, %v2376, 0
      %v2401 = vsel %vm2396, %v2377, 0
      %v2404 = vsel %vm2396, %v2378, 0
      %v2407 = vsel %vm2396, %v2379, 0
      %v2410 = vsel %vm2396, %v2380, 0
      %v2413 = vsel %vm2396, %v2381, 0
      %v2416 = vsel %vm2396, %v2382, 0
      %v2419 = vsel %vm2396, %v2383, 0
      %v2422 = vsel %vm2396, %v2384, 0
      %v2425 = vsel %vm2396, %v2385, 0
      %v2428 = vsel %vm2396, %v2386, 0
      %v2431 = vsel %vm2396, %v2387, 0
      %v2434 = vsel %vm2396, %v2388, 0
      %v2437 = vsel %vm2396, %v2389, 0
      %v2440 = vsel %vm2396, %v2390, 0
      %v2443 = vsel %vm2396, %v2391, 0
      %vm2445 = vcmask 1041408
      %v2447 = vsel %vm2445, %v2395, 0
      %2449 = vmatprep.subr.bf16.mxu0 0
      %2450 = vmatpush1.bf16.msra.mxu0 0
      %2451 = vmatprep.subr.bf16.mxu0 0
      %2452 = vmatpush1.bf16.msra.mxu0 0
      %2453 = vmatprep.subr.bf16.mxu0 0
      %2454 = vmatpush1.bf16.msra.mxu0 0
      %2455 = vmatprep.subr.bf16.mxu0 0
      %2456 = vmatpush1.bf16.msra.mxu0 0
      %2457 = vmatprep.subr.bf16.mxu0 0
      %2458 = vmatpush1.bf16.msra.mxu0 0
      %2459 = vmatprep.subr.bf16.mxu0 0
      %2460 = vmatpush1.bf16.msra.mxu0 0
      %2461 = vmatprep.subr.bf16.mxu0 0
      %2462 = vmatpush1.bf16.msra.mxu0 0
      %2463 = vmatprep.subr.bf16.mxu0 0
      %2464 = vmatpush1.bf16.msra.mxu0 %v2447
      %2465 = vmatprep.subr.bf16.mxu0 0
      %2466 = vmatpush2.bf16.msra.mxu0 0
      %2467 = vmatprep.subr.bf16.mxu0 0
      %2468 = vmatpush2.bf16.msra.mxu0 0
      %2469 = vmatprep.subr.bf16.mxu0 0
      %2470 = vmatpush2.bf16.msra.mxu0 0
      %2471 = vmatprep.subr.bf16.mxu0 0
      %2472 = vmatpush2.bf16.msra.mxu0 0
      %2473 = vmatprep.subr.bf16.mxu0 0
      %2474 = vmatpush2.bf16.msra.mxu0 0
      %2475 = vmatprep.subr.bf16.mxu0 0
      %2476 = vmatpush2.bf16.msra.mxu0 0
      %2477 = vmatprep.subr.bf16.mxu0 0
      %2478 = vmatpush2.bf16.msra.mxu0 0
      %2479 = vmatprep.subr.bf16.mxu0 0
      %2480 = vmatpush2.bf16.msra.mxu0 0
      %2481 = vmatprep.mubr.bf16.mxu0 0
      %2482 = vmatmul.mubr.bf16.gmra.mxu0 %v2398
      %v2483 = vpop.f32.mrf.mxu0
      %v2484 = vadd.f32 0.0, %v2483
      %v2485 = vpop.f32.mrf.mxu0
      %v2486 = vpop.f32.mrf.mxu0
      %v2487 = vadd.f32 0.0, %v2486
      %v2488 = vpop.f32.mrf.mxu0
      %2489 = vmatprep.mubr.bf16.mxu0 0
      %2490 = vmatmul.mubr.bf16.gmra.mxu0 %v2401
      %v2491 = vpop.f32.mrf.mxu0
      %v2492 = vadd.f32 0.0, %v2491
      %v2493 = vpop.f32.mrf.mxu0
      %v2494 = vpop.f32.mrf.mxu0
      %v2495 = vadd.f32 0.0, %v2494
      %v2496 = vpop.f32.mrf.mxu0
      %2497 = vmatprep.mubr.bf16.mxu0 0
      %2498 = vmatmul.mubr.bf16.gmra.mxu0 %v2404
      %v2499 = vpop.f32.mrf.mxu0
      %v2500 = vadd.f32 0.0, %v2499
      %v2501 = vpop.f32.mrf.mxu0
      %v2502 = vpop.f32.mrf.mxu0
      %v2503 = vadd.f32 0.0, %v2502
      %v2504 = vpop.f32.mrf.mxu0
      %2505 = vmatprep.mubr.bf16.mxu0 0
      %2506 = vmatmul.mubr.bf16.gmra.mxu0 %v2407
      %v2507 = vpop.f32.mrf.mxu0
      %v2508 = vadd.f32 0.0, %v2507
      %v2509 = vpop.f32.mrf.mxu0
      %v2510 = vpop.f32.mrf.mxu0
      %v2511 = vadd.f32 0.0, %v2510
      %v2512 = vpop.f32.mrf.mxu0
      %2513 = vmatprep.mubr.bf16.mxu0 0
      %2514 = vmatmul.mubr.bf16.gmra.mxu0 %v2410
      %v2515 = vpop.f32.mrf.mxu0
      %v2516 = vadd.f32 0.0, %v2515
      %v2517 = vpop.f32.mrf.mxu0
      %v2518 = vpop.f32.mrf.mxu0
      %v2519 = vadd.f32 0.0, %v2518
      %v2520 = vpop.f32.mrf.mxu0
      %2521 = vmatprep.mubr.bf16.mxu0 0
      %2522 = vmatmul.mubr.bf16.gmra.mxu0 %v2413
      %v2523 = vpop.f32.mrf.mxu0
      %v2524 = vadd.f32 0.0, %v2523
      %v2525 = vpop.f32.mrf.mxu0
      %v2526 = vpop.f32.mrf.mxu0
      %v2527 = vadd.f32 0.0, %v2526
      %v2528 = vpop.f32.mrf.mxu0
      %2529 = vmatprep.mubr.bf16.mxu0 0
      %2530 = vmatmul.mubr.bf16.gmra.mxu0 %v2416
      %v2531 = vpop.f32.mrf.mxu0
      %v2532 = vadd.f32 0.0, %v2531
      %v2533 = vpop.f32.mrf.mxu0
      %v2534 = vpop.f32.mrf.mxu0
      %v2535 = vadd.f32 0.0, %v2534
      %v2536 = vpop.f32.mrf.mxu0
      %2537 = vmatprep.mubr.bf16.mxu0 0
      %2538 = vmatmul.mubr.bf16.gmra.mxu0 %v2419
      %v2539 = vpop.f32.mrf.mxu0
      %v2540 = vadd.f32 0.0, %v2539
      %v2541 = vpop.f32.mrf.mxu0
      %v2542 = vpop.f32.mrf.mxu0
      %v2543 = vadd.f32 0.0, %v2542
      %v2544 = vpop.f32.mrf.mxu0
      %2545 = vmatprep.mubr.bf16.mxu0 0
      %2546 = vmatmul.mubr.bf16.gmra.mxu0 %v2422
      %v2547 = vpop.f32.mrf.mxu0
      %v2548 = vadd.f32 0.0, %v2547
      %v2549 = vpop.f32.mrf.mxu0
      %v2550 = vpop.f32.mrf.mxu0
      %v2551 = vadd.f32 0.0, %v2550
      %v2552 = vpop.f32.mrf.mxu0
      %2553 = vmatprep.mubr.bf16.mxu0 0
      %2554 = vmatmul.mubr.bf16.gmra.mxu0 %v2425
      %v2555 = vpop.f32.mrf.mxu0
      %v2556 = vadd.f32 0.0, %v2555
      %v2557 = vpop.f32.mrf.mxu0
      %v2558 = vpop.f32.mrf.mxu0
      %v2559 = vadd.f32 0.0, %v2558
      %v2560 = vpop.f32.mrf.mxu0
      %2561 = vmatprep.mubr.bf16.mxu0 0
      %2562 = vmatmul.mubr.bf16.gmra.mxu0 %v2428
      %v2563 = vpop.f32.mrf.mxu0
      %v2564 = vadd.f32 0.0, %v2563
      %v2565 = vpop.f32.mrf.mxu0
      %v2566 = vpop.f32.mrf.mxu0
      %v2567 = vadd.f32 0.0, %v2566
      %v2568 = vpop.f32.mrf.mxu0
      %2569 = vmatprep.mubr.bf16.mxu0 0
      %2570 = vmatmul.mubr.bf16.gmra.mxu0 %v2431
      %v2571 = vpop.f32.mrf.mxu0
      %v2572 = vadd.f32 0.0, %v2571
      %v2573 = vpop.f32.mrf.mxu0
      %v2574 = vpop.f32.mrf.mxu0
      %v2575 = vadd.f32 0.0, %v2574
      %v2576 = vpop.f32.mrf.mxu0
      %2577 = vmatprep.mubr.bf16.mxu0 0
      %2578 = vmatmul.mubr.bf16.gmra.mxu0 %v2434
      %v2579 = vpop.f32.mrf.mxu0
      %v2580 = vadd.f32 0.0, %v2579
      %v2581 = vpop.f32.mrf.mxu0
      %v2582 = vpop.f32.mrf.mxu0
      %v2583 = vadd.f32 0.0, %v2582
      %v2584 = vpop.f32.mrf.mxu0
      %2585 = vmatprep.mubr.bf16.mxu0 0
      %2586 = vmatmul.mubr.bf16.gmra.mxu0 %v2437
      %v2587 = vpop.f32.mrf.mxu0
      %v2588 = vadd.f32 0.0, %v2587
      %v2589 = vpop.f32.mrf.mxu0
      %v2590 = vpop.f32.mrf.mxu0
      %v2591 = vadd.f32 0.0, %v2590
      %v2592 = vpop.f32.mrf.mxu0
      %2593 = vmatprep.mubr.bf16.mxu0 0
      %2594 = vmatmul.mubr.bf16.gmra.mxu0 %v2440
      %v2595 = vpop.f32.mrf.mxu0
      %v2596 = vadd.f32 0.0, %v2595
      %v2597 = vpop.f32.mrf.mxu0
      %v2598 = vpop.f32.mrf.mxu0
      %v2599 = vadd.f32 0.0, %v2598
      %v2600 = vpop.f32.mrf.mxu0
      %2601 = vmatprep.mubr.bf16.mxu0 0
      %2602 = vmatmul.mubr.bf16.gmra.mxu0 %v2443
      %v2603 = vpop.f32.mrf.mxu0
      %v2604 = vadd.f32 0.0, %v2603
      %v2605 = vpop.f32.mrf.mxu0
      %v2606 = vpop.f32.mrf.mxu0
      %v2607 = vadd.f32 0.0, %v2606
      %v2608 = vpop.f32.mrf.mxu0
      %2609 = vdwg.mxu0
      %v2610 = vunpack.c.l.b16 %v446
      %v2611 = vunpack.c.l.b16 %v455
      %v2612 = vunpack.c.l.b16 %v468
      %v2613 = vunpack.c.l.b16 %v477
      %v2614 = vunpack.c.l.b16 %v490
      %v2615 = vunpack.c.l.b16 %v499
      %v2616 = vunpack.c.l.b16 %v512
      %v2617 = vunpack.c.l.b16 %v521
      %v2618 = vunpack.c.l.b16 %v534
      %v2619 = vunpack.c.l.b16 %v543
      %v2620 = vunpack.c.l.b16 %v556
      %v2621 = vunpack.c.l.b16 %v565
      %v2622 = vunpack.c.l.b16 %v578
      %v2623 = vunpack.c.l.b16 %v587
      %v2624 = vunpack.c.l.b16 %v600
      %v2625 = vunpack.c.l.b16 %v609
      %v2626 = vunpack.c.l.b16 %v622
      %v2627 = vunpack.c.l.b16 %v631
      %v2628 = vunpack.c.l.b16 %v644
      %v2629 = vunpack.c.l.b16 %v653
      %v2630 = vunpack.c.l.b16 %v666
      %v2631 = vunpack.c.l.b16 %v675
      %v2632 = vunpack.c.l.b16 %v688
      %v2633 = vunpack.c.l.b16 %v697
      %v2634 = vunpack.c.l.b16 %v710
      %v2635 = vunpack.c.l.b16 %v719
      %v2636 = vunpack.c.l.b16 %v732
      %v2637 = vunpack.c.l.b16 %v741
      %v2638 = vunpack.c.l.b16 %v754
      %v2639 = vunpack.c.l.b16 %v763
      %v2640 = vunpack.c.l.b16 %v776
      %v2641 = vunpack.c.l.b16 %v785
      %v2642 = vpack.c.b16 %v2611, %v2610
      %v2643 = vpack.c.b16 %v2613, %v2612
      %v2644 = vpack.c.b16 %v2615, %v2614
      %v2645 = vpack.c.b16 %v2617, %v2616
      %v2646 = vpack.c.b16 %v2619, %v2618
      %v2647 = vpack.c.b16 %v2621, %v2620
      %v2648 = vpack.c.b16 %v2623, %v2622
      %v2649 = vpack.c.b16 %v2625, %v2624
      %v2650 = vpack.c.b16 %v2627, %v2626
      %v2651 = vpack.c.b16 %v2629, %v2628
      %v2652 = vpack.c.b16 %v2631, %v2630
      %v2653 = vpack.c.b16 %v2633, %v2632
      %v2654 = vpack.c.b16 %v2635, %v2634
      %v2655 = vpack.c.b16 %v2637, %v2636
      %v2656 = vpack.c.b16 %v2639, %v2638
      %v2657 = vpack.c.b16 %v2641, %v2640
      %v2659 = vsel %vm2396, %v2642, 0
      %v2662 = vsel %vm2396, %v2643, 0
      %v2665 = vsel %vm2396, %v2644, 0
      %v2668 = vsel %vm2396, %v2645, 0
      %v2671 = vsel %vm2396, %v2646, 0
      %v2674 = vsel %vm2396, %v2647, 0
      %v2677 = vsel %vm2396, %v2648, 0
      %v2680 = vsel %vm2396, %v2649, 0
      %v2683 = vsel %vm2396, %v2650, 0
      %v2686 = vsel %vm2396, %v2651, 0
      %v2689 = vsel %vm2396, %v2652, 0
      %v2692 = vsel %vm2396, %v2653, 0
      %v2695 = vsel %vm2396, %v2654, 0
      %v2698 = vsel %vm2396, %v2655, 0
      %v2701 = vsel %vm2396, %v2656, 0
      %v2704 = vsel %vm2396, %v2657, 0
      %v2707 = vsel %vm2445, %v2310, 0
      %2709 = vmatprep.subr.bf16.mxu0 0
      %2710 = vmatpush1.bf16.msra.mxu0 0
      %2711 = vmatprep.subr.bf16.mxu0 0
      %2712 = vmatpush1.bf16.msra.mxu0 0
      %2713 = vmatprep.subr.bf16.mxu0 0
      %2714 = vmatpush1.bf16.msra.mxu0 0
      %2715 = vmatprep.subr.bf16.mxu0 0
      %2716 = vmatpush1.bf16.msra.mxu0 0
      %2717 = vmatprep.subr.bf16.mxu0 0
      %2718 = vmatpush1.bf16.msra.mxu0 0
      %2719 = vmatprep.subr.bf16.mxu0 0
      %2720 = vmatpush1.bf16.msra.mxu0 0
      %2721 = vmatprep.subr.bf16.mxu0 0
      %2722 = vmatpush1.bf16.msra.mxu0 0
      %2723 = vmatprep.subr.bf16.mxu0 0
      %2724 = vmatpush1.bf16.msra.mxu0 %v2707
      %2725 = vmatprep.subr.bf16.mxu0 0
      %2726 = vmatpush2.bf16.msra.mxu0 0
      %2727 = vmatprep.subr.bf16.mxu0 0
      %2728 = vmatpush2.bf16.msra.mxu0 0
      %2729 = vmatprep.subr.bf16.mxu0 0
      %2730 = vmatpush2.bf16.msra.mxu0 0
      %2731 = vmatprep.subr.bf16.mxu0 0
      %2732 = vmatpush2.bf16.msra.mxu0 0
      %2733 = vmatprep.subr.bf16.mxu0 0
      %2734 = vmatpush2.bf16.msra.mxu0 0
      %2735 = vmatprep.subr.bf16.mxu0 0
      %2736 = vmatpush2.bf16.msra.mxu0 0
      %2737 = vmatprep.subr.bf16.mxu0 0
      %2738 = vmatpush2.bf16.msra.mxu0 0
      %2739 = vmatprep.subr.bf16.mxu0 0
      %2740 = vmatpush2.bf16.msra.mxu0 0
      %2741 = vmatprep.mubr.bf16.mxu0 0
      %2742 = vmatmul.mubr.bf16.gmra.mxu0 %v2659
      %v2743 = vpop.f32.mrf.mxu0
      %v2744 = vadd.f32 %v2484, %v2743
      %v2745 = vpop.f32.mrf.mxu0
      %v2746 = vpop.f32.mrf.mxu0
      %v2747 = vadd.f32 %v2487, %v2746
      %v2748 = vpop.f32.mrf.mxu0
      %2749 = vmatprep.mubr.bf16.mxu0 0
      %2750 = vmatmul.mubr.bf16.gmra.mxu0 %v2662
      %v2751 = vpop.f32.mrf.mxu0
      %v2752 = vadd.f32 %v2492, %v2751
      %v2753 = vpop.f32.mrf.mxu0
      %v2754 = vpop.f32.mrf.mxu0
      %v2755 = vadd.f32 %v2495, %v2754
      %v2756 = vpop.f32.mrf.mxu0
      %2757 = vmatprep.mubr.bf16.mxu0 0
      %2758 = vmatmul.mubr.bf16.gmra.mxu0 %v2665
      %v2759 = vpop.f32.mrf.mxu0
      %v2760 = vadd.f32 %v2500, %v2759
      %v2761 = vpop.f32.mrf.mxu0
      %v2762 = vpop.f32.mrf.mxu0
      %v2763 = vadd.f32 %v2503, %v2762
      %v2764 = vpop.f32.mrf.mxu0
      %2765 = vmatprep.mubr.bf16.mxu0 0
      %2766 = vmatmul.mubr.bf16.gmra.mxu0 %v2668
      %v2767 = vpop.f32.mrf.mxu0
      %v2768 = vadd.f32 %v2508, %v2767
      %v2769 = vpop.f32.mrf.mxu0
      %v2770 = vpop.f32.mrf.mxu0
      %v2771 = vadd.f32 %v2511, %v2770
      %v2772 = vpop.f32.mrf.mxu0
      %2773 = vmatprep.mubr.bf16.mxu0 0
      %2774 = vmatmul.mubr.bf16.gmra.mxu0 %v2671
      %v2775 = vpop.f32.mrf.mxu0
      %v2776 = vadd.f32 %v2516, %v2775
      %v2777 = vpop.f32.mrf.mxu0
      %v2778 = vpop.f32.mrf.mxu0
      %v2779 = vadd.f32 %v2519, %v2778
      %v2780 = vpop.f32.mrf.mxu0
      %2781 = vmatprep.mubr.bf16.mxu0 0
      %2782 = vmatmul.mubr.bf16.gmra.mxu0 %v2674
      %v2783 = vpop.f32.mrf.mxu0
      %v2784 = vadd.f32 %v2524, %v2783
      %v2785 = vpop.f32.mrf.mxu0
      %v2786 = vpop.f32.mrf.mxu0
      %v2787 = vadd.f32 %v2527, %v2786
      %v2788 = vpop.f32.mrf.mxu0
      %2789 = vmatprep.mubr.bf16.mxu0 0
      %2790 = vmatmul.mubr.bf16.gmra.mxu0 %v2677
      %v2791 = vpop.f32.mrf.mxu0
      %v2792 = vadd.f32 %v2532, %v2791
      %v2793 = vpop.f32.mrf.mxu0
      %v2794 = vpop.f32.mrf.mxu0
      %v2795 = vadd.f32 %v2535, %v2794
      %v2796 = vpop.f32.mrf.mxu0
      %2797 = vmatprep.mubr.bf16.mxu0 0
      %2798 = vmatmul.mubr.bf16.gmra.mxu0 %v2680
      %v2799 = vpop.f32.mrf.mxu0
      %v2800 = vadd.f32 %v2540, %v2799
      %v2801 = vpop.f32.mrf.mxu0
      %v2802 = vpop.f32.mrf.mxu0
      %v2803 = vadd.f32 %v2543, %v2802
      %v2804 = vpop.f32.mrf.mxu0
      %2805 = vmatprep.mubr.bf16.mxu0 0
      %2806 = vmatmul.mubr.bf16.gmra.mxu0 %v2683
      %v2807 = vpop.f32.mrf.mxu0
      %v2808 = vadd.f32 %v2548, %v2807
      %v2809 = vpop.f32.mrf.mxu0
      %v2810 = vpop.f32.mrf.mxu0
      %v2811 = vadd.f32 %v2551, %v2810
      %v2812 = vpop.f32.mrf.mxu0
      %2813 = vmatprep.mubr.bf16.mxu0 0
      %2814 = vmatmul.mubr.bf16.gmra.mxu0 %v2686
      %v2815 = vpop.f32.mrf.mxu0
      %v2816 = vadd.f32 %v2556, %v2815
      %v2817 = vpop.f32.mrf.mxu0
      %v2818 = vpop.f32.mrf.mxu0
      %v2819 = vadd.f32 %v2559, %v2818
      %v2820 = vpop.f32.mrf.mxu0
      %2821 = vmatprep.mubr.bf16.mxu0 0
      %2822 = vmatmul.mubr.bf16.gmra.mxu0 %v2689
      %v2823 = vpop.f32.mrf.mxu0
      %v2824 = vadd.f32 %v2564, %v2823
      %v2825 = vpop.f32.mrf.mxu0
      %v2826 = vpop.f32.mrf.mxu0
      %v2827 = vadd.f32 %v2567, %v2826
      %v2828 = vpop.f32.mrf.mxu0
      %2829 = vmatprep.mubr.bf16.mxu0 0
      %2830 = vmatmul.mubr.bf16.gmra.mxu0 %v2692
      %v2831 = vpop.f32.mrf.mxu0
      %v2832 = vadd.f32 %v2572, %v2831
      %v2833 = vpop.f32.mrf.mxu0
      %v2834 = vpop.f32.mrf.mxu0
      %v2835 = vadd.f32 %v2575, %v2834
      %v2836 = vpop.f32.mrf.mxu0
      %2837 = vmatprep.mubr.bf16.mxu0 0
      %2838 = vmatmul.mubr.bf16.gmra.mxu0 %v2695
      %v2839 = vpop.f32.mrf.mxu0
      %v2840 = vadd.f32 %v2580, %v2839
      %v2841 = vpop.f32.mrf.mxu0
      %v2842 = vpop.f32.mrf.mxu0
      %v2843 = vadd.f32 %v2583, %v2842
      %v2844 = vpop.f32.mrf.mxu0
      %2845 = vmatprep.mubr.bf16.mxu0 0
      %2846 = vmatmul.mubr.bf16.gmra.mxu0 %v2698
      %v2847 = vpop.f32.mrf.mxu0
      %v2848 = vadd.f32 %v2588, %v2847
      %v2849 = vpop.f32.mrf.mxu0
      %v2850 = vpop.f32.mrf.mxu0
      %v2851 = vadd.f32 %v2591, %v2850
      %v2852 = vpop.f32.mrf.mxu0
      %2853 = vmatprep.mubr.bf16.mxu0 0
      %2854 = vmatmul.mubr.bf16.gmra.mxu0 %v2701
      %v2855 = vpop.f32.mrf.mxu0
      %v2856 = vadd.f32 %v2596, %v2855
      %v2857 = vpop.f32.mrf.mxu0
      %v2858 = vpop.f32.mrf.mxu0
      %v2859 = vadd.f32 %v2599, %v2858
      %v2860 = vpop.f32.mrf.mxu0
      %2861 = vmatprep.mubr.bf16.mxu0 0
      %2862 = vmatmul.mubr.bf16.gmra.mxu0 %v2704
      %v2863 = vpop.f32.mrf.mxu0
      %v2864 = vadd.f32 %v2604, %v2863
      %v2865 = vpop.f32.mrf.mxu0
      %v2866 = vpop.f32.mrf.mxu0
      %v2867 = vadd.f32 %v2607, %v2866
      %v2868 = vpop.f32.mrf.mxu0
      %2869 = vdwg.mxu0
      %v2870 = vld [vmem:[%s1 + $0x4] sm:$0x3]
      %v2871 = vunpack.c.l.b16 %v810
      %v2872 = vunpack.c.l.b16 %v818
      %v2873 = vunpack.c.l.b16 %v824
      %v2874 = vunpack.c.l.b16 %v832
      %v2875 = vunpack.c.l.b16 %v838
      %v2876 = vunpack.c.l.b16 %v846
      %v2877 = vunpack.c.l.b16 %v852
      %v2878 = vunpack.c.l.b16 %v860
      %v2879 = vunpack.c.l.b16 %v866
      %v2880 = vunpack.c.l.b16 %v874
      %v2881 = vunpack.c.l.b16 %v880
      %v2882 = vunpack.c.l.b16 %v888
      %v2883 = vunpack.c.l.b16 %v894
      %v2884 = vunpack.c.l.b16 %v902
      %v2885 = vunpack.c.l.b16 %v908
      %v2886 = vunpack.c.l.b16 %v916
      %v2887 = vunpack.c.l.b16 %v922
      %v2888 = vunpack.c.l.b16 %v930
      %v2889 = vunpack.c.l.b16 %v936
      %v2890 = vunpack.c.l.b16 %v944
      %v2891 = vunpack.c.l.b16 %v950
      %v2892 = vunpack.c.l.b16 %v958
      %v2893 = vunpack.c.l.b16 %v964
      %v2894 = vunpack.c.l.b16 %v972
      %v2895 = vunpack.c.l.b16 %v978
      %v2896 = vunpack.c.l.b16 %v986
      %v2897 = vunpack.c.l.b16 %v992
      %v2898 = vunpack.c.l.b16 %v1000
      %v2899 = vunpack.c.l.b16 %v1006
      %v2900 = vunpack.c.l.b16 %v1014
      %v2901 = vunpack.c.l.b16 %v1020
      %v2902 = vunpack.c.l.b16 %v1028
      %v2903 = vpack.c.b16 %v2872, %v2871
      %v2904 = vpack.c.b16 %v2874, %v2873
      %v2905 = vpack.c.b16 %v2876, %v2875
      %v2906 = vpack.c.b16 %v2878, %v2877
      %v2907 = vpack.c.b16 %v2880, %v2879
      %v2908 = vpack.c.b16 %v2882, %v2881
      %v2909 = vpack.c.b16 %v2884, %v2883
      %v2910 = vpack.c.b16 %v2886, %v2885
      %v2911 = vpack.c.b16 %v2888, %v2887
      %v2912 = vpack.c.b16 %v2890, %v2889
      %v2913 = vpack.c.b16 %v2892, %v2891
      %v2914 = vpack.c.b16 %v2894, %v2893
      %v2915 = vpack.c.b16 %v2896, %v2895
      %v2916 = vpack.c.b16 %v2898, %v2897
      %v2917 = vpack.c.b16 %v2900, %v2899
      %v2918 = vpack.c.b16 %v2902, %v2901
      %v2920 = vsel %vm2396, %v2903, 0
      %v2923 = vsel %vm2396, %v2904, 0
      %v2926 = vsel %vm2396, %v2905, 0
      %v2929 = vsel %vm2396, %v2906, 0
      %v2932 = vsel %vm2396, %v2907, 0
      %v2935 = vsel %vm2396, %v2908, 0
      %v2938 = vsel %vm2396, %v2909, 0
      %v2941 = vsel %vm2396, %v2910, 0
      %v2944 = vsel %vm2396, %v2911, 0
      %v2947 = vsel %vm2396, %v2912, 0
      %v2950 = vsel %vm2396, %v2913, 0
      %v2953 = vsel %vm2396, %v2914, 0
      %v2956 = vsel %vm2396, %v2915, 0
      %v2959 = vsel %vm2396, %v2916, 0
      %v2962 = vsel %vm2396, %v2917, 0
      %v2965 = vsel %vm2396, %v2918, 0
      %v2968 = vsel %vm2445, %v2870, 0
      %2970 = vmatprep.subr.bf16.mxu0 0
      %2971 = vmatpush1.bf16.msra.mxu0 0
      %2972 = vmatprep.subr.bf16.mxu0 0
      %2973 = vmatpush1.bf16.msra.mxu0 0
      %2974 = vmatprep.subr.bf16.mxu0 0
      %2975 = vmatpush1.bf16.msra.mxu0 0
      %2976 = vmatprep.subr.bf16.mxu0 0
      %2977 = vmatpush1.bf16.msra.mxu0 0
      %2978 = vmatprep.subr.bf16.mxu0 0
      %2979 = vmatpush1.bf16.msra.mxu0 0
      %2980 = vmatprep.subr.bf16.mxu0 0
      %2981 = vmatpush1.bf16.msra.mxu0 0
      %2982 = vmatprep.subr.bf16.mxu0 0
      %2983 = vmatpush1.bf16.msra.mxu0 0
      %2984 = vmatprep.subr.bf16.mxu0 0
      %2985 = vmatpush1.bf16.msra.mxu0 %v2968
      %2986 = vmatprep.subr.bf16.mxu0 0
      %2987 = vmatpush2.bf16.msra.mxu0 0
      %2988 = vmatprep.subr.bf16.mxu0 0
      %2989 = vmatpush2.bf16.msra.mxu0 0
      %2990 = vmatprep.subr.bf16.mxu0 0
      %2991 = vmatpush2.bf16.msra.mxu0 0
      %2992 = vmatprep.subr.bf16.mxu0 0
      %2993 = vmatpush2.bf16.msra.mxu0 0
      %2994 = vmatprep.subr.bf16.mxu0 0
      %2995 = vmatpush2.bf16.msra.mxu0 0
      %2996 = vmatprep.subr.bf16.mxu0 0
      %2997 = vmatpush2.bf16.msra.mxu0 0
      %2998 = vmatprep.subr.bf16.mxu0 0
      %2999 = vmatpush2.bf16.msra.mxu0 0
      %3000 = vmatprep.subr.bf16.mxu0 0
      %3001 = vmatpush2.bf16.msra.mxu0 0
      %3002 = vmatprep.mubr.bf16.mxu0 0
      %3003 = vmatmul.mubr.bf16.gmra.mxu0 %v2920
      %v3004 = vpop.f32.mrf.mxu0
      %v3005 = vadd.f32 0.0, %v3004
      %v3006 = vpop.f32.mrf.mxu0
      %v3007 = vpop.f32.mrf.mxu0
      %v3008 = vadd.f32 0.0, %v3007
      %v3009 = vpop.f32.mrf.mxu0
      %3010 = vmatprep.mubr.bf16.mxu0 0
      %3011 = vmatmul.mubr.bf16.gmra.mxu0 %v2923
      %v3012 = vpop.f32.mrf.mxu0
      %v3013 = vadd.f32 0.0, %v3012
      %v3014 = vpop.f32.mrf.mxu0
      %v3015 = vpop.f32.mrf.mxu0
      %v3016 = vadd.f32 0.0, %v3015
      %v3017 = vpop.f32.mrf.mxu0
      %3018 = vmatprep.mubr.bf16.mxu0 0
      %3019 = vmatmul.mubr.bf16.gmra.mxu0 %v2926
      %v3020 = vpop.f32.mrf.mxu0
      %v3021 = vadd.f32 0.0, %v3020
      %v3022 = vpop.f32.mrf.mxu0
      %v3023 = vpop.f32.mrf.mxu0
      %v3024 = vadd.f32 0.0, %v3023
      %v3025 = vpop.f32.mrf.mxu0
      %3026 = vmatprep.mubr.bf16.mxu0 0
      %3027 = vmatmul.mubr.bf16.gmra.mxu0 %v2929
      %v3028 = vpop.f32.mrf.mxu0
      %v3029 = vadd.f32 0.0, %v3028
      %v3030 = vpop.f32.mrf.mxu0
      %v3031 = vpop.f32.mrf.mxu0
      %v3032 = vadd.f32 0.0, %v3031
      %v3033 = vpop.f32.mrf.mxu0
      %3034 = vmatprep.mubr.bf16.mxu0 0
      %3035 = vmatmul.mubr.bf16.gmra.mxu0 %v2932
      %v3036 = vpop.f32.mrf.mxu0
      %v3037 = vadd.f32 0.0, %v3036
      %v3038 = vpop.f32.mrf.mxu0
      %v3039 = vpop.f32.mrf.mxu0
      %v3040 = vadd.f32 0.0, %v3039
      %v3041 = vpop.f32.mrf.mxu0
      %3042 = vmatprep.mubr.bf16.mxu0 0
      %3043 = vmatmul.mubr.bf16.gmra.mxu0 %v2935
      %v3044 = vpop.f32.mrf.mxu0
      %v3045 = vadd.f32 0.0, %v3044
      %v3046 = vpop.f32.mrf.mxu0
      %v3047 = vpop.f32.mrf.mxu0
      %v3048 = vadd.f32 0.0, %v3047
      %v3049 = vpop.f32.mrf.mxu0
      %3050 = vmatprep.mubr.bf16.mxu0 0
      %3051 = vmatmul.mubr.bf16.gmra.mxu0 %v2938
      %v3052 = vpop.f32.mrf.mxu0
      %v3053 = vadd.f32 0.0, %v3052
      %v3054 = vpop.f32.mrf.mxu0
      %v3055 = vpop.f32.mrf.mxu0
      %v3056 = vadd.f32 0.0, %v3055
      %v3057 = vpop.f32.mrf.mxu0
      %3058 = vmatprep.mubr.bf16.mxu0 0
      %3059 = vmatmul.mubr.bf16.gmra.mxu0 %v2941
      %v3060 = vpop.f32.mrf.mxu0
      %v3061 = vadd.f32 0.0, %v3060
      %v3062 = vpop.f32.mrf.mxu0
      %v3063 = vpop.f32.mrf.mxu0
      %v3064 = vadd.f32 0.0, %v3063
      %v3065 = vpop.f32.mrf.mxu0
      %3066 = vmatprep.mubr.bf16.mxu0 0
      %3067 = vmatmul.mubr.bf16.gmra.mxu0 %v2944
      %v3068 = vpop.f32.mrf.mxu0
      %v3069 = vadd.f32 0.0, %v3068
      %v3070 = vpop.f32.mrf.mxu0
      %v3071 = vpop.f32.mrf.mxu0
      %v3072 = vadd.f32 0.0, %v3071
      %v3073 = vpop.f32.mrf.mxu0
      %3074 = vmatprep.mubr.bf16.mxu0 0
      %3075 = vmatmul.mubr.bf16.gmra.mxu0 %v2947
      %v3076 = vpop.f32.mrf.mxu0
      %v3077 = vadd.f32 0.0, %v3076
      %v3078 = vpop.f32.mrf.mxu0
      %v3079 = vpop.f32.mrf.mxu0
      %v3080 = vadd.f32 0.0, %v3079
      %v3081 = vpop.f32.mrf.mxu0
      %3082 = vmatprep.mubr.bf16.mxu0 0
      %3083 = vmatmul.mubr.bf16.gmra.mxu0 %v2950
      %v3084 = vpop.f32.mrf.mxu0
      %v3085 = vadd.f32 0.0, %v3084
      %v3086 = vpop.f32.mrf.mxu0
      %v3087 = vpop.f32.mrf.mxu0
      %v3088 = vadd.f32 0.0, %v3087
      %v3089 = vpop.f32.mrf.mxu0
      %3090 = vmatprep.mubr.bf16.mxu0 0
      %3091 = vmatmul.mubr.bf16.gmra.mxu0 %v2953
      %v3092 = vpop.f32.mrf.mxu0
      %v3093 = vadd.f32 0.0, %v3092
      %v3094 = vpop.f32.mrf.mxu0
      %v3095 = vpop.f32.mrf.mxu0
      %v3096 = vadd.f32 0.0, %v3095
      %v3097 = vpop.f32.mrf.mxu0
      %3098 = vmatprep.mubr.bf16.mxu0 0
      %3099 = vmatmul.mubr.bf16.gmra.mxu0 %v2956
      %v3100 = vpop.f32.mrf.mxu0
      %v3101 = vadd.f32 0.0, %v3100
      %v3102 = vpop.f32.mrf.mxu0
      %v3103 = vpop.f32.mrf.mxu0
      %v3104 = vadd.f32 0.0, %v3103
      %v3105 = vpop.f32.mrf.mxu0
      %3106 = vmatprep.mubr.bf16.mxu0 0
      %3107 = vmatmul.mubr.bf16.gmra.mxu0 %v2959
      %v3108 = vpop.f32.mrf.mxu0
      %v3109 = vadd.f32 0.0, %v3108
      %v3110 = vpop.f32.mrf.mxu0
      %v3111 = vpop.f32.mrf.mxu0
      %v3112 = vadd.f32 0.0, %v3111
      %v3113 = vpop.f32.mrf.mxu0
      %3114 = vmatprep.mubr.bf16.mxu0 0
      %3115 = vmatmul.mubr.bf16.gmra.mxu0 %v2962
      %v3116 = vpop.f32.mrf.mxu0
      %v3117 = vadd.f32 0.0, %v3116
      %v3118 = vpop.f32.mrf.mxu0
      %v3119 = vpop.f32.mrf.mxu0
      %v3120 = vadd.f32 0.0, %v3119
      %v3121 = vpop.f32.mrf.mxu0
      %3122 = vmatprep.mubr.bf16.mxu0 0
      %3123 = vmatmul.mubr.bf16.gmra.mxu0 %v2965
      %v3124 = vpop.f32.mrf.mxu0
      %v3125 = vadd.f32 0.0, %v3124
      %v3126 = vpop.f32.mrf.mxu0
      %v3127 = vpop.f32.mrf.mxu0
      %v3128 = vadd.f32 0.0, %v3127
      %v3129 = vpop.f32.mrf.mxu0
      %3130 = vdwg.mxu0
      %v3131 = vadd.f32 %v2744, %v3005
      %v3132 = vadd.f32 %v2747, %v3008
      %v3133 = vadd.f32 %v2752, %v3013
      %v3134 = vadd.f32 %v2755, %v3016
      %v3135 = vadd.f32 %v2760, %v3021
      %v3136 = vadd.f32 %v2763, %v3024
      %v3137 = vadd.f32 %v2768, %v3029
      %v3138 = vadd.f32 %v2771, %v3032
      %v3139 = vadd.f32 %v2776, %v3037
      %v3140 = vadd.f32 %v2779, %v3040
      %v3141 = vadd.f32 %v2784, %v3045
      %v3142 = vadd.f32 %v2787, %v3048
      %v3143 = vadd.f32 %v2792, %v3053
      %v3144 = vadd.f32 %v2795, %v3056
      %v3145 = vadd.f32 %v2800, %v3061
      %v3146 = vadd.f32 %v2803, %v3064
      %v3147 = vadd.f32 %v2808, %v3069
      %v3148 = vadd.f32 %v2811, %v3072
      %v3149 = vadd.f32 %v2816, %v3077
      %v3150 = vadd.f32 %v2819, %v3080
      %v3151 = vadd.f32 %v2824, %v3085
      %v3152 = vadd.f32 %v2827, %v3088
      %v3153 = vadd.f32 %v2832, %v3093
      %v3154 = vadd.f32 %v2835, %v3096
      %v3155 = vadd.f32 %v2840, %v3101
      %v3156 = vadd.f32 %v2843, %v3104
      %v3157 = vadd.f32 %v2848, %v3109
      %v3158 = vadd.f32 %v2851, %v3112
      %v3159 = vadd.f32 %v2856, %v3117
      %v3160 = vadd.f32 %v2859, %v3120
      %v3161 = vadd.f32 %v2864, %v3125
      %v3162 = vadd.f32 %v2867, %v3128
      %v3163 = vld [vmem:[%s1 + $0x4] sm:$0xc]
      %v3164 = vunpack.c.l.b16 %v1089
      %v3165 = vunpack.c.l.b16 %v1098
      %v3166 = vunpack.c.l.b16 %v1111
      %v3167 = vunpack.c.l.b16 %v1120
      %v3168 = vunpack.c.l.b16 %v1133
      %v3169 = vunpack.c.l.b16 %v1142
      %v3170 = vunpack.c.l.b16 %v1155
      %v3171 = vunpack.c.l.b16 %v1164
      %v3172 = vunpack.c.l.b16 %v1177
      %v3173 = vunpack.c.l.b16 %v1186
      %v3174 = vunpack.c.l.b16 %v1199
      %v3175 = vunpack.c.l.b16 %v1208
      %v3176 = vunpack.c.l.b16 %v1221
      %v3177 = vunpack.c.l.b16 %v1230
      %v3178 = vunpack.c.l.b16 %v1243
      %v3179 = vunpack.c.l.b16 %v1252
      %v3180 = vunpack.c.l.b16 %v1265
      %v3181 = vunpack.c.l.b16 %v1274
      %v3182 = vunpack.c.l.b16 %v1287
      %v3183 = vunpack.c.l.b16 %v1296
      %v3184 = vunpack.c.l.b16 %v1309
      %v3185 = vunpack.c.l.b16 %v1318
      %v3186 = vunpack.c.l.b16 %v1331
      %v3187 = vunpack.c.l.b16 %v1340
      %v3188 = vunpack.c.l.b16 %v1353
      %v3189 = vunpack.c.l.b16 %v1362
      %v3190 = vunpack.c.l.b16 %v1375
      %v3191 = vunpack.c.l.b16 %v1384
      %v3192 = vunpack.c.l.b16 %v1397
      %v3193 = vunpack.c.l.b16 %v1406
      %v3194 = vunpack.c.l.b16 %v1419
      %v3195 = vunpack.c.l.b16 %v1428
      %v3196 = vpack.c.b16 %v3165, %v3164
      %v3197 = vpack.c.b16 %v3167, %v3166
      %v3198 = vpack.c.b16 %v3169, %v3168
      %v3199 = vpack.c.b16 %v3171, %v3170
      %v3200 = vpack.c.b16 %v3173, %v3172
      %v3201 = vpack.c.b16 %v3175, %v3174
      %v3202 = vpack.c.b16 %v3177, %v3176
      %v3203 = vpack.c.b16 %v3179, %v3178
      %v3204 = vpack.c.b16 %v3181, %v3180
      %v3205 = vpack.c.b16 %v3183, %v3182
      %v3206 = vpack.c.b16 %v3185, %v3184
      %v3207 = vpack.c.b16 %v3187, %v3186
      %v3208 = vpack.c.b16 %v3189, %v3188
      %v3209 = vpack.c.b16 %v3191, %v3190
      %v3210 = vpack.c.b16 %v3193, %v3192
      %v3211 = vpack.c.b16 %v3195, %v3194
      %v3213 = vunpack.c.l.b16 %v3163
      %v3214 = vpack.c.b16 %v3213, %v3213
      %v3215 = vrot.slane %v3214, 2
      %v3217 = vsel %vm2396, %v3196, 0
      %v3220 = vsel %vm2396, %v3197, 0
      %v3223 = vsel %vm2396, %v3198, 0
      %v3226 = vsel %vm2396, %v3199, 0
      %v3229 = vsel %vm2396, %v3200, 0
      %v3232 = vsel %vm2396, %v3201, 0
      %v3235 = vsel %vm2396, %v3202, 0
      %v3238 = vsel %vm2396, %v3203, 0
      %v3241 = vsel %vm2396, %v3204, 0
      %v3244 = vsel %vm2396, %v3205, 0
      %v3247 = vsel %vm2396, %v3206, 0
      %v3250 = vsel %vm2396, %v3207, 0
      %v3253 = vsel %vm2396, %v3208, 0
      %v3256 = vsel %vm2396, %v3209, 0
      %v3259 = vsel %vm2396, %v3210, 0
      %v3262 = vsel %vm2396, %v3211, 0
      %v3265 = vsel %vm2445, %v3215, 0
      %3267 = vmatprep.subr.bf16.mxu0 0
      %3268 = vmatpush1.bf16.msra.mxu0 0
      %3269 = vmatprep.subr.bf16.mxu0 0
      %3270 = vmatpush1.bf16.msra.mxu0 0
      %3271 = vmatprep.subr.bf16.mxu0 0
      %3272 = vmatpush1.bf16.msra.mxu0 0
      %3273 = vmatprep.subr.bf16.mxu0 0
      %3274 = vmatpush1.bf16.msra.mxu0 0
      %3275 = vmatprep.subr.bf16.mxu0 0
      %3276 = vmatpush1.bf16.msra.mxu0 0
      %3277 = vmatprep.subr.bf16.mxu0 0
      %3278 = vmatpush1.bf16.msra.mxu0 0
      %3279 = vmatprep.subr.bf16.mxu0 0
      %3280 = vmatpush1.bf16.msra.mxu0 0
      %3281 = vmatprep.subr.bf16.mxu0 0
      %3282 = vmatpush1.bf16.msra.mxu0 %v3265
      %3283 = vmatprep.subr.bf16.mxu0 0
      %3284 = vmatpush2.bf16.msra.mxu0 0
      %3285 = vmatprep.subr.bf16.mxu0 0
      %3286 = vmatpush2.bf16.msra.mxu0 0
      %3287 = vmatprep.subr.bf16.mxu0 0
      %3288 = vmatpush2.bf16.msra.mxu0 0
      %3289 = vmatprep.subr.bf16.mxu0 0
      %3290 = vmatpush2.bf16.msra.mxu0 0
      %3291 = vmatprep.subr.bf16.mxu0 0
      %3292 = vmatpush2.bf16.msra.mxu0 0
      %3293 = vmatprep.subr.bf16.mxu0 0
      %3294 = vmatpush2.bf16.msra.mxu0 0
      %3295 = vmatprep.subr.bf16.mxu0 0
      %3296 = vmatpush2.bf16.msra.mxu0 0
      %3297 = vmatprep.subr.bf16.mxu0 0
      %3298 = vmatpush2.bf16.msra.mxu0 0
      %3299 = vmatprep.mubr.bf16.mxu0 0
      %3300 = vmatmul.mubr.bf16.gmra.mxu0 %v3217
      %v3301 = vpop.f32.mrf.mxu0
      %v3302 = vadd.f32 0.0, %v3301
      %v3303 = vpop.f32.mrf.mxu0
      %v3304 = vpop.f32.mrf.mxu0
      %v3305 = vadd.f32 0.0, %v3304
      %v3306 = vpop.f32.mrf.mxu0
      %3307 = vmatprep.mubr.bf16.mxu0 0
      %3308 = vmatmul.mubr.bf16.gmra.mxu0 %v3220
      %v3309 = vpop.f32.mrf.mxu0
      %v3310 = vadd.f32 0.0, %v3309
      %v3311 = vpop.f32.mrf.mxu0
      %v3312 = vpop.f32.mrf.mxu0
      %v3313 = vadd.f32 0.0, %v3312
      %v3314 = vpop.f32.mrf.mxu0
      %3315 = vmatprep.mubr.bf16.mxu0 0
      %3316 = vmatmul.mubr.bf16.gmra.mxu0 %v3223
      %v3317 = vpop.f32.mrf.mxu0
      %v3318 = vadd.f32 0.0, %v3317
      %v3319 = vpop.f32.mrf.mxu0
      %v3320 = vpop.f32.mrf.mxu0
      %v3321 = vadd.f32 0.0, %v3320
      %v3322 = vpop.f32.mrf.mxu0
      %3323 = vmatprep.mubr.bf16.mxu0 0
      %3324 = vmatmul.mubr.bf16.gmra.mxu0 %v3226
      %v3325 = vpop.f32.mrf.mxu0
      %v3326 = vadd.f32 0.0, %v3325
      %v3327 = vpop.f32.mrf.mxu0
      %v3328 = vpop.f32.mrf.mxu0
      %v3329 = vadd.f32 0.0, %v3328
      %v3330 = vpop.f32.mrf.mxu0
      %3331 = vmatprep.mubr.bf16.mxu0 0
      %3332 = vmatmul.mubr.bf16.gmra.mxu0 %v3229
      %v3333 = vpop.f32.mrf.mxu0
      %v3334 = vadd.f32 0.0, %v3333
      %v3335 = vpop.f32.mrf.mxu0
      %v3336 = vpop.f32.mrf.mxu0
      %v3337 = vadd.f32 0.0, %v3336
      %v3338 = vpop.f32.mrf.mxu0
      %3339 = vmatprep.mubr.bf16.mxu0 0
      %3340 = vmatmul.mubr.bf16.gmra.mxu0 %v3232
      %v3341 = vpop.f32.mrf.mxu0
      %v3342 = vadd.f32 0.0, %v3341
      %v3343 = vpop.f32.mrf.mxu0
      %v3344 = vpop.f32.mrf.mxu0
      %v3345 = vadd.f32 0.0, %v3344
      %v3346 = vpop.f32.mrf.mxu0
      %3347 = vmatprep.mubr.bf16.mxu0 0
      %3348 = vmatmul.mubr.bf16.gmra.mxu0 %v3235
      %v3349 = vpop.f32.mrf.mxu0
      %v3350 = vadd.f32 0.0, %v3349
      %v3351 = vpop.f32.mrf.mxu0
      %v3352 = vpop.f32.mrf.mxu0
      %v3353 = vadd.f32 0.0, %v3352
      %v3354 = vpop.f32.mrf.mxu0
      %3355 = vmatprep.mubr.bf16.mxu0 0
      %3356 = vmatmul.mubr.bf16.gmra.mxu0 %v3238
      %v3357 = vpop.f32.mrf.mxu0
      %v3358 = vadd.f32 0.0, %v3357
      %v3359 = vpop.f32.mrf.mxu0
      %v3360 = vpop.f32.mrf.mxu0
      %v3361 = vadd.f32 0.0, %v3360
      %v3362 = vpop.f32.mrf.mxu0
      %3363 = vmatprep.mubr.bf16.mxu0 0
      %3364 = vmatmul.mubr.bf16.gmra.mxu0 %v3241
      %v3365 = vpop.f32.mrf.mxu0
      %v3366 = vadd.f32 0.0, %v3365
      %v3367 = vpop.f32.mrf.mxu0
      %v3368 = vpop.f32.mrf.mxu0
      %v3369 = vadd.f32 0.0, %v3368
      %v3370 = vpop.f32.mrf.mxu0
      %3371 = vmatprep.mubr.bf16.mxu0 0
      %3372 = vmatmul.mubr.bf16.gmra.mxu0 %v3244
      %v3373 = vpop.f32.mrf.mxu0
      %v3374 = vadd.f32 0.0, %v3373
      %v3375 = vpop.f32.mrf.mxu0
      %v3376 = vpop.f32.mrf.mxu0
      %v3377 = vadd.f32 0.0, %v3376
      %v3378 = vpop.f32.mrf.mxu0
      %3379 = vmatprep.mubr.bf16.mxu0 0
      %3380 = vmatmul.mubr.bf16.gmra.mxu0 %v3247
      %v3381 = vpop.f32.mrf.mxu0
      %v3382 = vadd.f32 0.0, %v3381
      %v3383 = vpop.f32.mrf.mxu0
      %v3384 = vpop.f32.mrf.mxu0
      %v3385 = vadd.f32 0.0, %v3384
      %v3386 = vpop.f32.mrf.mxu0
      %3387 = vmatprep.mubr.bf16.mxu0 0
      %3388 = vmatmul.mubr.bf16.gmra.mxu0 %v3250
      %v3389 = vpop.f32.mrf.mxu0
      %v3390 = vadd.f32 0.0, %v3389
      %v3391 = vpop.f32.mrf.mxu0
      %v3392 = vpop.f32.mrf.mxu0
      %v3393 = vadd.f32 0.0, %v3392
      %v3394 = vpop.f32.mrf.mxu0
      %3395 = vmatprep.mubr.bf16.mxu0 0
      %3396 = vmatmul.mubr.bf16.gmra.mxu0 %v3253
      %v3397 = vpop.f32.mrf.mxu0
      %v3398 = vadd.f32 0.0, %v3397
      %v3399 = vpop.f32.mrf.mxu0
      %v3400 = vpop.f32.mrf.mxu0
      %v3401 = vadd.f32 0.0, %v3400
      %v3402 = vpop.f32.mrf.mxu0
      %3403 = vmatprep.mubr.bf16.mxu0 0
      %3404 = vmatmul.mubr.bf16.gmra.mxu0 %v3256
      %v3405 = vpop.f32.mrf.mxu0
      %v3406 = vadd.f32 0.0, %v3405
      %v3407 = vpop.f32.mrf.mxu0
      %v3408 = vpop.f32.mrf.mxu0
      %v3409 = vadd.f32 0.0, %v3408
      %v3410 = vpop.f32.mrf.mxu0
      %3411 = vmatprep.mubr.bf16.mxu0 0
      %3412 = vmatmul.mubr.bf16.gmra.mxu0 %v3259
      %v3413 = vpop.f32.mrf.mxu0
      %v3414 = vadd.f32 0.0, %v3413
      %v3415 = vpop.f32.mrf.mxu0
      %v3416 = vpop.f32.mrf.mxu0
      %v3417 = vadd.f32 0.0, %v3416
      %v3418 = vpop.f32.mrf.mxu0
      %3419 = vmatprep.mubr.bf16.mxu0 0
      %3420 = vmatmul.mubr.bf16.gmra.mxu0 %v3262
      %v3421 = vpop.f32.mrf.mxu0
      %v3422 = vadd.f32 0.0, %v3421
      %v3423 = vpop.f32.mrf.mxu0
      %v3424 = vpop.f32.mrf.mxu0
      %v3425 = vadd.f32 0.0, %v3424
      %v3426 = vpop.f32.mrf.mxu0
      %3427 = vdwg.mxu0
      %v3428 = vadd.f32 %v3131, %v3302
      %v3429 = vadd.f32 %v3132, %v3305
      %v3430 = vadd.f32 %v3133, %v3310
      %v3431 = vadd.f32 %v3134, %v3313
      %v3432 = vadd.f32 %v3135, %v3318
      %v3433 = vadd.f32 %v3136, %v3321
      %v3434 = vadd.f32 %v3137, %v3326
      %v3435 = vadd.f32 %v3138, %v3329
      %v3436 = vadd.f32 %v3139, %v3334
      %v3437 = vadd.f32 %v3140, %v3337
      %v3438 = vadd.f32 %v3141, %v3342
      %v3439 = vadd.f32 %v3142, %v3345
      %v3440 = vadd.f32 %v3143, %v3350
      %v3441 = vadd.f32 %v3144, %v3353
      %v3442 = vadd.f32 %v3145, %v3358
      %v3443 = vadd.f32 %v3146, %v3361
      %v3444 = vadd.f32 %v3147, %v3366
      %v3445 = vadd.f32 %v3148, %v3369
      %v3446 = vadd.f32 %v3149, %v3374
      %v3447 = vadd.f32 %v3150, %v3377
      %v3448 = vadd.f32 %v3151, %v3382
      %v3449 = vadd.f32 %v3152, %v3385
      %v3450 = vadd.f32 %v3153, %v3390
      %v3451 = vadd.f32 %v3154, %v3393
      %v3452 = vadd.f32 %v3155, %v3398
      %v3453 = vadd.f32 %v3156, %v3401
      %v3454 = vadd.f32 %v3157, %v3406
      %v3455 = vadd.f32 %v3158, %v3409
      %v3456 = vadd.f32 %v3159, %v3414
      %v3457 = vadd.f32 %v3160, %v3417
      %v3458 = vadd.f32 %v3161, %v3422
      %v3459 = vadd.f32 %v3162, %v3425
      %v3460 = vld [vmem:[%s1 + $0x8] sm:$0x3]
      %v3493 = vunpack.c.l.b16 %v1030
      %v3494 = vunpack.c.l.b16 %v1031
      %v3495 = vunpack.c.l.b16 %v1033
      %v3496 = vunpack.c.l.b16 %v1034
      %v3497 = vunpack.c.l.b16 %v1036
      %v3498 = vunpack.c.l.b16 %v1037
      %v3499 = vunpack.c.l.b16 %v1039
      %v3500 = vunpack.c.l.b16 %v1040
      %v3501 = vunpack.c.l.b16 %v1042
      %v3502 = vunpack.c.l.b16 %v1043
      %v3503 = vunpack.c.l.b16 %v1045
      %v3504 = vunpack.c.l.b16 %v1046
      %v3505 = vunpack.c.l.b16 %v1048
      %v3506 = vunpack.c.l.b16 %v1049
      %v3507 = vunpack.c.l.b16 %v1051
      %v3508 = vunpack.c.l.b16 %v1052
      %v3509 = vunpack.c.l.b16 %v1054
      %v3510 = vunpack.c.l.b16 %v1055
      %v3511 = vunpack.c.l.b16 %v1057
      %v3512 = vunpack.c.l.b16 %v1058
      %v3513 = vunpack.c.l.b16 %v1060
      %v3514 = vunpack.c.l.b16 %v1061
      %v3515 = vunpack.c.l.b16 %v1063
      %v3516 = vunpack.c.l.b16 %v1064
      %v3517 = vunpack.c.l.b16 %v1066
      %v3518 = vunpack.c.l.b16 %v1067
      %v3519 = vunpack.c.l.b16 %v1069
      %v3520 = vunpack.c.l.b16 %v1070
      %v3521 = vunpack.c.l.b16 %v1072
      %v3522 = vunpack.c.l.b16 %v1073
      %v3523 = vunpack.c.l.b16 %v1075
      %v3524 = vunpack.c.l.b16 %v1076
      %v3525 = vpack.c.b16 %v3494, %v3493
      %v3526 = vpack.c.b16 %v3496, %v3495
      %v3527 = vpack.c.b16 %v3498, %v3497
      %v3528 = vpack.c.b16 %v3500, %v3499
      %v3529 = vpack.c.b16 %v3502, %v3501
      %v3530 = vpack.c.b16 %v3504, %v3503
      %v3531 = vpack.c.b16 %v3506, %v3505
      %v3532 = vpack.c.b16 %v3508, %v3507
      %v3533 = vpack.c.b16 %v3510, %v3509
      %v3534 = vpack.c.b16 %v3512, %v3511
      %v3535 = vpack.c.b16 %v3514, %v3513
      %v3536 = vpack.c.b16 %v3516, %v3515
      %v3537 = vpack.c.b16 %v3518, %v3517
      %v3538 = vpack.c.b16 %v3520, %v3519
      %v3539 = vpack.c.b16 %v3522, %v3521
      %v3540 = vpack.c.b16 %v3524, %v3523
      %v3542 = vsel %vm2396, %v3525, 0
      %v3545 = vsel %vm2396, %v3526, 0
      %v3548 = vsel %vm2396, %v3527, 0
      %v3551 = vsel %vm2396, %v3528, 0
      %v3554 = vsel %vm2396, %v3529, 0
      %v3557 = vsel %vm2396, %v3530, 0
      %v3560 = vsel %vm2396, %v3531, 0
      %v3563 = vsel %vm2396, %v3532, 0
      %v3566 = vsel %vm2396, %v3533, 0
      %v3569 = vsel %vm2396, %v3534, 0
      %v3572 = vsel %vm2396, %v3535, 0
      %v3575 = vsel %vm2396, %v3536, 0
      %v3578 = vsel %vm2396, %v3537, 0
      %v3581 = vsel %vm2396, %v3538, 0
      %v3584 = vsel %vm2396, %v3539, 0
      %v3587 = vsel %vm2396, %v3540, 0
      %v3590 = vsel %vm2445, %v3460, 0
      %3592 = vmatprep.subr.bf16.mxu0 0
      %3593 = vmatpush1.bf16.msra.mxu0 0
      %3594 = vmatprep.subr.bf16.mxu0 0
      %3595 = vmatpush1.bf16.msra.mxu0 0
      %3596 = vmatprep.subr.bf16.mxu0 0
      %3597 = vmatpush1.bf16.msra.mxu0 0
      %3598 = vmatprep.subr.bf16.mxu0 0
      %3599 = vmatpush1.bf16.msra.mxu0 0
      %3600 = vmatprep.subr.bf16.mxu0 0
      %3601 = vmatpush1.bf16.msra.mxu0 0
      %3602 = vmatprep.subr.bf16.mxu0 0
      %3603 = vmatpush1.bf16.msra.mxu0 0
      %3604 = vmatprep.subr.bf16.mxu0 0
      %3605 = vmatpush1.bf16.msra.mxu0 0
      %3606 = vmatprep.subr.bf16.mxu0 0
      %3607 = vmatpush1.bf16.msra.mxu0 %v3590
      %3608 = vmatprep.subr.bf16.mxu0 0
      %3609 = vmatpush2.bf16.msra.mxu0 0
      %3610 = vmatprep.subr.bf16.mxu0 0
      %3611 = vmatpush2.bf16.msra.mxu0 0
      %3612 = vmatprep.subr.bf16.mxu0 0
      %3613 = vmatpush2.bf16.msra.mxu0 0
      %3614 = vmatprep.subr.bf16.mxu0 0
      %3615 = vmatpush2.bf16.msra.mxu0 0
      %3616 = vmatprep.subr.bf16.mxu0 0
      %3617 = vmatpush2.bf16.msra.mxu0 0
      %3618 = vmatprep.subr.bf16.mxu0 0
      %3619 = vmatpush2.bf16.msra.mxu0 0
      %3620 = vmatprep.subr.bf16.mxu0 0
      %3621 = vmatpush2.bf16.msra.mxu0 0
      %3622 = vmatprep.subr.bf16.mxu0 0
      %3623 = vmatpush2.bf16.msra.mxu0 0
      %3624 = vmatprep.mubr.bf16.mxu0 0
      %3625 = vmatmul.mubr.bf16.gmra.mxu0 %v3542
      %v3626 = vpop.f32.mrf.mxu0
      %v3627 = vadd.f32 0.0, %v3626
      %v3628 = vpop.f32.mrf.mxu0
      %v3629 = vpop.f32.mrf.mxu0
      %v3630 = vadd.f32 0.0, %v3629
      %v3631 = vpop.f32.mrf.mxu0
      %3632 = vmatprep.mubr.bf16.mxu0 0
      %3633 = vmatmul.mubr.bf16.gmra.mxu0 %v3545
      %v3634 = vpop.f32.mrf.mxu0
      %v3635 = vadd.f32 0.0, %v3634
      %v3636 = vpop.f32.mrf.mxu0
      %v3637 = vpop.f32.mrf.mxu0
      %v3638 = vadd.f32 0.0, %v3637
      %v3639 = vpop.f32.mrf.mxu0
      %3640 = vmatprep.mubr.bf16.mxu0 0
      %3641 = vmatmul.mubr.bf16.gmra.mxu0 %v3548
      %v3642 = vpop.f32.mrf.mxu0
      %v3643 = vadd.f32 0.0, %v3642
      %v3644 = vpop.f32.mrf.mxu0
      %v3645 = vpop.f32.mrf.mxu0
      %v3646 = vadd.f32 0.0, %v3645
      %v3647 = vpop.f32.mrf.mxu0
      %3648 = vmatprep.mubr.bf16.mxu0 0
      %3649 = vmatmul.mubr.bf16.gmra.mxu0 %v3551
      %v3650 = vpop.f32.mrf.mxu0
      %v3651 = vadd.f32 0.0, %v3650
      %v3652 = vpop.f32.mrf.mxu0
      %v3653 = vpop.f32.mrf.mxu0
      %v3654 = vadd.f32 0.0, %v3653
      %v3655 = vpop.f32.mrf.mxu0
      %3656 = vmatprep.mubr.bf16.mxu0 0
      %3657 = vmatmul.mubr.bf16.gmra.mxu0 %v3554
      %v3658 = vpop.f32.mrf.mxu0
      %v3659 = vadd.f32 0.0, %v3658
      %v3660 = vpop.f32.mrf.mxu0
      %v3661 = vpop.f32.mrf.mxu0
      %v3662 = vadd.f32 0.0, %v3661
      %v3663 = vpop.f32.mrf.mxu0
      %3664 = vmatprep.mubr.bf16.mxu0 0
      %3665 = vmatmul.mubr.bf16.gmra.mxu0 %v3557
      %v3666 = vpop.f32.mrf.mxu0
      %v3667 = vadd.f32 0.0, %v3666
      %v3668 = vpop.f32.mrf.mxu0
      %v3669 = vpop.f32.mrf.mxu0
      %v3670 = vadd.f32 0.0, %v3669
      %v3671 = vpop.f32.mrf.mxu0
      %3672 = vmatprep.mubr.bf16.mxu0 0
      %3673 = vmatmul.mubr.bf16.gmra.mxu0 %v3560
      %v3674 = vpop.f32.mrf.mxu0
      %v3675 = vadd.f32 0.0, %v3674
      %v3676 = vpop.f32.mrf.mxu0
      %v3677 = vpop.f32.mrf.mxu0
      %v3678 = vadd.f32 0.0, %v3677
      %v3679 = vpop.f32.mrf.mxu0
      %3680 = vmatprep.mubr.bf16.mxu0 0
      %3681 = vmatmul.mubr.bf16.gmra.mxu0 %v3563
      %v3682 = vpop.f32.mrf.mxu0
      %v3683 = vadd.f32 0.0, %v3682
      %v3684 = vpop.f32.mrf.mxu0
      %v3685 = vpop.f32.mrf.mxu0
      %v3686 = vadd.f32 0.0, %v3685
      %v3687 = vpop.f32.mrf.mxu0
      %3688 = vmatprep.mubr.bf16.mxu0 0
      %3689 = vmatmul.mubr.bf16.gmra.mxu0 %v3566
      %v3690 = vpop.f32.mrf.mxu0
      %v3691 = vadd.f32 0.0, %v3690
      %v3692 = vpop.f32.mrf.mxu0
      %v3693 = vpop.f32.mrf.mxu0
      %v3694 = vadd.f32 0.0, %v3693
      %v3695 = vpop.f32.mrf.mxu0
      %3696 = vmatprep.mubr.bf16.mxu0 0
      %3697 = vmatmul.mubr.bf16.gmra.mxu0 %v3569
      %v3698 = vpop.f32.mrf.mxu0
      %v3699 = vadd.f32 0.0, %v3698
      %v3700 = vpop.f32.mrf.mxu0
      %v3701 = vpop.f32.mrf.mxu0
      %v3702 = vadd.f32 0.0, %v3701
      %v3703 = vpop.f32.mrf.mxu0
      %3704 = vmatprep.mubr.bf16.mxu0 0
      %3705 = vmatmul.mubr.bf16.gmra.mxu0 %v3572
      %v3706 = vpop.f32.mrf.mxu0
      %v3707 = vadd.f32 0.0, %v3706
      %v3708 = vpop.f32.mrf.mxu0
      %v3709 = vpop.f32.mrf.mxu0
      %v3710 = vadd.f32 0.0, %v3709
      %v3711 = vpop.f32.mrf.mxu0
      %3712 = vmatprep.mubr.bf16.mxu0 0
      %3713 = vmatmul.mubr.bf16.gmra.mxu0 %v3575
      %v3714 = vpop.f32.mrf.mxu0
      %v3715 = vadd.f32 0.0, %v3714
      %v3716 = vpop.f32.mrf.mxu0
      %v3717 = vpop.f32.mrf.mxu0
      %v3718 = vadd.f32 0.0, %v3717
      %v3719 = vpop.f32.mrf.mxu0
      %3720 = vmatprep.mubr.bf16.mxu0 0
      %3721 = vmatmul.mubr.bf16.gmra.mxu0 %v3578
      %v3722 = vpop.f32.mrf.mxu0
      %v3723 = vadd.f32 0.0, %v3722
      %v3724 = vpop.f32.mrf.mxu0
      %v3725 = vpop.f32.mrf.mxu0
      %v3726 = vadd.f32 0.0, %v3725
      %v3727 = vpop.f32.mrf.mxu0
      %3728 = vmatprep.mubr.bf16.mxu0 0
      %3729 = vmatmul.mubr.bf16.gmra.mxu0 %v3581
      %v3730 = vpop.f32.mrf.mxu0
      %v3731 = vadd.f32 0.0, %v3730
      %v3732 = vpop.f32.mrf.mxu0
      %v3733 = vpop.f32.mrf.mxu0
      %v3734 = vadd.f32 0.0, %v3733
      %v3735 = vpop.f32.mrf.mxu0
      %3736 = vmatprep.mubr.bf16.mxu0 0
      %3737 = vmatmul.mubr.bf16.gmra.mxu0 %v3584
      %v3738 = vpop.f32.mrf.mxu0
      %v3739 = vadd.f32 0.0, %v3738
      %v3740 = vpop.f32.mrf.mxu0
      %v3741 = vpop.f32.mrf.mxu0
      %v3742 = vadd.f32 0.0, %v3741
      %v3743 = vpop.f32.mrf.mxu0
      %3744 = vmatprep.mubr.bf16.mxu0 0
      %3745 = vmatmul.mubr.bf16.gmra.mxu0 %v3587
      %v3746 = vpop.f32.mrf.mxu0
      %v3747 = vadd.f32 0.0, %v3746
      %v3748 = vpop.f32.mrf.mxu0
      %v3749 = vpop.f32.mrf.mxu0
      %v3750 = vadd.f32 0.0, %v3749
      %v3751 = vpop.f32.mrf.mxu0
      %3752 = vdwg.mxu0
      %v3753 = vadd.f32 %v3428, %v3627
      %v3754 = vadd.f32 %v3429, %v3630
      %v3755 = vadd.f32 %v3430, %v3635
      %v3756 = vadd.f32 %v3431, %v3638
      %v3757 = vadd.f32 %v3432, %v3643
      %v3758 = vadd.f32 %v3433, %v3646
      %v3759 = vadd.f32 %v3434, %v3651
      %v3760 = vadd.f32 %v3435, %v3654
      %v3761 = vadd.f32 %v3436, %v3659
      %v3762 = vadd.f32 %v3437, %v3662
      %v3763 = vadd.f32 %v3438, %v3667
      %v3764 = vadd.f32 %v3439, %v3670
      %v3765 = vadd.f32 %v3440, %v3675
      %v3766 = vadd.f32 %v3441, %v3678
      %v3767 = vadd.f32 %v3442, %v3683
      %v3768 = vadd.f32 %v3443, %v3686
      %v3769 = vadd.f32 %v3444, %v3691
      %v3770 = vadd.f32 %v3445, %v3694
      %v3771 = vadd.f32 %v3446, %v3699
      %v3772 = vadd.f32 %v3447, %v3702
      %v3773 = vadd.f32 %v3448, %v3707
      %v3774 = vadd.f32 %v3449, %v3710
      %v3775 = vadd.f32 %v3450, %v3715
      %v3776 = vadd.f32 %v3451, %v3718
      %v3777 = vadd.f32 %v3452, %v3723
      %v3778 = vadd.f32 %v3453, %v3726
      %v3779 = vadd.f32 %v3454, %v3731
      %v3780 = vadd.f32 %v3455, %v3734
      %v3781 = vadd.f32 %v3456, %v3739
      %v3782 = vadd.f32 %v3457, %v3742
      %v3783 = vadd.f32 %v3458, %v3747
      %v3784 = vadd.f32 %v3459, %v3750
      %v3785 = vld [vmem:[%s1 + $0x8] sm:$0xc]
      %v3786 = vunpack.c.l.b16 %v1450
      %v3787 = vunpack.c.l.b16 %v1458
      %v3788 = vunpack.c.l.b16 %v1464
      %v3789 = vunpack.c.l.b16 %v1472
      %v3790 = vunpack.c.l.b16 %v1478
      %v3791 = vunpack.c.l.b16 %v1486
      %v3792 = vunpack.c.l.b16 %v1492
      %v3793 = vunpack.c.l.b16 %v1500
      %v3794 = vunpack.c.l.b16 %v1506
      %v3795 = vunpack.c.l.b16 %v1514
      %v3796 = vunpack.c.l.b16 %v1520
      %v3797 = vunpack.c.l.b16 %v1528
      %v3798 = vunpack.c.l.b16 %v1534
      %v3799 = vunpack.c.l.b16 %v1542
      %v3800 = vunpack.c.l.b16 %v1548
      %v3801 = vunpack.c.l.b16 %v1556
      %v3802 = vunpack.c.l.b16 %v1562
      %v3803 = vunpack.c.l.b16 %v1570
      %v3804 = vunpack.c.l.b16 %v1576
      %v3805 = vunpack.c.l.b16 %v1584
      %v3806 = vunpack.c.l.b16 %v1590
      %v3807 = vunpack.c.l.b16 %v1598
      %v3808 = vunpack.c.l.b16 %v1604
      %v3809 = vunpack.c.l.b16 %v1612
      %v3810 = vunpack.c.l.b16 %v1618
      %v3811 = vunpack.c.l.b16 %v1626
      %v3812 = vunpack.c.l.b16 %v1632
      %v3813 = vunpack.c.l.b16 %v1640
      %v3814 = vunpack.c.l.b16 %v1646
      %v3815 = vunpack.c.l.b16 %v1654
      %v3816 = vunpack.c.l.b16 %v1660
      %v3817 = vunpack.c.l.b16 %v1668
      %v3818 = vpack.c.b16 %v3787, %v3786
      %v3819 = vpack.c.b16 %v3789, %v3788
      %v3820 = vpack.c.b16 %v3791, %v3790
      %v3821 = vpack.c.b16 %v3793, %v3792
      %v3822 = vpack.c.b16 %v3795, %v3794
      %v3823 = vpack.c.b16 %v3797, %v3796
      %v3824 = vpack.c.b16 %v3799, %v3798
      %v3825 = vpack.c.b16 %v3801, %v3800
      %v3826 = vpack.c.b16 %v3803, %v3802
      %v3827 = vpack.c.b16 %v3805, %v3804
      %v3828 = vpack.c.b16 %v3807, %v3806
      %v3829 = vpack.c.b16 %v3809, %v3808
      %v3830 = vpack.c.b16 %v3811, %v3810
      %v3831 = vpack.c.b16 %v3813, %v3812
      %v3832 = vpack.c.b16 %v3815, %v3814
      %v3833 = vpack.c.b16 %v3817, %v3816
      %v3835 = vunpack.c.l.b16 %v3785
      %v3836 = vpack.c.b16 %v3835, %v3835
      %v3837 = vrot.slane %v3836, 2
      %v3839 = vsel %vm2396, %v3818, 0
      %v3842 = vsel %vm2396, %v3819, 0
      %v3845 = vsel %vm2396, %v3820, 0
      %v3848 = vsel %vm2396, %v3821, 0
      %v3851 = vsel %vm2396, %v3822, 0
      %v3854 = vsel %vm2396, %v3823, 0
      %v3857 = vsel %vm2396, %v3824, 0
      %v3860 = vsel %vm2396, %v3825, 0
      %v3863 = vsel %vm2396, %v3826, 0
      %v3866 = vsel %vm2396, %v3827, 0
      %v3869 = vsel %vm2396, %v3828, 0
      %v3872 = vsel %vm2396, %v3829, 0
      %v3875 = vsel %vm2396, %v3830, 0
      %v3878 = vsel %vm2396, %v3831, 0
      %v3881 = vsel %vm2396, %v3832, 0
      %v3884 = vsel %vm2396, %v3833, 0
      %v3887 = vsel %vm2445, %v3837, 0
      %3889 = vmatprep.subr.bf16.mxu0 0
      %3890 = vmatpush1.bf16.msra.mxu0 0
      %3891 = vmatprep.subr.bf16.mxu0 0
      %3892 = vmatpush1.bf16.msra.mxu0 0
      %3893 = vmatprep.subr.bf16.mxu0 0
      %3894 = vmatpush1.bf16.msra.mxu0 0
      %3895 = vmatprep.subr.bf16.mxu0 0
      %3896 = vmatpush1.bf16.msra.mxu0 0
      %3897 = vmatprep.subr.bf16.mxu0 0
      %3898 = vmatpush1.bf16.msra.mxu0 0
      %3899 = vmatprep.subr.bf16.mxu0 0
      %3900 = vmatpush1.bf16.msra.mxu0 0
      %3901 = vmatprep.subr.bf16.mxu0 0
      %3902 = vmatpush1.bf16.msra.mxu0 0
      %3903 = vmatprep.subr.bf16.mxu0 0
      %3904 = vmatpush1.bf16.msra.mxu0 %v3887
      %3905 = vmatprep.subr.bf16.mxu0 0
      %3906 = vmatpush2.bf16.msra.mxu0 0
      %3907 = vmatprep.subr.bf16.mxu0 0
      %3908 = vmatpush2.bf16.msra.mxu0 0
      %3909 = vmatprep.subr.bf16.mxu0 0
      %3910 = vmatpush2.bf16.msra.mxu0 0
      %3911 = vmatprep.subr.bf16.mxu0 0
      %3912 = vmatpush2.bf16.msra.mxu0 0
      %3913 = vmatprep.subr.bf16.mxu0 0
      %3914 = vmatpush2.bf16.msra.mxu0 0
      %3915 = vmatprep.subr.bf16.mxu0 0
      %3916 = vmatpush2.bf16.msra.mxu0 0
      %3917 = vmatprep.subr.bf16.mxu0 0
      %3918 = vmatpush2.bf16.msra.mxu0 0
      %3919 = vmatprep.subr.bf16.mxu0 0
      %3920 = vmatpush2.bf16.msra.mxu0 0
      %3921 = vmatprep.mubr.bf16.mxu0 0
      %3922 = vmatmul.mubr.bf16.gmra.mxu0 %v3839
      %v3923 = vpop.f32.mrf.mxu0
      %v3924 = vadd.f32 0.0, %v3923
      %v3925 = vpop.f32.mrf.mxu0
      %v3926 = vpop.f32.mrf.mxu0
      %v3927 = vadd.f32 0.0, %v3926
      %v3928 = vpop.f32.mrf.mxu0
      %3929 = vmatprep.mubr.bf16.mxu0 0
      %3930 = vmatmul.mubr.bf16.gmra.mxu0 %v3842
      %v3931 = vpop.f32.mrf.mxu0
      %v3932 = vadd.f32 0.0, %v3931
      %v3933 = vpop.f32.mrf.mxu0
      %v3934 = vpop.f32.mrf.mxu0
      %v3935 = vadd.f32 0.0, %v3934
      %v3936 = vpop.f32.mrf.mxu0
      %3937 = vmatprep.mubr.bf16.mxu0 0
      %3938 = vmatmul.mubr.bf16.gmra.mxu0 %v3845
      %v3939 = vpop.f32.mrf.mxu0
      %v3940 = vadd.f32 0.0, %v3939
      %v3941 = vpop.f32.mrf.mxu0
      %v3942 = vpop.f32.mrf.mxu0
      %v3943 = vadd.f32 0.0, %v3942
      %v3944 = vpop.f32.mrf.mxu0
      %3945 = vmatprep.mubr.bf16.mxu0 0
      %3946 = vmatmul.mubr.bf16.gmra.mxu0 %v3848
      %v3947 = vpop.f32.mrf.mxu0
      %v3948 = vadd.f32 0.0, %v3947
      %v3949 = vpop.f32.mrf.mxu0
      %v3950 = vpop.f32.mrf.mxu0
      %v3951 = vadd.f32 0.0, %v3950
      %v3952 = vpop.f32.mrf.mxu0
      %3953 = vmatprep.mubr.bf16.mxu0 0
      %3954 = vmatmul.mubr.bf16.gmra.mxu0 %v3851
      %v3955 = vpop.f32.mrf.mxu0
      %v3956 = vadd.f32 0.0, %v3955
      %v3957 = vpop.f32.mrf.mxu0
      %v3958 = vpop.f32.mrf.mxu0
      %v3959 = vadd.f32 0.0, %v3958
      %v3960 = vpop.f32.mrf.mxu0
      %3961 = vmatprep.mubr.bf16.mxu0 0
      %3962 = vmatmul.mubr.bf16.gmra.mxu0 %v3854
      %v3963 = vpop.f32.mrf.mxu0
      %v3964 = vadd.f32 0.0, %v3963
      %v3965 = vpop.f32.mrf.mxu0
      %v3966 = vpop.f32.mrf.mxu0
      %v3967 = vadd.f32 0.0, %v3966
      %v3968 = vpop.f32.mrf.mxu0
      %3969 = vmatprep.mubr.bf16.mxu0 0
      %3970 = vmatmul.mubr.bf16.gmra.mxu0 %v3857
      %v3971 = vpop.f32.mrf.mxu0
      %v3972 = vadd.f32 0.0, %v3971
      %v3973 = vpop.f32.mrf.mxu0
      %v3974 = vpop.f32.mrf.mxu0
      %v3975 = vadd.f32 0.0, %v3974
      %v3976 = vpop.f32.mrf.mxu0
      %3977 = vmatprep.mubr.bf16.mxu0 0
      %3978 = vmatmul.mubr.bf16.gmra.mxu0 %v3860
      %v3979 = vpop.f32.mrf.mxu0
      %v3980 = vadd.f32 0.0, %v3979
      %v3981 = vpop.f32.mrf.mxu0
      %v3982 = vpop.f32.mrf.mxu0
      %v3983 = vadd.f32 0.0, %v3982
      %v3984 = vpop.f32.mrf.mxu0
      %3985 = vmatprep.mubr.bf16.mxu0 0
      %3986 = vmatmul.mubr.bf16.gmra.mxu0 %v3863
      %v3987 = vpop.f32.mrf.mxu0
      %v3988 = vadd.f32 0.0, %v3987
      %v3989 = vpop.f32.mrf.mxu0
      %v3990 = vpop.f32.mrf.mxu0
      %v3991 = vadd.f32 0.0, %v3990
      %v3992 = vpop.f32.mrf.mxu0
      %3993 = vmatprep.mubr.bf16.mxu0 0
      %3994 = vmatmul.mubr.bf16.gmra.mxu0 %v3866
      %v3995 = vpop.f32.mrf.mxu0
      %v3996 = vadd.f32 0.0, %v3995
      %v3997 = vpop.f32.mrf.mxu0
      %v3998 = vpop.f32.mrf.mxu0
      %v3999 = vadd.f32 0.0, %v3998
      %v4000 = vpop.f32.mrf.mxu0
      %4001 = vmatprep.mubr.bf16.mxu0 0
      %4002 = vmatmul.mubr.bf16.gmra.mxu0 %v3869
      %v4003 = vpop.f32.mrf.mxu0
      %v4004 = vadd.f32 0.0, %v4003
      %v4005 = vpop.f32.mrf.mxu0
      %v4006 = vpop.f32.mrf.mxu0
      %v4007 = vadd.f32 0.0, %v4006
      %v4008 = vpop.f32.mrf.mxu0
      %4009 = vmatprep.mubr.bf16.mxu0 0
      %4010 = vmatmul.mubr.bf16.gmra.mxu0 %v3872
      %v4011 = vpop.f32.mrf.mxu0
      %v4012 = vadd.f32 0.0, %v4011
      %v4013 = vpop.f32.mrf.mxu0
      %v4014 = vpop.f32.mrf.mxu0
      %v4015 = vadd.f32 0.0, %v4014
      %v4016 = vpop.f32.mrf.mxu0
      %4017 = vmatprep.mubr.bf16.mxu0 0
      %4018 = vmatmul.mubr.bf16.gmra.mxu0 %v3875
      %v4019 = vpop.f32.mrf.mxu0
      %v4020 = vadd.f32 0.0, %v4019
      %v4021 = vpop.f32.mrf.mxu0
      %v4022 = vpop.f32.mrf.mxu0
      %v4023 = vadd.f32 0.0, %v4022
      %v4024 = vpop.f32.mrf.mxu0
      %4025 = vmatprep.mubr.bf16.mxu0 0
      %4026 = vmatmul.mubr.bf16.gmra.mxu0 %v3878
      %v4027 = vpop.f32.mrf.mxu0
      %v4028 = vadd.f32 0.0, %v4027
      %v4029 = vpop.f32.mrf.mxu0
      %v4030 = vpop.f32.mrf.mxu0
      %v4031 = vadd.f32 0.0, %v4030
      %v4032 = vpop.f32.mrf.mxu0
      %4033 = vmatprep.mubr.bf16.mxu0 0
      %4034 = vmatmul.mubr.bf16.gmra.mxu0 %v3881
      %v4035 = vpop.f32.mrf.mxu0
      %v4036 = vadd.f32 0.0, %v4035
      %v4037 = vpop.f32.mrf.mxu0
      %v4038 = vpop.f32.mrf.mxu0
      %v4039 = vadd.f32 0.0, %v4038
      %v4040 = vpop.f32.mrf.mxu0
      %4041 = vmatprep.mubr.bf16.mxu0 0
      %4042 = vmatmul.mubr.bf16.gmra.mxu0 %v3884
      %v4043 = vpop.f32.mrf.mxu0
      %v4044 = vadd.f32 0.0, %v4043
      %v4045 = vpop.f32.mrf.mxu0
      %v4046 = vpop.f32.mrf.mxu0
      %v4047 = vadd.f32 0.0, %v4046
      %v4048 = vpop.f32.mrf.mxu0
      %4049 = vdwg.mxu0
      %v4050 = vadd.f32 %v3753, %v3924
      %v4051 = vadd.f32 %v3754, %v3927
      %v4052 = vadd.f32 %v3755, %v3932
      %v4053 = vadd.f32 %v3756, %v3935
      %v4054 = vadd.f32 %v3757, %v3940
      %v4055 = vadd.f32 %v3758, %v3943
      %v4056 = vadd.f32 %v3759, %v3948
      %v4057 = vadd.f32 %v3760, %v3951
      %v4058 = vadd.f32 %v3761, %v3956
      %v4059 = vadd.f32 %v3762, %v3959
      %v4060 = vadd.f32 %v3763, %v3964
      %v4061 = vadd.f32 %v3764, %v3967
      %v4062 = vadd.f32 %v3765, %v3972
      %v4063 = vadd.f32 %v3766, %v3975
      %v4064 = vadd.f32 %v3767, %v3980
      %v4065 = vadd.f32 %v3768, %v3983
      %v4066 = vadd.f32 %v3769, %v3988
      %v4067 = vadd.f32 %v3770, %v3991
      %v4068 = vadd.f32 %v3771, %v3996
      %v4069 = vadd.f32 %v3772, %v3999
      %v4070 = vadd.f32 %v3773, %v4004
      %v4071 = vadd.f32 %v3774, %v4007
      %v4072 = vadd.f32 %v3775, %v4012
      %v4073 = vadd.f32 %v3776, %v4015
      %v4074 = vadd.f32 %v3777, %v4020
      %v4075 = vadd.f32 %v3778, %v4023
      %v4076 = vadd.f32 %v3779, %v4028
      %v4077 = vadd.f32 %v3780, %v4031
      %v4078 = vadd.f32 %v3781, %v4036
      %v4079 = vadd.f32 %v3782, %v4039
      %v4080 = vadd.f32 %v3783, %v4044
      %v4081 = vadd.f32 %v3784, %v4047
      %v4082 = vld [vmem:[%s1 + $0xc] sm:$0x3]
      %v4083 = vunpack.c.l.b16 %v1730
      %v4084 = vunpack.c.l.b16 %v1739
      %v4085 = vunpack.c.l.b16 %v1752
      %v4086 = vunpack.c.l.b16 %v1761
      %v4087 = vunpack.c.l.b16 %v1774
      %v4088 = vunpack.c.l.b16 %v1783
      %v4089 = vunpack.c.l.b16 %v1796
      %v4090 = vunpack.c.l.b16 %v1805
      %v4091 = vunpack.c.l.b16 %v1818
      %v4092 = vunpack.c.l.b16 %v1827
      %v4093 = vunpack.c.l.b16 %v1840
      %v4094 = vunpack.c.l.b16 %v1849
      %v4095 = vunpack.c.l.b16 %v1862
      %v4096 = vunpack.c.l.b16 %v1871
      %v4097 = vunpack.c.l.b16 %v1884
      %v4098 = vunpack.c.l.b16 %v1893
      %v4099 = vunpack.c.l.b16 %v1906
      %v4100 = vunpack.c.l.b16 %v1915
      %v4101 = vunpack.c.l.b16 %v1928
      %v4102 = vunpack.c.l.b16 %v1937
      %v4103 = vunpack.c.l.b16 %v1950
      %v4104 = vunpack.c.l.b16 %v1959
      %v4105 = vunpack.c.l.b16 %v1972
      %v4106 = vunpack.c.l.b16 %v1981
      %v4107 = vunpack.c.l.b16 %v1994
      %v4108 = vunpack.c.l.b16 %v2003
      %v4109 = vunpack.c.l.b16 %v2016
      %v4110 = vunpack.c.l.b16 %v2025
      %v4111 = vunpack.c.l.b16 %v2038
      %v4112 = vunpack.c.l.b16 %v2047
      %v4113 = vunpack.c.l.b16 %v2060
      %v4114 = vunpack.c.l.b16 %v2069
      %v4115 = vpack.c.b16 %v4084, %v4083
      %v4116 = vpack.c.b16 %v4086, %v4085
      %v4117 = vpack.c.b16 %v4088, %v4087
      %v4118 = vpack.c.b16 %v4090, %v4089
      %v4119 = vpack.c.b16 %v4092, %v4091
      %v4120 = vpack.c.b16 %v4094, %v4093
      %v4121 = vpack.c.b16 %v4096, %v4095
      %v4122 = vpack.c.b16 %v4098, %v4097
      %v4123 = vpack.c.b16 %v4100, %v4099
      %v4124 = vpack.c.b16 %v4102, %v4101
      %v4125 = vpack.c.b16 %v4104, %v4103
      %v4126 = vpack.c.b16 %v4106, %v4105
      %v4127 = vpack.c.b16 %v4108, %v4107
      %v4128 = vpack.c.b16 %v4110, %v4109
      %v4129 = vpack.c.b16 %v4112, %v4111
      %v4130 = vpack.c.b16 %v4114, %v4113
      %v4132 = vsel %vm2396, %v4115, 0
      %v4135 = vsel %vm2396, %v4116, 0
      %v4138 = vsel %vm2396, %v4117, 0
      %v4141 = vsel %vm2396, %v4118, 0
      %v4144 = vsel %vm2396, %v4119, 0
      %v4147 = vsel %vm2396, %v4120, 0
      %v4150 = vsel %vm2396, %v4121, 0
      %v4153 = vsel %vm2396, %v4122, 0
      %v4156 = vsel %vm2396, %v4123, 0
      %v4159 = vsel %vm2396, %v4124, 0
      %v4162 = vsel %vm2396, %v4125, 0
      %v4165 = vsel %vm2396, %v4126, 0
      %v4168 = vsel %vm2396, %v4127, 0
      %v4171 = vsel %vm2396, %v4128, 0
      %v4174 = vsel %vm2396, %v4129, 0
      %v4177 = vsel %vm2396, %v4130, 0
      %v4180 = vsel %vm2445, %v4082, 0
      %4182 = vmatprep.subr.bf16.mxu0 0
      %4183 = vmatpush1.bf16.msra.mxu0 0
      %4184 = vmatprep.subr.bf16.mxu0 0
      %4185 = vmatpush1.bf16.msra.mxu0 0
      %4186 = vmatprep.subr.bf16.mxu0 0
      %4187 = vmatpush1.bf16.msra.mxu0 0
      %4188 = vmatprep.subr.bf16.mxu0 0
      %4189 = vmatpush1.bf16.msra.mxu0 0
      %4190 = vmatprep.subr.bf16.mxu0 0
      %4191 = vmatpush1.bf16.msra.mxu0 0
      %4192 = vmatprep.subr.bf16.mxu0 0
      %4193 = vmatpush1.bf16.msra.mxu0 0
      %4194 = vmatprep.subr.bf16.mxu0 0
      %4195 = vmatpush1.bf16.msra.mxu0 0
      %4196 = vmatprep.subr.bf16.mxu0 0
      %4197 = vmatpush1.bf16.msra.mxu0 %v4180
      %4198 = vmatprep.subr.bf16.mxu0 0
      %4199 = vmatpush2.bf16.msra.mxu0 0
      %4200 = vmatprep.subr.bf16.mxu0 0
      %4201 = vmatpush2.bf16.msra.mxu0 0
      %4202 = vmatprep.subr.bf16.mxu0 0
      %4203 = vmatpush2.bf16.msra.mxu0 0
      %4204 = vmatprep.subr.bf16.mxu0 0
      %4205 = vmatpush2.bf16.msra.mxu0 0
      %4206 = vmatprep.subr.bf16.mxu0 0
      %4207 = vmatpush2.bf16.msra.mxu0 0
      %4208 = vmatprep.subr.bf16.mxu0 0
      %4209 = vmatpush2.bf16.msra.mxu0 0
      %4210 = vmatprep.subr.bf16.mxu0 0
      %4211 = vmatpush2.bf16.msra.mxu0 0
      %4212 = vmatprep.subr.bf16.mxu0 0
      %4213 = vmatpush2.bf16.msra.mxu0 0
      %4214 = vmatprep.mubr.bf16.mxu0 0
      %4215 = vmatmul.mubr.bf16.gmra.mxu0 %v4132
      %v4216 = vpop.f32.mrf.mxu0
      %v4217 = vadd.f32 0.0, %v4216
      %v4218 = vpop.f32.mrf.mxu0
      %v4219 = vpop.f32.mrf.mxu0
      %v4220 = vadd.f32 0.0, %v4219
      %v4221 = vpop.f32.mrf.mxu0
      %4222 = vmatprep.mubr.bf16.mxu0 0
      %4223 = vmatmul.mubr.bf16.gmra.mxu0 %v4135
      %v4224 = vpop.f32.mrf.mxu0
      %v4225 = vadd.f32 0.0, %v4224
      %v4226 = vpop.f32.mrf.mxu0
      %v4227 = vpop.f32.mrf.mxu0
      %v4228 = vadd.f32 0.0, %v4227
      %v4229 = vpop.f32.mrf.mxu0
      %4230 = vmatprep.mubr.bf16.mxu0 0
      %4231 = vmatmul.mubr.bf16.gmra.mxu0 %v4138
      %v4232 = vpop.f32.mrf.mxu0
      %v4233 = vadd.f32 0.0, %v4232
      %v4234 = vpop.f32.mrf.mxu0
      %v4235 = vpop.f32.mrf.mxu0
      %v4236 = vadd.f32 0.0, %v4235
      %v4237 = vpop.f32.mrf.mxu0
      %4238 = vmatprep.mubr.bf16.mxu0 0
      %4239 = vmatmul.mubr.bf16.gmra.mxu0 %v4141
      %v4240 = vpop.f32.mrf.mxu0
      %v4241 = vadd.f32 0.0, %v4240
      %v4242 = vpop.f32.mrf.mxu0
      %v4243 = vpop.f32.mrf.mxu0
      %v4244 = vadd.f32 0.0, %v4243
      %v4245 = vpop.f32.mrf.mxu0
      %4246 = vmatprep.mubr.bf16.mxu0 0
      %4247 = vmatmul.mubr.bf16.gmra.mxu0 %v4144
      %v4248 = vpop.f32.mrf.mxu0
      %v4249 = vadd.f32 0.0, %v4248
      %v4250 = vpop.f32.mrf.mxu0
      %v4251 = vpop.f32.mrf.mxu0
      %v4252 = vadd.f32 0.0, %v4251
      %v4253 = vpop.f32.mrf.mxu0
      %4254 = vmatprep.mubr.bf16.mxu0 0
      %4255 = vmatmul.mubr.bf16.gmra.mxu0 %v4147
      %v4256 = vpop.f32.mrf.mxu0
      %v4257 = vadd.f32 0.0, %v4256
      %v4258 = vpop.f32.mrf.mxu0
      %v4259 = vpop.f32.mrf.mxu0
      %v4260 = vadd.f32 0.0, %v4259
      %v4261 = vpop.f32.mrf.mxu0
      %4262 = vmatprep.mubr.bf16.mxu0 0
      %4263 = vmatmul.mubr.bf16.gmra.mxu0 %v4150
      %v4264 = vpop.f32.mrf.mxu0
      %v4265 = vadd.f32 0.0, %v4264
      %v4266 = vpop.f32.mrf.mxu0
      %v4267 = vpop.f32.mrf.mxu0
      %v4268 = vadd.f32 0.0, %v4267
      %v4269 = vpop.f32.mrf.mxu0
      %4270 = vmatprep.mubr.bf16.mxu0 0
      %4271 = vmatmul.mubr.bf16.gmra.mxu0 %v4153
      %v4272 = vpop.f32.mrf.mxu0
      %v4273 = vadd.f32 0.0, %v4272
      %v4274 = vpop.f32.mrf.mxu0
      %v4275 = vpop.f32.mrf.mxu0
      %v4276 = vadd.f32 0.0, %v4275
      %v4277 = vpop.f32.mrf.mxu0
      %4278 = vmatprep.mubr.bf16.mxu0 0
      %4279 = vmatmul.mubr.bf16.gmra.mxu0 %v4156
      %v4280 = vpop.f32.mrf.mxu0
      %v4281 = vadd.f32 0.0, %v4280
      %v4282 = vpop.f32.mrf.mxu0
      %v4283 = vpop.f32.mrf.mxu0
      %v4284 = vadd.f32 0.0, %v4283
      %v4285 = vpop.f32.mrf.mxu0
      %4286 = vmatprep.mubr.bf16.mxu0 0
      %4287 = vmatmul.mubr.bf16.gmra.mxu0 %v4159
      %v4288 = vpop.f32.mrf.mxu0
      %v4289 = vadd.f32 0.0, %v4288
      %v4290 = vpop.f32.mrf.mxu0
      %v4291 = vpop.f32.mrf.mxu0
      %v4292 = vadd.f32 0.0, %v4291
      %v4293 = vpop.f32.mrf.mxu0
      %4294 = vmatprep.mubr.bf16.mxu0 0
      %4295 = vmatmul.mubr.bf16.gmra.mxu0 %v4162
      %v4296 = vpop.f32.mrf.mxu0
      %v4297 = vadd.f32 0.0, %v4296
      %v4298 = vpop.f32.mrf.mxu0
      %v4299 = vpop.f32.mrf.mxu0
      %v4300 = vadd.f32 0.0, %v4299
      %v4301 = vpop.f32.mrf.mxu0
      %4302 = vmatprep.mubr.bf16.mxu0 0
      %4303 = vmatmul.mubr.bf16.gmra.mxu0 %v4165
      %v4304 = vpop.f32.mrf.mxu0
      %v4305 = vadd.f32 0.0, %v4304
      %v4306 = vpop.f32.mrf.mxu0
      %v4307 = vpop.f32.mrf.mxu0
      %v4308 = vadd.f32 0.0, %v4307
      %v4309 = vpop.f32.mrf.mxu0
      %4310 = vmatprep.mubr.bf16.mxu0 0
      %4311 = vmatmul.mubr.bf16.gmra.mxu0 %v4168
      %v4312 = vpop.f32.mrf.mxu0
      %v4313 = vadd.f32 0.0, %v4312
      %v4314 = vpop.f32.mrf.mxu0
      %v4315 = vpop.f32.mrf.mxu0
      %v4316 = vadd.f32 0.0, %v4315
      %v4317 = vpop.f32.mrf.mxu0
      %4318 = vmatprep.mubr.bf16.mxu0 0
      %4319 = vmatmul.mubr.bf16.gmra.mxu0 %v4171
      %v4320 = vpop.f32.mrf.mxu0
      %v4321 = vadd.f32 0.0, %v4320
      %v4322 = vpop.f32.mrf.mxu0
      %v4323 = vpop.f32.mrf.mxu0
      %v4324 = vadd.f32 0.0, %v4323
      %v4325 = vpop.f32.mrf.mxu0
      %4326 = vmatprep.mubr.bf16.mxu0 0
      %4327 = vmatmul.mubr.bf16.gmra.mxu0 %v4174
      %v4328 = vpop.f32.mrf.mxu0
      %v4329 = vadd.f32 0.0, %v4328
      %v4330 = vpop.f32.mrf.mxu0
      %v4331 = vpop.f32.mrf.mxu0
      %v4332 = vadd.f32 0.0, %v4331
      %v4333 = vpop.f32.mrf.mxu0
      %4334 = vmatprep.mubr.bf16.mxu0 0
      %4335 = vmatmul.mubr.bf16.gmra.mxu0 %v4177
      %v4336 = vpop.f32.mrf.mxu0
      %v4337 = vadd.f32 0.0, %v4336
      %v4338 = vpop.f32.mrf.mxu0
      %v4339 = vpop.f32.mrf.mxu0
      %v4340 = vadd.f32 0.0, %v4339
      %v4341 = vpop.f32.mrf.mxu0
      %4342 = vdwg.mxu0
      %v4343 = vadd.f32 %v4050, %v4217
      %v4344 = vadd.f32 %v4051, %v4220
      %v4345 = vadd.f32 %v4052, %v4225
      %v4346 = vadd.f32 %v4053, %v4228
      %v4347 = vadd.f32 %v4054, %v4233
      %v4348 = vadd.f32 %v4055, %v4236
      %v4349 = vadd.f32 %v4056, %v4241
      %v4350 = vadd.f32 %v4057, %v4244
      %v4351 = vadd.f32 %v4058, %v4249
      %v4352 = vadd.f32 %v4059, %v4252
      %v4353 = vadd.f32 %v4060, %v4257
      %v4354 = vadd.f32 %v4061, %v4260
      %v4355 = vadd.f32 %v4062, %v4265
      %v4356 = vadd.f32 %v4063, %v4268
      %v4357 = vadd.f32 %v4064, %v4273
      %v4358 = vadd.f32 %v4065, %v4276
      %v4359 = vadd.f32 %v4066, %v4281
      %v4360 = vadd.f32 %v4067, %v4284
      %v4361 = vadd.f32 %v4068, %v4289
      %v4362 = vadd.f32 %v4069, %v4292
      %v4363 = vadd.f32 %v4070, %v4297
      %v4364 = vadd.f32 %v4071, %v4300
      %v4365 = vadd.f32 %v4072, %v4305
      %v4366 = vadd.f32 %v4073, %v4308
      %v4367 = vadd.f32 %v4074, %v4313
      %v4368 = vadd.f32 %v4075, %v4316
      %v4369 = vadd.f32 %v4076, %v4321
      %v4370 = vadd.f32 %v4077, %v4324
      %v4371 = vadd.f32 %v4078, %v4329
      %v4372 = vadd.f32 %v4079, %v4332
      %v4373 = vadd.f32 %v4080, %v4337
      %v4374 = vadd.f32 %v4081, %v4340
      %v4375 = vld [vmem:[%s1 + $0xc] sm:$0xc]
      %v4408 = vunpack.c.l.b16 %v1671
      %v4409 = vunpack.c.l.b16 %v1672
      %v4410 = vunpack.c.l.b16 %v1674
      %v4411 = vunpack.c.l.b16 %v1675
      %v4412 = vunpack.c.l.b16 %v1677
      %v4413 = vunpack.c.l.b16 %v1678
      %v4414 = vunpack.c.l.b16 %v1680
      %v4415 = vunpack.c.l.b16 %v1681
      %v4416 = vunpack.c.l.b16 %v1683
      %v4417 = vunpack.c.l.b16 %v1684
      %v4418 = vunpack.c.l.b16 %v1686
      %v4419 = vunpack.c.l.b16 %v1687
      %v4420 = vunpack.c.l.b16 %v1689
      %v4421 = vunpack.c.l.b16 %v1690
      %v4422 = vunpack.c.l.b16 %v1692
      %v4423 = vunpack.c.l.b16 %v1693
      %v4424 = vunpack.c.l.b16 %v1695
      %v4425 = vunpack.c.l.b16 %v1696
      %v4426 = vunpack.c.l.b16 %v1698
      %v4427 = vunpack.c.l.b16 %v1699
      %v4428 = vunpack.c.l.b16 %v1701
      %v4429 = vunpack.c.l.b16 %v1702
      %v4430 = vunpack.c.l.b16 %v1704
      %v4431 = vunpack.c.l.b16 %v1705
      %v4432 = vunpack.c.l.b16 %v1707
      %v4433 = vunpack.c.l.b16 %v1708
      %v4434 = vunpack.c.l.b16 %v1710
      %v4435 = vunpack.c.l.b16 %v1711
      %v4436 = vunpack.c.l.b16 %v1713
      %v4437 = vunpack.c.l.b16 %v1714
      %v4438 = vunpack.c.l.b16 %v1716
      %v4439 = vunpack.c.l.b16 %v1717
      %v4440 = vpack.c.b16 %v4409, %v4408
      %v4441 = vpack.c.b16 %v4411, %v4410
      %v4442 = vpack.c.b16 %v4413, %v4412
      %v4443 = vpack.c.b16 %v4415, %v4414
      %v4444 = vpack.c.b16 %v4417, %v4416
      %v4445 = vpack.c.b16 %v4419, %v4418
      %v4446 = vpack.c.b16 %v4421, %v4420
      %v4447 = vpack.c.b16 %v4423, %v4422
      %v4448 = vpack.c.b16 %v4425, %v4424
      %v4449 = vpack.c.b16 %v4427, %v4426
      %v4450 = vpack.c.b16 %v4429, %v4428
      %v4451 = vpack.c.b16 %v4431, %v4430
      %v4452 = vpack.c.b16 %v4433, %v4432
      %v4453 = vpack.c.b16 %v4435, %v4434
      %v4454 = vpack.c.b16 %v4437, %v4436
      %v4455 = vpack.c.b16 %v4439, %v4438
      %v4457 = vunpack.c.l.b16 %v4375
      %v4458 = vpack.c.b16 %v4457, %v4457
      %v4459 = vrot.slane %v4458, 2
      %v4461 = vsel %vm2396, %v4440, 0
      %v4464 = vsel %vm2396, %v4441, 0
      %v4467 = vsel %vm2396, %v4442, 0
      %v4470 = vsel %vm2396, %v4443, 0
      %v4473 = vsel %vm2396, %v4444, 0
      %v4476 = vsel %vm2396, %v4445, 0
      %v4479 = vsel %vm2396, %v4446, 0
      %v4482 = vsel %vm2396, %v4447, 0
      %v4485 = vsel %vm2396, %v4448, 0
      %v4488 = vsel %vm2396, %v4449, 0
      %v4491 = vsel %vm2396, %v4450, 0
      %v4494 = vsel %vm2396, %v4451, 0
      %v4497 = vsel %vm2396, %v4452, 0
      %v4500 = vsel %vm2396, %v4453, 0
      %v4503 = vsel %vm2396, %v4454, 0
      %v4506 = vsel %vm2396, %v4455, 0
      %v4509 = vsel %vm2445, %v4459, 0
      %4511 = vmatprep.subr.bf16.mxu0 0
      %4512 = vmatpush1.bf16.msra.mxu0 0
      %4513 = vmatprep.subr.bf16.mxu0 0
      %4514 = vmatpush1.bf16.msra.mxu0 0
      %4515 = vmatprep.subr.bf16.mxu0 0
      %4516 = vmatpush1.bf16.msra.mxu0 0
      %4517 = vmatprep.subr.bf16.mxu0 0
      %4518 = vmatpush1.bf16.msra.mxu0 0
      %4519 = vmatprep.subr.bf16.mxu0 0
      %4520 = vmatpush1.bf16.msra.mxu0 0
      %4521 = vmatprep.subr.bf16.mxu0 0
      %4522 = vmatpush1.bf16.msra.mxu0 0
      %4523 = vmatprep.subr.bf16.mxu0 0
      %4524 = vmatpush1.bf16.msra.mxu0 0
      %4525 = vmatprep.subr.bf16.mxu0 0
      %4526 = vmatpush1.bf16.msra.mxu0 %v4509
      %4527 = vmatprep.subr.bf16.mxu0 0
      %4528 = vmatpush2.bf16.msra.mxu0 0
      %4529 = vmatprep.subr.bf16.mxu0 0
      %4530 = vmatpush2.bf16.msra.mxu0 0
      %4531 = vmatprep.subr.bf16.mxu0 0
      %4532 = vmatpush2.bf16.msra.mxu0 0
      %4533 = vmatprep.subr.bf16.mxu0 0
      %4534 = vmatpush2.bf16.msra.mxu0 0
      %4535 = vmatprep.subr.bf16.mxu0 0
      %4536 = vmatpush2.bf16.msra.mxu0 0
      %4537 = vmatprep.subr.bf16.mxu0 0
      %4538 = vmatpush2.bf16.msra.mxu0 0
      %4539 = vmatprep.subr.bf16.mxu0 0
      %4540 = vmatpush2.bf16.msra.mxu0 0
      %4541 = vmatprep.subr.bf16.mxu0 0
      %4542 = vmatpush2.bf16.msra.mxu0 0
      %4543 = vmatprep.mubr.bf16.mxu0 0
      %4544 = vmatmul.mubr.bf16.gmra.mxu0 %v4461
      %v4545 = vpop.f32.mrf.mxu0
      %v4546 = vadd.f32 0.0, %v4545
      %v4547 = vpop.f32.mrf.mxu0
      %v4548 = vpop.f32.mrf.mxu0
      %v4549 = vadd.f32 0.0, %v4548
      %v4550 = vpop.f32.mrf.mxu0
      %4551 = vmatprep.mubr.bf16.mxu0 0
      %4552 = vmatmul.mubr.bf16.gmra.mxu0 %v4464
      %v4553 = vpop.f32.mrf.mxu0
      %v4554 = vadd.f32 0.0, %v4553
      %v4555 = vpop.f32.mrf.mxu0
      %v4556 = vpop.f32.mrf.mxu0
      %v4557 = vadd.f32 0.0, %v4556
      %v4558 = vpop.f32.mrf.mxu0
      %4559 = vmatprep.mubr.bf16.mxu0 0
      %4560 = vmatmul.mubr.bf16.gmra.mxu0 %v4467
      %v4561 = vpop.f32.mrf.mxu0
      %v4562 = vadd.f32 0.0, %v4561
      %v4563 = vpop.f32.mrf.mxu0
      %v4564 = vpop.f32.mrf.mxu0
      %v4565 = vadd.f32 0.0, %v4564
      %v4566 = vpop.f32.mrf.mxu0
      %4567 = vmatprep.mubr.bf16.mxu0 0
      %4568 = vmatmul.mubr.bf16.gmra.mxu0 %v4470
      %v4569 = vpop.f32.mrf.mxu0
      %v4570 = vadd.f32 0.0, %v4569
      %v4571 = vpop.f32.mrf.mxu0
      %v4572 = vpop.f32.mrf.mxu0
      %v4573 = vadd.f32 0.0, %v4572
      %v4574 = vpop.f32.mrf.mxu0
      %4575 = vmatprep.mubr.bf16.mxu0 0
      %4576 = vmatmul.mubr.bf16.gmra.mxu0 %v4473
      %v4577 = vpop.f32.mrf.mxu0
      %v4578 = vadd.f32 0.0, %v4577
      %v4579 = vpop.f32.mrf.mxu0
      %v4580 = vpop.f32.mrf.mxu0
      %v4581 = vadd.f32 0.0, %v4580
      %v4582 = vpop.f32.mrf.mxu0
      %4583 = vmatprep.mubr.bf16.mxu0 0
      %4584 = vmatmul.mubr.bf16.gmra.mxu0 %v4476
      %v4585 = vpop.f32.mrf.mxu0
      %v4586 = vadd.f32 0.0, %v4585
      %v4587 = vpop.f32.mrf.mxu0
      %v4588 = vpop.f32.mrf.mxu0
      %v4589 = vadd.f32 0.0, %v4588
      %v4590 = vpop.f32.mrf.mxu0
      %4591 = vmatprep.mubr.bf16.mxu0 0
      %4592 = vmatmul.mubr.bf16.gmra.mxu0 %v4479
      %v4593 = vpop.f32.mrf.mxu0
      %v4594 = vadd.f32 0.0, %v4593
      %v4595 = vpop.f32.mrf.mxu0
      %v4596 = vpop.f32.mrf.mxu0
      %v4597 = vadd.f32 0.0, %v4596
      %v4598 = vpop.f32.mrf.mxu0
      %4599 = vmatprep.mubr.bf16.mxu0 0
      %4600 = vmatmul.mubr.bf16.gmra.mxu0 %v4482
      %v4601 = vpop.f32.mrf.mxu0
      %v4602 = vadd.f32 0.0, %v4601
      %v4603 = vpop.f32.mrf.mxu0
      %v4604 = vpop.f32.mrf.mxu0
      %v4605 = vadd.f32 0.0, %v4604
      %v4606 = vpop.f32.mrf.mxu0
      %4607 = vmatprep.mubr.bf16.mxu0 0
      %4608 = vmatmul.mubr.bf16.gmra.mxu0 %v4485
      %v4609 = vpop.f32.mrf.mxu0
      %v4610 = vadd.f32 0.0, %v4609
      %v4611 = vpop.f32.mrf.mxu0
      %v4612 = vpop.f32.mrf.mxu0
      %v4613 = vadd.f32 0.0, %v4612
      %v4614 = vpop.f32.mrf.mxu0
      %4615 = vmatprep.mubr.bf16.mxu0 0
      %4616 = vmatmul.mubr.bf16.gmra.mxu0 %v4488
      %v4617 = vpop.f32.mrf.mxu0
      %v4618 = vadd.f32 0.0, %v4617
      %v4619 = vpop.f32.mrf.mxu0
      %v4620 = vpop.f32.mrf.mxu0
      %v4621 = vadd.f32 0.0, %v4620
      %v4622 = vpop.f32.mrf.mxu0
      %4623 = vmatprep.mubr.bf16.mxu0 0
      %4624 = vmatmul.mubr.bf16.gmra.mxu0 %v4491
      %v4625 = vpop.f32.mrf.mxu0
      %v4626 = vadd.f32 0.0, %v4625
      %v4627 = vpop.f32.mrf.mxu0
      %v4628 = vpop.f32.mrf.mxu0
      %v4629 = vadd.f32 0.0, %v4628
      %v4630 = vpop.f32.mrf.mxu0
      %4631 = vmatprep.mubr.bf16.mxu0 0
      %4632 = vmatmul.mubr.bf16.gmra.mxu0 %v4494
      %v4633 = vpop.f32.mrf.mxu0
      %v4634 = vadd.f32 0.0, %v4633
      %v4635 = vpop.f32.mrf.mxu0
      %v4636 = vpop.f32.mrf.mxu0
      %v4637 = vadd.f32 0.0, %v4636
      %v4638 = vpop.f32.mrf.mxu0
      %4639 = vmatprep.mubr.bf16.mxu0 0
      %4640 = vmatmul.mubr.bf16.gmra.mxu0 %v4497
      %v4641 = vpop.f32.mrf.mxu0
      %v4642 = vadd.f32 0.0, %v4641
      %v4643 = vpop.f32.mrf.mxu0
      %v4644 = vpop.f32.mrf.mxu0
      %v4645 = vadd.f32 0.0, %v4644
      %v4646 = vpop.f32.mrf.mxu0
      %4647 = vmatprep.mubr.bf16.mxu0 0
      %4648 = vmatmul.mubr.bf16.gmra.mxu0 %v4500
      %v4649 = vpop.f32.mrf.mxu0
      %v4650 = vadd.f32 0.0, %v4649
      %v4651 = vpop.f32.mrf.mxu0
      %v4652 = vpop.f32.mrf.mxu0
      %v4653 = vadd.f32 0.0, %v4652
      %v4654 = vpop.f32.mrf.mxu0
      %4655 = vmatprep.mubr.bf16.mxu0 0
      %4656 = vmatmul.mubr.bf16.gmra.mxu0 %v4503
      %v4657 = vpop.f32.mrf.mxu0
      %v4658 = vadd.f32 0.0, %v4657
      %v4659 = vpop.f32.mrf.mxu0
      %v4660 = vpop.f32.mrf.mxu0
      %v4661 = vadd.f32 0.0, %v4660
      %v4662 = vpop.f32.mrf.mxu0
      %4663 = vmatprep.mubr.bf16.mxu0 0
      %4664 = vmatmul.mubr.bf16.gmra.mxu0 %v4506
      %v4665 = vpop.f32.mrf.mxu0
      %v4666 = vadd.f32 0.0, %v4665
      %v4667 = vpop.f32.mrf.mxu0
      %v4668 = vpop.f32.mrf.mxu0
      %v4669 = vadd.f32 0.0, %v4668
      %v4670 = vpop.f32.mrf.mxu0
      %4671 = vdwg.mxu0
      %v4672 = vadd.f32 %v4343, %v4546
      %v4673 = vadd.f32 %v4344, %v4549
      %v4674 = vadd.f32 %v4345, %v4554
      %v4675 = vadd.f32 %v4346, %v4557
      %v4676 = vadd.f32 %v4347, %v4562
      %v4677 = vadd.f32 %v4348, %v4565
      %v4678 = vadd.f32 %v4349, %v4570
      %v4679 = vadd.f32 %v4350, %v4573
      %v4680 = vadd.f32 %v4351, %v4578
      %v4681 = vadd.f32 %v4352, %v4581
      %v4682 = vadd.f32 %v4353, %v4586
      %v4683 = vadd.f32 %v4354, %v4589
      %v4684 = vadd.f32 %v4355, %v4594
      %v4685 = vadd.f32 %v4356, %v4597
      %v4686 = vadd.f32 %v4357, %v4602
      %v4687 = vadd.f32 %v4358, %v4605
      %v4688 = vadd.f32 %v4359, %v4610
      %v4689 = vadd.f32 %v4360, %v4613
      %v4690 = vadd.f32 %v4361, %v4618
      %v4691 = vadd.f32 %v4362, %v4621
      %v4692 = vadd.f32 %v4363, %v4626
      %v4693 = vadd.f32 %v4364, %v4629
      %v4694 = vadd.f32 %v4365, %v4634
      %v4695 = vadd.f32 %v4366, %v4637
      %v4696 = vadd.f32 %v4367, %v4642
      %v4697 = vadd.f32 %v4368, %v4645
      %v4698 = vadd.f32 %v4369, %v4650
      %v4699 = vadd.f32 %v4370, %v4653
      %v4700 = vadd.f32 %v4371, %v4658
      %v4701 = vadd.f32 %v4372, %v4661
      %v4702 = vadd.f32 %v4373, %v4666
      %v4703 = vadd.f32 %v4374, %v4669
      %v4704 = vld [vmem:[%s1 + $0x10] sm:$0x3]
      %v4705 = vunpack.c.l.b16 %v2091
      %v4706 = vunpack.c.l.b16 %v2099
      %v4707 = vunpack.c.l.b16 %v2105
      %v4708 = vunpack.c.l.b16 %v2113
      %v4709 = vunpack.c.l.b16 %v2119
      %v4710 = vunpack.c.l.b16 %v2127
      %v4711 = vunpack.c.l.b16 %v2133
      %v4712 = vunpack.c.l.b16 %v2141
      %v4713 = vunpack.c.l.b16 %v2147
      %v4714 = vunpack.c.l.b16 %v2155
      %v4715 = vunpack.c.l.b16 %v2161
      %v4716 = vunpack.c.l.b16 %v2169
      %v4717 = vunpack.c.l.b16 %v2175
      %v4718 = vunpack.c.l.b16 %v2183
      %v4719 = vunpack.c.l.b16 %v2189
      %v4720 = vunpack.c.l.b16 %v2197
      %v4721 = vunpack.c.l.b16 %v2203
      %v4722 = vunpack.c.l.b16 %v2211
      %v4723 = vunpack.c.l.b16 %v2217
      %v4724 = vunpack.c.l.b16 %v2225
      %v4725 = vunpack.c.l.b16 %v2231
      %v4726 = vunpack.c.l.b16 %v2239
      %v4727 = vunpack.c.l.b16 %v2245
      %v4728 = vunpack.c.l.b16 %v2253
      %v4729 = vunpack.c.l.b16 %v2259
      %v4730 = vunpack.c.l.b16 %v2267
      %v4731 = vunpack.c.l.b16 %v2273
      %v4732 = vunpack.c.l.b16 %v2281
      %v4733 = vunpack.c.l.b16 %v2287
      %v4734 = vunpack.c.l.b16 %v2295
      %v4735 = vunpack.c.l.b16 %v2301
      %v4736 = vunpack.c.l.b16 %v2309
      %v4737 = vpack.c.b16 %v4706, %v4705
      %v4738 = vpack.c.b16 %v4708, %v4707
      %v4739 = vpack.c.b16 %v4710, %v4709
      %v4740 = vpack.c.b16 %v4712, %v4711
      %v4741 = vpack.c.b16 %v4714, %v4713
      %v4742 = vpack.c.b16 %v4716, %v4715
      %v4743 = vpack.c.b16 %v4718, %v4717
      %v4744 = vpack.c.b16 %v4720, %v4719
      %v4745 = vpack.c.b16 %v4722, %v4721
      %v4746 = vpack.c.b16 %v4724, %v4723
      %v4747 = vpack.c.b16 %v4726, %v4725
      %v4748 = vpack.c.b16 %v4728, %v4727
      %v4749 = vpack.c.b16 %v4730, %v4729
      %v4750 = vpack.c.b16 %v4732, %v4731
      %v4751 = vpack.c.b16 %v4734, %v4733
      %v4752 = vpack.c.b16 %v4736, %v4735
      %v4754 = vsel %vm2396, %v4737, 0
      %v4757 = vsel %vm2396, %v4738, 0
      %v4760 = vsel %vm2396, %v4739, 0
      %v4763 = vsel %vm2396, %v4740, 0
      %v4766 = vsel %vm2396, %v4741, 0
      %v4769 = vsel %vm2396, %v4742, 0
      %v4772 = vsel %vm2396, %v4743, 0
      %v4775 = vsel %vm2396, %v4744, 0
      %v4778 = vsel %vm2396, %v4745, 0
      %v4781 = vsel %vm2396, %v4746, 0
      %v4784 = vsel %vm2396, %v4747, 0
      %v4787 = vsel %vm2396, %v4748, 0
      %v4790 = vsel %vm2396, %v4749, 0
      %v4793 = vsel %vm2396, %v4750, 0
      %v4796 = vsel %vm2396, %v4751, 0
      %v4799 = vsel %vm2396, %v4752, 0
      %v4802 = vsel %vm2445, %v4704, 0
      %4804 = vmatprep.subr.bf16.mxu0 0
      %4805 = vmatpush1.bf16.msra.mxu0 0
      %4806 = vmatprep.subr.bf16.mxu0 0
      %4807 = vmatpush1.bf16.msra.mxu0 0
      %4808 = vmatprep.subr.bf16.mxu0 0
      %4809 = vmatpush1.bf16.msra.mxu0 0
      %4810 = vmatprep.subr.bf16.mxu0 0
      %4811 = vmatpush1.bf16.msra.mxu0 0
      %4812 = vmatprep.subr.bf16.mxu0 0
      %4813 = vmatpush1.bf16.msra.mxu0 0
      %4814 = vmatprep.subr.bf16.mxu0 0
      %4815 = vmatpush1.bf16.msra.mxu0 0
      %4816 = vmatprep.subr.bf16.mxu0 0
      %4817 = vmatpush1.bf16.msra.mxu0 0
      %4818 = vmatprep.subr.bf16.mxu0 0
      %4819 = vmatpush1.bf16.msra.mxu0 %v4802
      %4820 = vmatprep.subr.bf16.mxu0 0
      %4821 = vmatpush2.bf16.msra.mxu0 0
      %4822 = vmatprep.subr.bf16.mxu0 0
      %4823 = vmatpush2.bf16.msra.mxu0 0
      %4824 = vmatprep.subr.bf16.mxu0 0
      %4825 = vmatpush2.bf16.msra.mxu0 0
      %4826 = vmatprep.subr.bf16.mxu0 0
      %4827 = vmatpush2.bf16.msra.mxu0 0
      %4828 = vmatprep.subr.bf16.mxu0 0
      %4829 = vmatpush2.bf16.msra.mxu0 0
      %4830 = vmatprep.subr.bf16.mxu0 0
      %4831 = vmatpush2.bf16.msra.mxu0 0
      %4832 = vmatprep.subr.bf16.mxu0 0
      %4833 = vmatpush2.bf16.msra.mxu0 0
      %4834 = vmatprep.subr.bf16.mxu0 0
      %4835 = vmatpush2.bf16.msra.mxu0 0
      %4836 = vmatprep.mubr.bf16.mxu0 0
      %4837 = vmatmul.mubr.bf16.gmra.mxu0 %v4754
      %v4838 = vpop.f32.mrf.mxu0
      %v4839 = vadd.f32 0.0, %v4838
      %v4840 = vpop.f32.mrf.mxu0
      %v4841 = vpop.f32.mrf.mxu0
      %v4842 = vadd.f32 0.0, %v4841
      %v4843 = vpop.f32.mrf.mxu0
      %4844 = vmatprep.mubr.bf16.mxu0 0
      %4845 = vmatmul.mubr.bf16.gmra.mxu0 %v4757
      %v4846 = vpop.f32.mrf.mxu0
      %v4847 = vadd.f32 0.0, %v4846
      %v4848 = vpop.f32.mrf.mxu0
      %v4849 = vpop.f32.mrf.mxu0
      %v4850 = vadd.f32 0.0, %v4849
      %v4851 = vpop.f32.mrf.mxu0
      %4852 = vmatprep.mubr.bf16.mxu0 0
      %4853 = vmatmul.mubr.bf16.gmra.mxu0 %v4760
      %v4854 = vpop.f32.mrf.mxu0
      %v4855 = vadd.f32 0.0, %v4854
      %v4856 = vpop.f32.mrf.mxu0
      %v4857 = vpop.f32.mrf.mxu0
      %v4858 = vadd.f32 0.0, %v4857
      %v4859 = vpop.f32.mrf.mxu0
      %4860 = vmatprep.mubr.bf16.mxu0 0
      %4861 = vmatmul.mubr.bf16.gmra.mxu0 %v4763
      %v4862 = vpop.f32.mrf.mxu0
      %v4863 = vadd.f32 0.0, %v4862
      %v4864 = vpop.f32.mrf.mxu0
      %v4865 = vpop.f32.mrf.mxu0
      %v4866 = vadd.f32 0.0, %v4865
      %v4867 = vpop.f32.mrf.mxu0
      %4868 = vmatprep.mubr.bf16.mxu0 0
      %4869 = vmatmul.mubr.bf16.gmra.mxu0 %v4766
      %v4870 = vpop.f32.mrf.mxu0
      %v4871 = vadd.f32 0.0, %v4870
      %v4872 = vpop.f32.mrf.mxu0
      %v4873 = vpop.f32.mrf.mxu0
      %v4874 = vadd.f32 0.0, %v4873
      %v4875 = vpop.f32.mrf.mxu0
      %4876 = vmatprep.mubr.bf16.mxu0 0
      %4877 = vmatmul.mubr.bf16.gmra.mxu0 %v4769
      %v4878 = vpop.f32.mrf.mxu0
      %v4879 = vadd.f32 0.0, %v4878
      %v4880 = vpop.f32.mrf.mxu0
      %v4881 = vpop.f32.mrf.mxu0
      %v4882 = vadd.f32 0.0, %v4881
      %v4883 = vpop.f32.mrf.mxu0
      %4884 = vmatprep.mubr.bf16.mxu0 0
      %4885 = vmatmul.mubr.bf16.gmra.mxu0 %v4772
      %v4886 = vpop.f32.mrf.mxu0
      %v4887 = vadd.f32 0.0, %v4886
      %v4888 = vpop.f32.mrf.mxu0
      %v4889 = vpop.f32.mrf.mxu0
      %v4890 = vadd.f32 0.0, %v4889
      %v4891 = vpop.f32.mrf.mxu0
      %4892 = vmatprep.mubr.bf16.mxu0 0
      %4893 = vmatmul.mubr.bf16.gmra.mxu0 %v4775
      %v4894 = vpop.f32.mrf.mxu0
      %v4895 = vadd.f32 0.0, %v4894
      %v4896 = vpop.f32.mrf.mxu0
      %v4897 = vpop.f32.mrf.mxu0
      %v4898 = vadd.f32 0.0, %v4897
      %v4899 = vpop.f32.mrf.mxu0
      %4900 = vmatprep.mubr.bf16.mxu0 0
      %4901 = vmatmul.mubr.bf16.gmra.mxu0 %v4778
      %v4902 = vpop.f32.mrf.mxu0
      %v4903 = vadd.f32 0.0, %v4902
      %v4904 = vpop.f32.mrf.mxu0
      %v4905 = vpop.f32.mrf.mxu0
      %v4906 = vadd.f32 0.0, %v4905
      %v4907 = vpop.f32.mrf.mxu0
      %4908 = vmatprep.mubr.bf16.mxu0 0
      %4909 = vmatmul.mubr.bf16.gmra.mxu0 %v4781
      %v4910 = vpop.f32.mrf.mxu0
      %v4911 = vadd.f32 0.0, %v4910
      %v4912 = vpop.f32.mrf.mxu0
      %v4913 = vpop.f32.mrf.mxu0
      %v4914 = vadd.f32 0.0, %v4913
      %v4915 = vpop.f32.mrf.mxu0
      %4916 = vmatprep.mubr.bf16.mxu0 0
      %4917 = vmatmul.mubr.bf16.gmra.mxu0 %v4784
      %v4918 = vpop.f32.mrf.mxu0
      %v4919 = vadd.f32 0.0, %v4918
      %v4920 = vpop.f32.mrf.mxu0
      %v4921 = vpop.f32.mrf.mxu0
      %v4922 = vadd.f32 0.0, %v4921
      %v4923 = vpop.f32.mrf.mxu0
      %4924 = vmatprep.mubr.bf16.mxu0 0
      %4925 = vmatmul.mubr.bf16.gmra.mxu0 %v4787
      %v4926 = vpop.f32.mrf.mxu0
      %v4927 = vadd.f32 0.0, %v4926
      %v4928 = vpop.f32.mrf.mxu0
      %v4929 = vpop.f32.mrf.mxu0
      %v4930 = vadd.f32 0.0, %v4929
      %v4931 = vpop.f32.mrf.mxu0
      %4932 = vmatprep.mubr.bf16.mxu0 0
      %4933 = vmatmul.mubr.bf16.gmra.mxu0 %v4790
      %v4934 = vpop.f32.mrf.mxu0
      %v4935 = vadd.f32 0.0, %v4934
      %v4936 = vpop.f32.mrf.mxu0
      %v4937 = vpop.f32.mrf.mxu0
      %v4938 = vadd.f32 0.0, %v4937
      %v4939 = vpop.f32.mrf.mxu0
      %4940 = vmatprep.mubr.bf16.mxu0 0
      %4941 = vmatmul.mubr.bf16.gmra.mxu0 %v4793
      %v4942 = vpop.f32.mrf.mxu0
      %v4943 = vadd.f32 0.0, %v4942
      %v4944 = vpop.f32.mrf.mxu0
      %v4945 = vpop.f32.mrf.mxu0
      %v4946 = vadd.f32 0.0, %v4945
      %v4947 = vpop.f32.mrf.mxu0
      %4948 = vmatprep.mubr.bf16.mxu0 0
      %4949 = vmatmul.mubr.bf16.gmra.mxu0 %v4796
      %v4950 = vpop.f32.mrf.mxu0
      %v4951 = vadd.f32 0.0, %v4950
      %v4952 = vpop.f32.mrf.mxu0
      %v4953 = vpop.f32.mrf.mxu0
      %v4954 = vadd.f32 0.0, %v4953
      %v4955 = vpop.f32.mrf.mxu0
      %4956 = vmatprep.mubr.bf16.mxu0 0
      %4957 = vmatmul.mubr.bf16.gmra.mxu0 %v4799
      %v4958 = vpop.f32.mrf.mxu0
      %v4959 = vadd.f32 0.0, %v4958
      %v4960 = vpop.f32.mrf.mxu0
      %v4961 = vpop.f32.mrf.mxu0
      %v4962 = vadd.f32 0.0, %v4961
      %v4963 = vpop.f32.mrf.mxu0
      %4964 = vdwg.mxu0
      %v4965 = vadd.f32 %v4672, %v4839
      %v4966 = vadd.f32 %v4673, %v4842
      %v4967 = vadd.f32 %v4674, %v4847
      %v4968 = vadd.f32 %v4675, %v4850
      %v4969 = vadd.f32 %v4676, %v4855
      %v4970 = vadd.f32 %v4677, %v4858
      %v4971 = vadd.f32 %v4678, %v4863
      %v4972 = vadd.f32 %v4679, %v4866
      %v4973 = vadd.f32 %v4680, %v4871
      %v4974 = vadd.f32 %v4681, %v4874
      %v4975 = vadd.f32 %v4682, %v4879
      %v4976 = vadd.f32 %v4683, %v4882
      %v4977 = vadd.f32 %v4684, %v4887
      %v4978 = vadd.f32 %v4685, %v4890
      %v4979 = vadd.f32 %v4686, %v4895
      %v4980 = vadd.f32 %v4687, %v4898
      %v4981 = vadd.f32 %v4688, %v4903
      %v4982 = vadd.f32 %v4689, %v4906
      %v4983 = vadd.f32 %v4690, %v4911
      %v4984 = vadd.f32 %v4691, %v4914
      %v4985 = vadd.f32 %v4692, %v4919
      %v4986 = vadd.f32 %v4693, %v4922
      %v4987 = vadd.f32 %v4694, %v4927
      %v4988 = vadd.f32 %v4695, %v4930
      %v4989 = vadd.f32 %v4696, %v4935
      %v4990 = vadd.f32 %v4697, %v4938
      %v4991 = vadd.f32 %v4698, %v4943
      %v4992 = vadd.f32 %v4699, %v4946
      %v4993 = vadd.f32 %v4700, %v4951
      %v4994 = vadd.f32 %v4701, %v4954
      %v4995 = vadd.f32 %v4702, %v4959
      %v4996 = vadd.f32 %v4703, %v4962
      %v4997 = vld [vmem:[%s2] sm:$0x1]
      %v4999 = vlaneseq
      %v5000 = vshrl.u32 %v4999, 7
      %v5001 = vsub.s32 0, %v5000
      %v5002 = vrot.slane %v4997, %v5001
      %v5004 = vadd.f32 %v4965, %v5002
      %v5005 = vadd.f32 %v4966, %v5002
      %v5006 = vadd.f32 %v4967, %v5002
      %v5007 = vadd.f32 %v4968, %v5002
      %v5008 = vadd.f32 %v4969, %v5002
      %v5009 = vadd.f32 %v4970, %v5002
      %v5010 = vadd.f32 %v4971, %v5002
      %v5011 = vadd.f32 %v4972, %v5002
      %v5012 = vadd.f32 %v4973, %v5002
      %v5013 = vadd.f32 %v4974, %v5002
      %v5014 = vadd.f32 %v4975, %v5002
      %v5015 = vadd.f32 %v4976, %v5002
      %v5016 = vadd.f32 %v4977, %v5002
      %v5017 = vadd.f32 %v4978, %v5002
      %v5018 = vadd.f32 %v4979, %v5002
      %v5019 = vadd.f32 %v4980, %v5002
      %v5020 = vadd.f32 %v4981, %v5002
      %v5021 = vadd.f32 %v4982, %v5002
      %v5022 = vadd.f32 %v4983, %v5002
      %v5023 = vadd.f32 %v4984, %v5002
      %v5024 = vadd.f32 %v4985, %v5002
      %v5025 = vadd.f32 %v4986, %v5002
      %v5026 = vadd.f32 %v4987, %v5002
      %v5027 = vadd.f32 %v4988, %v5002
      %v5028 = vadd.f32 %v4989, %v5002
      %v5029 = vadd.f32 %v4990, %v5002
      %v5030 = vadd.f32 %v4991, %v5002
      %v5031 = vadd.f32 %v4992, %v5002
      %v5032 = vadd.f32 %v4993, %v5002
      %v5033 = vadd.f32 %v4994, %v5002
      %v5034 = vadd.f32 %v4995, %v5002
      %v5035 = vadd.f32 %v4996, %v5002
      %p5036 = scmp.lt.s32.totalorder %s15, 0
      %s5037 = ssub.s32 0, %s15
      %s5038 = scalar_select %p5036, %s5037, %s15
      %s5039 = sand.u32 %s5038, 1
      %s5040 = ssub.s32 0, %s5039
      %s5041 = scalar_select %p5036, %s5040, %s5039
      %p5042 = scmp.ne.s32.totalorder %s5041, 0
      %p5043 = scmp.lt.s32.totalorder %s5041, 0
      %p5044 = pnand %p5043, %p5042
      %p5045 = pneg %p5044
      %s5046 = sadd.s32 %s5041, 2
      %s5047 = scalar_select %p5045, %s5046, %s5041
      %s5048 = scalar_lea.vmem %s3, %s5047
      %v5049 = vld [vmem:[%s5048] sm:$0x1]
      %v5050 = vmul.f32 %v5049, 0.8
      %v5051 = vlaneseq
      %v5052 = vshrl.u32 %v5051, 7
      %v5053 = vsub.s32 0, %v5052
      %v5054 = vrot.slane %v5050, %v5053
      %v5055 = vadd.f32 %v5004, %v5054
      %v5056 = vadd.f32 %v5005, %v5054
      %v5057 = vadd.f32 %v5006, %v5054
      %v5058 = vadd.f32 %v5007, %v5054
      %v5059 = vadd.f32 %v5008, %v5054
      %v5060 = vadd.f32 %v5009, %v5054
      %v5061 = vadd.f32 %v5010, %v5054
      %v5062 = vadd.f32 %v5011, %v5054
      %v5063 = vadd.f32 %v5012, %v5054
      %v5064 = vadd.f32 %v5013, %v5054
      %v5065 = vadd.f32 %v5014, %v5054
      %v5066 = vadd.f32 %v5015, %v5054
      %v5067 = vadd.f32 %v5016, %v5054
      %v5068 = vadd.f32 %v5017, %v5054
      %v5069 = vadd.f32 %v5018, %v5054
      %v5070 = vadd.f32 %v5019, %v5054
      %v5071 = vadd.f32 %v5020, %v5054
      %v5072 = vadd.f32 %v5021, %v5054
      %v5073 = vadd.f32 %v5022, %v5054
      %v5074 = vadd.f32 %v5023, %v5054
      %v5075 = vadd.f32 %v5024, %v5054
      %v5076 = vadd.f32 %v5025, %v5054
      %v5077 = vadd.f32 %v5026, %v5054
      %v5078 = vadd.f32 %v5027, %v5054
      %v5079 = vadd.f32 %v5028, %v5054
      %v5080 = vadd.f32 %v5029, %v5054
      %v5081 = vadd.f32 %v5030, %v5054
      %v5082 = vadd.f32 %v5031, %v5054
      %v5083 = vadd.f32 %v5032, %v5054
      %v5084 = vadd.f32 %v5033, %v5054
      %v5085 = vadd.f32 %v5034, %v5054
      %v5086 = vadd.f32 %v5035, %v5054
      %v5087 = vpack.c.bf16 %v5056, %v5055
      %v5088 = vpack.c.bf16 %v5058, %v5057
      %v5089 = vpack.c.bf16 %v5060, %v5059
      %v5090 = vpack.c.bf16 %v5062, %v5061
      %v5091 = vpack.c.bf16 %v5064, %v5063
      %v5092 = vpack.c.bf16 %v5066, %v5065
      %v5093 = vpack.c.bf16 %v5068, %v5067
      %v5094 = vpack.c.bf16 %v5070, %v5069
      %v5095 = vpack.c.bf16 %v5072, %v5071
      %v5096 = vpack.c.bf16 %v5074, %v5073
      %v5097 = vpack.c.bf16 %v5076, %v5075
      %v5098 = vpack.c.bf16 %v5078, %v5077
      %v5099 = vpack.c.bf16 %v5080, %v5079
      %v5100 = vpack.c.bf16 %v5082, %v5081
      %v5101 = vpack.c.bf16 %v5084, %v5083
      %v5102 = vpack.c.bf16 %v5086, %v5085
      %v5119 = vunpack.c.l.b16 %v5087
      %v5120 = vunpack.c.h.b16 %v5087
      %v5121 = vunpack.c.l.b16 %v5088
      %v5122 = vunpack.c.h.b16 %v5088
      %v5123 = vunpack.c.l.b16 %v5089
      %v5124 = vunpack.c.h.b16 %v5089
      %v5125 = vunpack.c.l.b16 %v5090
      %v5126 = vunpack.c.h.b16 %v5090
      %v5127 = vunpack.c.l.b16 %v5091
      %v5128 = vunpack.c.h.b16 %v5091
      %v5129 = vunpack.c.l.b16 %v5092
      %v5130 = vunpack.c.h.b16 %v5092
      %v5131 = vunpack.c.l.b16 %v5093
      %v5132 = vunpack.c.h.b16 %v5093
      %v5133 = vunpack.c.l.b16 %v5094
      %v5134 = vunpack.c.h.b16 %v5094
      %v5135 = vunpack.c.l.b16 %v5095
      %v5136 = vunpack.c.h.b16 %v5095
      %v5137 = vunpack.c.l.b16 %v5096
      %v5138 = vunpack.c.h.b16 %v5096
      %v5139 = vunpack.c.l.b16 %v5097
      %v5140 = vunpack.c.h.b16 %v5097
      %v5141 = vunpack.c.l.b16 %v5098
      %v5142 = vunpack.c.h.b16 %v5098
      %v5143 = vunpack.c.l.b16 %v5099
      %v5144 = vunpack.c.h.b16 %v5099
      %v5145 = vunpack.c.l.b16 %v5100
      %v5146 = vunpack.c.h.b16 %v5100
      %v5147 = vunpack.c.l.b16 %v5101
      %v5148 = vunpack.c.h.b16 %v5101
      %v5149 = vunpack.c.l.b16 %v5102
      %v5150 = vunpack.c.h.b16 %v5102
      %v5151 = vpack.c.b16 %v5119, %v5119
      %v5152 = vpack.c.b16 %v5120, %v5120
      %v5153 = vpack.c.b16 %v5121, %v5121
      %v5154 = vpack.c.b16 %v5122, %v5122
      %v5155 = vpack.c.b16 %v5123, %v5123
      %v5156 = vpack.c.b16 %v5124, %v5124
      %v5157 = vpack.c.b16 %v5125, %v5125
      %v5158 = vpack.c.b16 %v5126, %v5126
      %v5159 = vpack.c.b16 %v5127, %v5127
      %v5160 = vpack.c.b16 %v5128, %v5128
      %v5161 = vpack.c.b16 %v5129, %v5129
      %v5162 = vpack.c.b16 %v5130, %v5130
      %v5163 = vpack.c.b16 %v5131, %v5131
      %v5164 = vpack.c.b16 %v5132, %v5132
      %v5165 = vpack.c.b16 %v5133, %v5133
      %v5166 = vpack.c.b16 %v5134, %v5134
      %v5167 = vpack.c.b16 %v5135, %v5135
      %v5168 = vpack.c.b16 %v5136, %v5136
      %v5169 = vpack.c.b16 %v5137, %v5137
      %v5170 = vpack.c.b16 %v5138, %v5138
      %v5171 = vpack.c.b16 %v5139, %v5139
      %v5172 = vpack.c.b16 %v5140, %v5140
      %v5173 = vpack.c.b16 %v5141, %v5141
      %v5174 = vpack.c.b16 %v5142, %v5142
      %v5175 = vpack.c.b16 %v5143, %v5143
      %v5176 = vpack.c.b16 %v5144, %v5144
      %v5177 = vpack.c.b16 %v5145, %v5145
      %v5178 = vpack.c.b16 %v5146, %v5146
      %v5179 = vpack.c.b16 %v5147, %v5147
      %v5180 = vpack.c.b16 %v5148, %v5148
      %v5181 = vpack.c.b16 %v5149, %v5149
      %v5182 = vpack.c.b16 %v5150, %v5150
      %vm5215 = vcmask 60416
      %5216 = vst.msk [vmem:[%s197] sm:$0xf] %vm5215, %v5151
      %5217 = vst.msk [vmem:[%s197 + $0x4] sm:$0xf] %vm5215, %v5152
      %5218 = vst.msk [vmem:[%s197 + $0x8] sm:$0xf] %vm5215, %v5153
      %5219 = vst.msk [vmem:[%s197 + $0xc] sm:$0xf] %vm5215, %v5154
      %5220 = vst.msk [vmem:[%s197 + $0x10] sm:$0xf] %vm5215, %v5155
      %5221 = vst.msk [vmem:[%s197 + $0x14] sm:$0xf] %vm5215, %v5156
      %5222 = vst.msk [vmem:[%s197 + $0x18] sm:$0xf] %vm5215, %v5157
      %5223 = vst.msk [vmem:[%s197 + $0x1c] sm:$0xf] %vm5215, %v5158
      %5224 = vst.msk [vmem:[%s197 + $0x20] sm:$0xf] %vm5215, %v5159
      %5225 = vst.msk [vmem:[%s197 + $0x24] sm:$0xf] %vm5215, %v5160
      %5226 = vst.msk [vmem:[%s197 + $0x28] sm:$0xf] %vm5215, %v5161
      %5227 = vst.msk [vmem:[%s197 + $0x2c] sm:$0xf] %vm5215, %v5162
      %5228 = vst.msk [vmem:[%s197 + $0x30] sm:$0xf] %vm5215, %v5163
      %5229 = vst.msk [vmem:[%s197 + $0x34] sm:$0xf] %vm5215, %v5164
      %5230 = vst.msk [vmem:[%s197 + $0x38] sm:$0xf] %vm5215, %v5165
      %5231 = vst.msk [vmem:[%s197 + $0x3c] sm:$0xf] %vm5215, %v5166
      %5232 = vst.msk [vmem:[%s197 + $0x40] sm:$0xf] %vm5215, %v5167
      %5233 = vst.msk [vmem:[%s197 + $0x44] sm:$0xf] %vm5215, %v5168
      %5234 = vst.msk [vmem:[%s197 + $0x48] sm:$0xf] %vm5215, %v5169
      %5235 = vst.msk [vmem:[%s197 + $0x4c] sm:$0xf] %vm5215, %v5170
      %5236 = vst.msk [vmem:[%s197 + $0x50] sm:$0xf] %vm5215, %v5171
      %5237 = vst.msk [vmem:[%s197 + $0x54] sm:$0xf] %vm5215, %v5172
      %5238 = vst.msk [vmem:[%s197 + $0x58] sm:$0xf] %vm5215, %v5173
      %5239 = vst.msk [vmem:[%s197 + $0x5c] sm:$0xf] %vm5215, %v5174
      %5240 = vst.msk [vmem:[%s197 + $0x60] sm:$0xf] %vm5215, %v5175
      %5241 = vst.msk [vmem:[%s197 + $0x64] sm:$0xf] %vm5215, %v5176
      %5242 = vst.msk [vmem:[%s197 + $0x68] sm:$0xf] %vm5215, %v5177
      %5243 = vst.msk [vmem:[%s197 + $0x6c] sm:$0xf] %vm5215, %v5178
      %5244 = vst.msk [vmem:[%s197 + $0x70] sm:$0xf] %vm5215, %v5179
      %5245 = vst.msk [vmem:[%s197 + $0x74] sm:$0xf] %vm5215, %v5180
      %5246 = vst.msk [vmem:[%s197 + $0x78] sm:$0xf] %vm5215, %v5181
      %5247 = vst.msk [vmem:[%s197 + $0x7c] sm:$0xf] %vm5215, %v5182
      %p5248 = scmp.lt.s32.totalorder %s15, 3
      %s5249 = scalar_select %p5248, %s15, 3
      %s5250 = smul.addr %s5249, 32
      %s5251 = smul.addr %s5250, 4
      %s5252 = scalar_lea.vmem %s4, %s5251
      // Predicated region
      $region37: #{tpu_custom_call.1} parent=35 // pred_check
        %p5253 = pneg %p122
      $region38: #{tpu_custom_call.1} parent=35 // pred_check_branch
        %5255 = sbr.rel (%p5253) target = $region40
      $region39: #{tpu_custom_call.1} parent=35 // pred_region
        _
      $region40: #{tpu_custom_call.1} parent=35 // pred_fallthru
        _
    $region36: #{tpu_custom_call.1} parent=5 // pred_fallthru
      _
    %p5256 = scmp.le.s32.totalorder 2, %s10
    // Predicated region
    $region41: #{tpu_custom_call.1} parent=5 // pred_check
      %p5257 = pneg %p5256
    $region42: #{tpu_custom_call.1} parent=5 // pred_check_branch
      %5259 = sbr.rel (%p5257) target = $region44
    $region43: #{tpu_custom_call.1} parent=5 // pred_region
      %s5260 = ssub.s32 %s10, 2
      // Predicated region
      $region45: #{tpu_custom_call.1} parent=43 // pred_check
        %p5261 = pneg %p128
      $region46: #{tpu_custom_call.1} parent=43 // pred_check_branch
        %5263 = sbr.rel (%p5261) target = $region48
      $region47: #{tpu_custom_call.1} parent=43 // pred_region
        %p5264 = scmp.lt.s32.totalorder %s16, 3
        %s5265 = scalar_select %p5264, %s16, 3
        %s5266 = smul.addr %s5265, 32
        %s5267 = smul.addr %s5266, 4
        %s5268 = scalar_lea.vmem %s4, %s5267
      $region48: #{tpu_custom_call.1} parent=43 // pred_fallthru
        _
    $region44: #{tpu_custom_call.1} parent=5 // pred_fallthru
      _
  $region6: #{tpu_custom_call.1} parent=0 // loop_footer
    %s14 = sadd.s32 1, %s10
  $region7: #{tpu_custom_call.1} parent=0 // loop_footer_branch
    %9 = sbr.rel target = $region3
  $region8: #{tpu_custom_call.1} parent=0 // loop_exit
    _

</llo_original>
